<compile_context>
chip_gen: v7x
topology: tpu7x:2x2x1
jax: 0.10.0
libtpu: 0.0.40
codegen_flags: <defaults>
</compile_context>

<pallas_src>
import functools

import jax
import jax.numpy as jnp
from jax import lax
from jax.experimental import pallas as pl
from jax.experimental.pallas import tpu as pltpu

LEAK = 0.01                      # LeakyReLU slope stand-in for NL_class
EQ_OUT_DIM = 32                  # EQNoPad_Encoder.out_dim
RES_OUT_DIM = 32                 # ResEncoder_1d.out_dim
MEE_OUT_DIM = EQ_OUT_DIM + RES_OUT_DIM

EQ_K = 8                         # EQ conv kernel size (stand-in)
EQ_S = 4                         # EQ conv stride (stand-in)
EQ_MID = 16                      # EQ hidden channels (stand-in)


def _leaky(x):
    return jnp.where(x > 0, x, LEAK * x)


def _shift_left(x, k):
    """result[:, t] = x[:, (t + k) % T]   (static-amount XLU lane rotate)."""
    t = x.shape[-1]
    k = k % t
    if k == 0:
        return x
    return pltpu.roll(x, shift=t - k, axis=1)


def _shift_right(x, k):
    """result[:, t] = x[:, (t - k) % T]."""
    t = x.shape[-1]
    k = k % t
    if k == 0:
        return x
    return pltpu.roll(x, shift=k, axis=1)


def _mee_kernel(x_ref,
                eq1_w, eq1_b, eq2_w, eq2_b,
                rp_w, rp_b, r1_w, r1_b, r2_w, r2_b,
                out_ref, *, tb, c_in, t):
    # ---- constants hoisted out of the per-row loop (JAX does not CSE iota) ----
    lane = lax.broadcasted_iota(jnp.int32, (1, t), 1)
    # zero-padding masks for the "same" residual convs (kill the wrapped column)
    left_ok = jnp.where(lane >= 1, 1.0, 0.0)           # col 0 of shift-right -> 0
    right_ok = jnp.where(lane <= t - 2, 1.0, 0.0)      # col t-1 of shift-left -> 0
    # EQ branch: both no-pad stride-4 convs are evaluated at stride 1; the
    # combined stride-16 subsampling + mean pool become one masked reduction.
    t1 = (t - EQ_K) // EQ_S + 1                        # length after eq conv 1
    t2 = (t1 - EQ_K) // EQ_S + 1                       # length after eq conv 2
    eq_pool = jnp.where(
        (lane % (EQ_S * EQ_S) == 0) & (lane < EQ_S * EQ_S * t2),
        1.0 / t2, 0.0)                                 # (1, t) f32
    # 64x64 identity: (64,1) sublane column -> (1,64) lane row via broadcast
    # multiply + sublane reduce (lane-dense store without a transpose op).
    eye = jnp.where(
        lax.broadcasted_iota(jnp.int32, (MEE_OUT_DIM, MEE_OUT_DIM), 0)
        == lax.broadcasted_iota(jnp.int32, (MEE_OUT_DIM, MEE_OUT_DIM), 1),
        1.0, 0.0)

    xall = x_ref[0]                                    # (tb*c_in, t) f32
    rows = []
    for i in range(tb):                                # tb is small and static
        x = xall[i * c_in:(i + 1) * c_in, :]           # (c_in, t)

        # ---------------- EQNoPad_Encoder stand-in ----------------
        # conv1 (K=8, S=4, no pad): taps stacked along the contraction axis via
        # XLU rolls -> ONE matmul, contraction depth K*c_in.
        s1 = jnp.concatenate([_shift_left(x, k) for k in range(EQ_K)],
                             axis=0).astype(jnp.bfloat16)        # (K*c_in, t)
        h1 = jnp.dot(eq1_w[...], s1, preferred_element_type=jnp.float32)
        h1 = _leaky(h1 + eq1_b[...])                             # (EQ_MID, t)
        # conv2 on the stride-4 signal == dilation-4 conv on the stride-1 signal;
        # contraction depth K*EQ_MID = 128.  Wrapped/invalid columns are never
        # read by the pooled positions (proof: 16*(t2-1)+4*(K-1) <= t-K).
        s2 = jnp.concatenate([_shift_left(h1, EQ_S * k) for k in range(EQ_K)],
                             axis=0).astype(jnp.bfloat16)        # (128, t)
        h2 = jnp.dot(eq2_w[...], s2, preferred_element_type=jnp.float32)
        h2 = _leaky(h2 + eq2_b[...])                             # (EQ_OUT_DIM, t)
        eq_col = jnp.sum(h2 * eq_pool, axis=1, keepdims=True)    # (32, 1) mean

        # ---------------- ResEncoder_1d stand-in ----------------
        g = jnp.dot(rp_w[...], x.astype(jnp.bfloat16),
                    preferred_element_type=jnp.float32)
        g = _leaky(g + rp_b[...])                                # (RES_OUT_DIM, t)

        def conv3_same(h, w, b):
            # K=3, S=1, zero pad 1: rolls + edge masks, one matmul (depth 96).
            sm = jnp.concatenate([_shift_right(h, 1) * left_ok,
                                  h,
                                  _shift_left(h, 1) * right_ok],
                                 axis=0).astype(jnp.bfloat16)    # (96, t)
            return jnp.dot(w[...], sm, preferred_element_type=jnp.float32) + b[...]

        r = _leaky(conv3_same(g, r1_w, r1_b))
        r = conv3_same(r, r2_w, r2_b)                            # no activation
        gr = _leaky(g + r)                                       # residual merge
        res_col = jnp.sum(gr, axis=1, keepdims=True) * (1.0 / t)  # (32, 1) mean

        # torch slice-assignment out[:, 0:32]=eq, out[:, 32:64]=res as one
        # lane-dense (1, 64) row.
        col = jnp.concatenate([eq_col, res_col], axis=0)         # (64, 1)
        rows.append(jnp.sum(col * eye, axis=0, keepdims=True))   # (1, 64)

    out_ref[0] = jnp.concatenate(rows, axis=0).astype(out_ref.dtype)   # (tb, 64)


def _pick_batch_block(batch, c):
    """Largest batch block with <= 8 packed sublanes that still leaves >= 2
    grid steps (so a v7x megacore splits the batch across both TensorCores)."""
    best = 1
    for cand in range(1, batch + 1):
        if batch % cand:
            continue
        if cand * c > 8:
            break
        if batch >= 2 and batch // cand < 2:
            continue
        best = cand
    return best


def mee_equaliser_encoder(x_bct, params, *, batch_block=None):
    """Equivalent of MEE_Equaliser_Encoder.forward: (B, C, T) -> (B, 64)."""
    B, C, T = x_bct.shape
    # Need at least one valid output position from the two stride-4 convs.
    assert (T - EQ_K) // EQ_S + 1 >= EQ_K, "T too short for the EQ encoder"

    tb = _pick_batch_block(B, C) if batch_block is None else batch_block
    assert B % tb == 0
    n_steps = B // tb

    # Fold the batch block onto the sublane axis so the input block is DMA'd
    # with full 8-sublane utilization (C=2 alone would pad 4x).
    xg = x_bct.reshape(n_steps, tb * C, T)

    w_names = ["eq1_w", "eq1_b", "eq2_w", "eq2_b",
               "rp_w", "rp_b", "r1_w", "r1_b", "r2_w", "r2_b"]
    w_args = [params[n] for n in w_names]

    def full(a):       # grid-invariant, VMEM-resident weight block
        return pl.BlockSpec(a.shape, lambda b, _nd=a.ndim: (0,) * _nd)

    kernel = functools.partial(_mee_kernel, tb=tb, c_in=C, t=T)
    out = pl.pallas_call(
        kernel,
        out_shape=jax.ShapeDtypeStruct((n_steps, tb, MEE_OUT_DIM), jnp.float32),
        grid=(n_steps,),
        in_specs=[pl.BlockSpec((1, tb * C, T), lambda b: (b, 0, 0))]
                 + [full(a) for a in w_args],
        out_specs=pl.BlockSpec((1, tb, MEE_OUT_DIM), lambda b: (b, 0, 0)),
        compiler_params=pltpu.CompilerParams(
            dimension_semantics=("parallel",)),   # v7x: batch blocks across TCs
        # TODO(synk): for long T, tile T in the grid (K-1 halo for the pad-1
        # convs, 16-aligned tiles for the EQ pool mask) and set
        # vmem_limit_bytes explicitly; per-step VMEM here is tiny.
    )(xg, *w_args)
    return out.reshape(B, MEE_OUT_DIM)


# --------------------------------------------------------------------------
# Deterministic parameter init (affine norm folded into conv weights/bias,
# weights stored roll-stacked as (C_out, K*C_in) for one-matmul-per-layer).
# --------------------------------------------------------------------------
def init_params(key, c_in):
    ks = jax.random.split(key, 10)

    def conv_layer(kw, kb, c_out, c_i, ksize, scale=0.1):
        w = scale * jax.random.normal(kw, (c_out, c_i, ksize), dtype=jnp.float32)
        b = scale * jax.random.normal(kb, (c_out,), dtype=jnp.float32)
        gamma = jnp.ones((c_out,), jnp.float32)   # normalization_function stand-in
        beta = jnp.zeros((c_out,), jnp.float32)
        w_eff = w * gamma[:, None, None]          # fold static affine at init
        b_eff = b * gamma + beta
        # Roll-stacked layout: column block k holds tap k -> (C_out, K*C_in).
        w_s = jnp.transpose(w_eff, (0, 2, 1)).reshape(c_out, ksize * c_i)
        return w_s.astype(jnp.bfloat16), b_eff.reshape(c_out, 1)

    p = {}
    p["eq1_w"], p["eq1_b"] = conv_layer(ks[0], ks[1], EQ_MID, c_in, EQ_K)
    p["eq2_w"], p["eq2_b"] = conv_layer(ks[2], ks[3], EQ_OUT_DIM, EQ_MID, EQ_K)
    p["rp_w"], p["rp_b"] = conv_layer(ks[4], ks[5], RES_OUT_DIM, c_in, 1)
    p["r1_w"], p["r1_b"] = conv_layer(ks[6], ks[7], RES_OUT_DIM, RES_OUT_DIM, 3)
    p["r2_w"], p["r2_b"] = conv_layer(ks[8], ks[9], RES_OUT_DIM, RES_OUT_DIM, 3)
    return p


# --------------------------------------------------------------------------
if __name__ == "__main__":
    B, C, T = 8, 2, 128                # (batch, channels, time); TB=4 -> grid=(2,)
    key = jax.random.PRNGKey(0)
    k_x, k_p = jax.random.split(key)
    x = jax.random.normal(k_x, (B, C, T), dtype=jnp.float32)
    params = init_params(k_p, C)

    fwd = jax.jit(mee_equaliser_encoder)
    out = jax.block_until_ready(fwd(x, params))

    assert out.shape == (B, MEE_OUT_DIM), out.shape
    assert bool(jnp.all(jnp.isfinite(out)))
    print("KERNEL_OK")
</pallas_src>

<mosaic_0001>
module attributes {stable_mosaic.version = 11 : i64} {
  func.func @_mee_kernel(%arg0: i32, %arg1: memref<1x8x128xf32, #tpu.memory_space<vmem>>, %arg2: memref<16x16xbf16, #tpu.memory_space<vmem>>, %arg3: memref<16x1xf32, #tpu.memory_space<vmem>>, %arg4: memref<32x128xbf16, #tpu.memory_space<vmem>>, %arg5: memref<32x1xf32, #tpu.memory_space<vmem>>, %arg6: memref<32x2xbf16, #tpu.memory_space<vmem>>, %arg7: memref<32x1xf32, #tpu.memory_space<vmem>>, %arg8: memref<32x96xbf16, #tpu.memory_space<vmem>>, %arg9: memref<32x1xf32, #tpu.memory_space<vmem>>, %arg10: memref<32x96xbf16, #tpu.memory_space<vmem>>, %arg11: memref<32x1xf32, #tpu.memory_space<vmem>>, %arg12: memref<1x4x64xf32, #tpu.memory_space<vmem>>) attributes {dimension_semantics = [#tpu.dimension_semantics<parallel>], iteration_bounds = array<i64: 2>, scalar_prefetch = 0 : i64, scratch_operands = 0 : i64, tpu.core_type = #tpu.core_type<tc>, window_params = [{transform_indices = @transform_0, window_bounds = array<i64: 1, 8, 128>}, {pipeline_mode = #tpu.pipeline_mode<synchronous>, transform_indices = @transform_1, window_bounds = array<i64: 16, 16>}, {pipeline_mode = #tpu.pipeline_mode<synchronous>, transform_indices = @transform_2, window_bounds = array<i64: 16, 1>}, {pipeline_mode = #tpu.pipeline_mode<synchronous>, transform_indices = @transform_3, window_bounds = array<i64: 32, 128>}, {pipeline_mode = #tpu.pipeline_mode<synchronous>, transform_indices = @transform_4, window_bounds = array<i64: 32, 1>}, {pipeline_mode = #tpu.pipeline_mode<synchronous>, transform_indices = @transform_5, window_bounds = array<i64: 32, 2>}, {pipeline_mode = #tpu.pipeline_mode<synchronous>, transform_indices = @transform_6, window_bounds = array<i64: 32, 1>}, {pipeline_mode = #tpu.pipeline_mode<synchronous>, transform_indices = @transform_7, window_bounds = array<i64: 32, 96>}, {pipeline_mode = #tpu.pipeline_mode<synchronous>, transform_indices = @transform_8, window_bounds = array<i64: 32, 1>}, {pipeline_mode = #tpu.pipeline_mode<synchronous>, transform_indices = @transform_9, window_bounds = array<i64: 32, 96>}, {pipeline_mode = #tpu.pipeline_mode<synchronous>, transform_indices = @transform_10, window_bounds = array<i64: 32, 1>}, {transform_indices = @transform_11, window_bounds = array<i64: 1, 4, 64>}]} {
    %0 = tpu.iota {dimensions = array<i32: 1>} : vector<1x128xi32>
    %c1_i32 = arith.constant 1 : i32
    %1 = vector.broadcast %c1_i32 : i32 to vector<1x128xi32>
    %2 = arith.cmpi sge, %0, %1 : vector<1x128xi32>
    %cst = arith.constant 1.000000e+00 : f32
    %cst_0 = arith.constant 0.000000e+00 : f32
    %3 = vector.broadcast %cst : f32 to vector<1x128xf32>
    %4 = vector.broadcast %cst_0 : f32 to vector<1x128xf32>
    %5 = arith.select %2, %3, %4 : vector<1x128xi1>, vector<1x128xf32>
    %c126_i32 = arith.constant 126 : i32
    %6 = vector.broadcast %c126_i32 : i32 to vector<1x128xi32>
    %7 = arith.cmpi sle, %0, %6 : vector<1x128xi32>
    %cst_1 = arith.constant 1.000000e+00 : f32
    %cst_2 = arith.constant 0.000000e+00 : f32
    %8 = vector.broadcast %cst_1 : f32 to vector<1x128xf32>
    %9 = vector.broadcast %cst_2 : f32 to vector<1x128xf32>
    %10 = arith.select %7, %8, %9 : vector<1x128xi1>, vector<1x128xf32>
    %c16_i32 = arith.constant 16 : i32
    %c0_i32 = arith.constant 0 : i32
    %11 = arith.cmpi eq, %c16_i32, %c0_i32 : i32
    %c1_i32_3 = arith.constant 1 : i32
    %12 = arith.select %11, %c1_i32_3, %c16_i32 : i32
    %13 = vector.broadcast %12 : i32 to vector<1x128xi32>
    %14 = arith.remsi %0, %13 : vector<1x128xi32>
    %c0_i32_4 = arith.constant 0 : i32
    %15 = vector.broadcast %c0_i32_4 : i32 to vector<1x128xi32>
    %16 = arith.cmpi ne, %14, %15 : vector<1x128xi32>
    %c0_i32_5 = arith.constant 0 : i32
    %17 = vector.broadcast %c0_i32_5 : i32 to vector<1x128xi32>
    %18 = arith.cmpi slt, %14, %17 : vector<1x128xi32>
    %c0_i32_6 = arith.constant 0 : i32
    %19 = arith.cmpi slt, %12, %c0_i32_6 : i32
    %20 = vector.broadcast %19 : i1 to vector<1x128xi1>
    %21 = vector.broadcast %20 : vector<1x128xi1> to vector<1x128xi1>
    %22 = arith.xori %18, %21 : vector<1x128xi1>
    %23 = arith.andi %22, %16 : vector<1x128xi1>
    %24 = vector.broadcast %12 : i32 to vector<1x128xi32>
    %25 = arith.addi %14, %24 : vector<1x128xi32>
    %26 = arith.select %23, %25, %14 : vector<1x128xi1>, vector<1x128xi32>
    %c0_i32_7 = arith.constant 0 : i32
    %27 = vector.broadcast %c0_i32_7 : i32 to vector<1x128xi32>
    %28 = arith.cmpi eq, %26, %27 : vector<1x128xi32>
    %c96_i32 = arith.constant 96 : i32
    %29 = vector.broadcast %c96_i32 : i32 to vector<1x128xi32>
    %30 = arith.cmpi slt, %0, %29 : vector<1x128xi32>
    %31 = arith.andi %28, %30 : vector<1x128xi1>
    %cst_8 = arith.constant 0.166666672 : f32
    %cst_9 = arith.constant 0.000000e+00 : f32
    %32 = vector.broadcast %cst_8 : f32 to vector<1x128xf32>
    %33 = vector.broadcast %cst_9 : f32 to vector<1x128xf32>
    %34 = arith.select %31, %32, %33 : vector<1x128xi1>, vector<1x128xf32>
    %35 = tpu.iota {dimensions = array<i32: 0>} : vector<64x64xi32>
    %36 = tpu.iota {dimensions = array<i32: 1>} : vector<64x64xi32>
    %37 = arith.cmpi eq, %35, %36 : vector<64x64xi32>
    %cst_10 = arith.constant 1.000000e+00 : f32
    %cst_11 = arith.constant 0.000000e+00 : f32
    %38 = vector.broadcast %cst_10 : f32 to vector<64x64xf32>
    %39 = vector.broadcast %cst_11 : f32 to vector<64x64xf32>
    %40 = arith.select %37, %38, %39 : vector<64x64xi1>, vector<64x64xf32>
    %c0 = arith.constant 0 : index
    %c0_12 = arith.constant 0 : index
    %c0_13 = arith.constant 0 : index
    %41 = vector.load %arg1[%c0, %c0_12, %c0_13] : memref<1x8x128xf32, #tpu.memory_space<vmem>>, vector<1x8x128xf32>
    %42 = vector.shape_cast %41 : vector<1x8x128xf32> to vector<8x128xf32>
    %43 = vector.extract_strided_slice %42 {offsets = [0, 0], sizes = [2, 128], strides = [1, 1]} : vector<8x128xf32> to vector<2x128xf32>
    %c127_i32 = arith.constant 127 : i32
    %44 = tpu.dynamic_rotate %43 by %c127_i32 dim 1 : vector<2x128xf32>, i32 -> vector<2x128xf32>
    %c126_i32_14 = arith.constant 126 : i32
    %45 = tpu.dynamic_rotate %43 by %c126_i32_14 dim 1 : vector<2x128xf32>, i32 -> vector<2x128xf32>
    %c125_i32 = arith.constant 125 : i32
    %46 = tpu.dynamic_rotate %43 by %c125_i32 dim 1 : vector<2x128xf32>, i32 -> vector<2x128xf32>
    %c124_i32 = arith.constant 124 : i32
    %47 = tpu.dynamic_rotate %43 by %c124_i32 dim 1 : vector<2x128xf32>, i32 -> vector<2x128xf32>
    %c123_i32 = arith.constant 123 : i32
    %48 = tpu.dynamic_rotate %43 by %c123_i32 dim 1 : vector<2x128xf32>, i32 -> vector<2x128xf32>
    %c122_i32 = arith.constant 122 : i32
    %49 = tpu.dynamic_rotate %43 by %c122_i32 dim 1 : vector<2x128xf32>, i32 -> vector<2x128xf32>
    %c121_i32 = arith.constant 121 : i32
    %50 = tpu.dynamic_rotate %43 by %c121_i32 dim 1 : vector<2x128xf32>, i32 -> vector<2x128xf32>
    %51 = tpu.concatenate %43, %44, %45, %46, %47, %48, %49, %50 in 0 : vector<2x128xf32>, vector<2x128xf32>, vector<2x128xf32>, vector<2x128xf32>, vector<2x128xf32>, vector<2x128xf32>, vector<2x128xf32>, vector<2x128xf32> -> vector<16x128xf32>
    %52 = arith.truncf %51 : vector<16x128xf32> to vector<16x128xbf16>
    %c0_15 = arith.constant 0 : index
    %c0_16 = arith.constant 0 : index
    %53 = vector.load %arg2[%c0_15, %c0_16] : memref<16x16xbf16, #tpu.memory_space<vmem>>, vector<16x16xbf16>
    %cst_17 = arith.constant dense<0.000000e+00> : vector<16x128xf32>
    %54 = tpu.matmul %53, %52, %cst_17 {dimension_numbers = #tpu.dot_dimension_numbers<[1], [0], [0], [1], [0, 0, 1, 1], [], []>} : vector<16x16xbf16>, vector<16x128xbf16>, vector<16x128xf32> -> vector<16x128xf32>
    %c0_18 = arith.constant 0 : index
    %c0_19 = arith.constant 0 : index
    %55 = vector.load %arg3[%c0_18, %c0_19] : memref<16x1xf32, #tpu.memory_space<vmem>>, vector<16x1xf32>
    %56 = vector.broadcast %55 : vector<16x1xf32> to vector<16x128xf32>
    %57 = arith.addf %54, %56 : vector<16x128xf32>
    %cst_20 = arith.constant 0.000000e+00 : f32
    %58 = vector.broadcast %cst_20 : f32 to vector<16x128xf32>
    %59 = arith.cmpf ogt, %57, %58 : vector<16x128xf32>
    %cst_21 = arith.constant 0.00999999977 : f32
    %60 = vector.broadcast %cst_21 : f32 to vector<16x128xf32>
    %61 = arith.mulf %60, %57 : vector<16x128xf32>
    %62 = arith.select %59, %57, %61 : vector<16x128xi1>, vector<16x128xf32>
    %c124_i32_22 = arith.constant 124 : i32
    %63 = tpu.dynamic_rotate %62 by %c124_i32_22 dim 1 : vector<16x128xf32>, i32 -> vector<16x128xf32>
    %c120_i32 = arith.constant 120 : i32
    %64 = tpu.dynamic_rotate %62 by %c120_i32 dim 1 : vector<16x128xf32>, i32 -> vector<16x128xf32>
    %c116_i32 = arith.constant 116 : i32
    %65 = tpu.dynamic_rotate %62 by %c116_i32 dim 1 : vector<16x128xf32>, i32 -> vector<16x128xf32>
    %c112_i32 = arith.constant 112 : i32
    %66 = tpu.dynamic_rotate %62 by %c112_i32 dim 1 : vector<16x128xf32>, i32 -> vector<16x128xf32>
    %c108_i32 = arith.constant 108 : i32
    %67 = tpu.dynamic_rotate %62 by %c108_i32 dim 1 : vector<16x128xf32>, i32 -> vector<16x128xf32>
    %c104_i32 = arith.constant 104 : i32
    %68 = tpu.dynamic_rotate %62 by %c104_i32 dim 1 : vector<16x128xf32>, i32 -> vector<16x128xf32>
    %c100_i32 = arith.constant 100 : i32
    %69 = tpu.dynamic_rotate %62 by %c100_i32 dim 1 : vector<16x128xf32>, i32 -> vector<16x128xf32>
    %70 = tpu.concatenate %62, %63, %64, %65, %66, %67, %68, %69 in 0 : vector<16x128xf32>, vector<16x128xf32>, vector<16x128xf32>, vector<16x128xf32>, vector<16x128xf32>, vector<16x128xf32>, vector<16x128xf32>, vector<16x128xf32> -> vector<128x128xf32>
    %71 = arith.truncf %70 : vector<128x128xf32> to vector<128x128xbf16>
    %c0_23 = arith.constant 0 : index
    %c0_24 = arith.constant 0 : index
    %72 = vector.load %arg4[%c0_23, %c0_24] : memref<32x128xbf16, #tpu.memory_space<vmem>>, vector<32x128xbf16>
    %cst_25 = arith.constant dense<0.000000e+00> : vector<32x128xf32>
    %73 = tpu.matmul %72, %71, %cst_25 {dimension_numbers = #tpu.dot_dimension_numbers<[1], [0], [0], [1], [0, 0, 1, 1], [], []>} : vector<32x128xbf16>, vector<128x128xbf16>, vector<32x128xf32> -> vector<32x128xf32>
    %c0_26 = arith.constant 0 : index
    %c0_27 = arith.constant 0 : index
    %74 = vector.load %arg5[%c0_26, %c0_27] : memref<32x1xf32, #tpu.memory_space<vmem>>, vector<32x1xf32>
    %75 = vector.broadcast %74 : vector<32x1xf32> to vector<32x128xf32>
    %76 = arith.addf %73, %75 : vector<32x128xf32>
    %cst_28 = arith.constant 0.000000e+00 : f32
    %77 = vector.broadcast %cst_28 : f32 to vector<32x128xf32>
    %78 = arith.cmpf ogt, %76, %77 : vector<32x128xf32>
    %cst_29 = arith.constant 0.00999999977 : f32
    %79 = vector.broadcast %cst_29 : f32 to vector<32x128xf32>
    %80 = arith.mulf %79, %76 : vector<32x128xf32>
    %81 = arith.select %78, %76, %80 : vector<32x128xi1>, vector<32x128xf32>
    %82 = vector.broadcast %34 : vector<1x128xf32> to vector<32x128xf32>
    %83 = arith.mulf %81, %82 : vector<32x128xf32>
    %cst_30 = arith.constant dense<0.000000e+00> : vector<32xf32>
    %84 = vector.multi_reduction <add>, %83, %cst_30 [1] : vector<32x128xf32> to vector<32xf32>
    %85 = vector.shape_cast %84 : vector<32xf32> to vector<32x1xf32>
    %c0_31 = arith.constant 0 : index
    %c0_32 = arith.constant 0 : index
    %86 = vector.load %arg6[%c0_31, %c0_32] : memref<32x2xbf16, #tpu.memory_space<vmem>>, vector<32x2xbf16>
    %87 = arith.truncf %43 : vector<2x128xf32> to vector<2x128xbf16>
    %cst_33 = arith.constant dense<0.000000e+00> : vector<32x128xf32>
    %88 = tpu.matmul %86, %87, %cst_33 {dimension_numbers = #tpu.dot_dimension_numbers<[1], [0], [0], [1], [0, 0, 1, 1], [], []>} : vector<32x2xbf16>, vector<2x128xbf16>, vector<32x128xf32> -> vector<32x128xf32>
    %c0_34 = arith.constant 0 : index
    %c0_35 = arith.constant 0 : index
    %89 = vector.load %arg7[%c0_34, %c0_35] : memref<32x1xf32, #tpu.memory_space<vmem>>, vector<32x1xf32>
    %90 = vector.broadcast %89 : vector<32x1xf32> to vector<32x128xf32>
    %91 = arith.addf %88, %90 : vector<32x128xf32>
    %cst_36 = arith.constant 0.000000e+00 : f32
    %92 = vector.broadcast %cst_36 : f32 to vector<32x128xf32>
    %93 = arith.cmpf ogt, %91, %92 : vector<32x128xf32>
    %cst_37 = arith.constant 0.00999999977 : f32
    %94 = vector.broadcast %cst_37 : f32 to vector<32x128xf32>
    %95 = arith.mulf %94, %91 : vector<32x128xf32>
    %96 = arith.select %93, %91, %95 : vector<32x128xi1>, vector<32x128xf32>
    %c1_i32_38 = arith.constant 1 : i32
    %97 = tpu.dynamic_rotate %96 by %c1_i32_38 dim 1 : vector<32x128xf32>, i32 -> vector<32x128xf32>
    %98 = vector.broadcast %5 : vector<1x128xf32> to vector<32x128xf32>
    %99 = arith.mulf %97, %98 : vector<32x128xf32>
    %c127_i32_39 = arith.constant 127 : i32
    %100 = tpu.dynamic_rotate %96 by %c127_i32_39 dim 1 : vector<32x128xf32>, i32 -> vector<32x128xf32>
    %101 = vector.broadcast %10 : vector<1x128xf32> to vector<32x128xf32>
    %102 = arith.mulf %100, %101 : vector<32x128xf32>
    %103 = tpu.concatenate %99, %96, %102 in 0 : vector<32x128xf32>, vector<32x128xf32>, vector<32x128xf32> -> vector<96x128xf32>
    %104 = arith.truncf %103 : vector<96x128xf32> to vector<96x128xbf16>
    %c0_40 = arith.constant 0 : index
    %c0_41 = arith.constant 0 : index
    %105 = vector.load %arg8[%c0_40, %c0_41] : memref<32x96xbf16, #tpu.memory_space<vmem>>, vector<32x96xbf16>
    %cst_42 = arith.constant dense<0.000000e+00> : vector<32x128xf32>
    %106 = tpu.matmul %105, %104, %cst_42 {dimension_numbers = #tpu.dot_dimension_numbers<[1], [0], [0], [1], [0, 0, 1, 1], [], []>} : vector<32x96xbf16>, vector<96x128xbf16>, vector<32x128xf32> -> vector<32x128xf32>
    %c0_43 = arith.constant 0 : index
    %c0_44 = arith.constant 0 : index
    %107 = vector.load %arg9[%c0_43, %c0_44] : memref<32x1xf32, #tpu.memory_space<vmem>>, vector<32x1xf32>
    %108 = vector.broadcast %107 : vector<32x1xf32> to vector<32x128xf32>
    %109 = arith.addf %106, %108 : vector<32x128xf32>
    %cst_45 = arith.constant 0.000000e+00 : f32
    %110 = vector.broadcast %cst_45 : f32 to vector<32x128xf32>
    %111 = arith.cmpf ogt, %109, %110 : vector<32x128xf32>
    %cst_46 = arith.constant 0.00999999977 : f32
    %112 = vector.broadcast %cst_46 : f32 to vector<32x128xf32>
    %113 = arith.mulf %112, %109 : vector<32x128xf32>
    %114 = arith.select %111, %109, %113 : vector<32x128xi1>, vector<32x128xf32>
    %c1_i32_47 = arith.constant 1 : i32
    %115 = tpu.dynamic_rotate %114 by %c1_i32_47 dim 1 : vector<32x128xf32>, i32 -> vector<32x128xf32>
    %116 = vector.broadcast %5 : vector<1x128xf32> to vector<32x128xf32>
    %117 = arith.mulf %115, %116 : vector<32x128xf32>
    %c127_i32_48 = arith.constant 127 : i32
    %118 = tpu.dynamic_rotate %114 by %c127_i32_48 dim 1 : vector<32x128xf32>, i32 -> vector<32x128xf32>
    %119 = vector.broadcast %10 : vector<1x128xf32> to vector<32x128xf32>
    %120 = arith.mulf %118, %119 : vector<32x128xf32>
    %121 = tpu.concatenate %117, %114, %120 in 0 : vector<32x128xf32>, vector<32x128xf32>, vector<32x128xf32> -> vector<96x128xf32>
    %122 = arith.truncf %121 : vector<96x128xf32> to vector<96x128xbf16>
    %c0_49 = arith.constant 0 : index
    %c0_50 = arith.constant 0 : index
    %123 = vector.load %arg10[%c0_49, %c0_50] : memref<32x96xbf16, #tpu.memory_space<vmem>>, vector<32x96xbf16>
    %cst_51 = arith.constant dense<0.000000e+00> : vector<32x128xf32>
    %124 = tpu.matmul %123, %122, %cst_51 {dimension_numbers = #tpu.dot_dimension_numbers<[1], [0], [0], [1], [0, 0, 1, 1], [], []>} : vector<32x96xbf16>, vector<96x128xbf16>, vector<32x128xf32> -> vector<32x128xf32>
    %c0_52 = arith.constant 0 : index
    %c0_53 = arith.constant 0 : index
    %125 = vector.load %arg11[%c0_52, %c0_53] : memref<32x1xf32, #tpu.memory_space<vmem>>, vector<32x1xf32>
    %126 = vector.broadcast %125 : vector<32x1xf32> to vector<32x128xf32>
    %127 = arith.addf %124, %126 : vector<32x128xf32>
    %128 = arith.addf %96, %127 : vector<32x128xf32>
    %cst_54 = arith.constant 0.000000e+00 : f32
    %129 = vector.broadcast %cst_54 : f32 to vector<32x128xf32>
    %130 = arith.cmpf ogt, %128, %129 : vector<32x128xf32>
    %cst_55 = arith.constant 0.00999999977 : f32
    %131 = vector.broadcast %cst_55 : f32 to vector<32x128xf32>
    %132 = arith.mulf %131, %128 : vector<32x128xf32>
    %133 = arith.select %130, %128, %132 : vector<32x128xi1>, vector<32x128xf32>
    %cst_56 = arith.constant dense<0.000000e+00> : vector<32xf32>
    %134 = vector.multi_reduction <add>, %133, %cst_56 [1] : vector<32x128xf32> to vector<32xf32>
    %135 = vector.shape_cast %134 : vector<32xf32> to vector<32x1xf32>
    %cst_57 = arith.constant 7.812500e-03 : f32
    %136 = vector.broadcast %cst_57 : f32 to vector<32x1xf32>
    %137 = arith.mulf %135, %136 : vector<32x1xf32>
    %138 = tpu.concatenate %85, %137 in 0 : vector<32x1xf32>, vector<32x1xf32> -> vector<64x1xf32>
    %139 = vector.broadcast %138 : vector<64x1xf32> to vector<64x64xf32>
    %140 = arith.mulf %139, %40 : vector<64x64xf32>
    %cst_58 = arith.constant dense<0.000000e+00> : vector<64xf32>
    %141 = vector.multi_reduction <add>, %140, %cst_58 [0] : vector<64x64xf32> to vector<64xf32>
    %142 = vector.shape_cast %141 : vector<64xf32> to vector<1x64xf32>
    %143 = vector.extract_strided_slice %42 {offsets = [2, 0], sizes = [2, 128], strides = [1, 1]} : vector<8x128xf32> to vector<2x128xf32>
    %c127_i32_59 = arith.constant 127 : i32
    %144 = tpu.dynamic_rotate %143 by %c127_i32_59 dim 1 : vector<2x128xf32>, i32 -> vector<2x128xf32>
    %c126_i32_60 = arith.constant 126 : i32
    %145 = tpu.dynamic_rotate %143 by %c126_i32_60 dim 1 : vector<2x128xf32>, i32 -> vector<2x128xf32>
    %c125_i32_61 = arith.constant 125 : i32
    %146 = tpu.dynamic_rotate %143 by %c125_i32_61 dim 1 : vector<2x128xf32>, i32 -> vector<2x128xf32>
    %c124_i32_62 = arith.constant 124 : i32
    %147 = tpu.dynamic_rotate %143 by %c124_i32_62 dim 1 : vector<2x128xf32>, i32 -> vector<2x128xf32>
    %c123_i32_63 = arith.constant 123 : i32
    %148 = tpu.dynamic_rotate %143 by %c123_i32_63 dim 1 : vector<2x128xf32>, i32 -> vector<2x128xf32>
    %c122_i32_64 = arith.constant 122 : i32
    %149 = tpu.dynamic_rotate %143 by %c122_i32_64 dim 1 : vector<2x128xf32>, i32 -> vector<2x128xf32>
    %c121_i32_65 = arith.constant 121 : i32
    %150 = tpu.dynamic_rotate %143 by %c121_i32_65 dim 1 : vector<2x128xf32>, i32 -> vector<2x128xf32>
    %151 = tpu.concatenate %143, %144, %145, %146, %147, %148, %149, %150 in 0 : vector<2x128xf32>, vector<2x128xf32>, vector<2x128xf32>, vector<2x128xf32>, vector<2x128xf32>, vector<2x128xf32>, vector<2x128xf32>, vector<2x128xf32> -> vector<16x128xf32>
    %152 = arith.truncf %151 : vector<16x128xf32> to vector<16x128xbf16>
    %c0_66 = arith.constant 0 : index
    %c0_67 = arith.constant 0 : index
    %153 = vector.load %arg2[%c0_66, %c0_67] : memref<16x16xbf16, #tpu.memory_space<vmem>>, vector<16x16xbf16>
    %cst_68 = arith.constant dense<0.000000e+00> : vector<16x128xf32>
    %154 = tpu.matmul %153, %152, %cst_68 {dimension_numbers = #tpu.dot_dimension_numbers<[1], [0], [0], [1], [0, 0, 1, 1], [], []>} : vector<16x16xbf16>, vector<16x128xbf16>, vector<16x128xf32> -> vector<16x128xf32>
    %c0_69 = arith.constant 0 : index
    %c0_70 = arith.constant 0 : index
    %155 = vector.load %arg3[%c0_69, %c0_70] : memref<16x1xf32, #tpu.memory_space<vmem>>, vector<16x1xf32>
    %156 = vector.broadcast %155 : vector<16x1xf32> to vector<16x128xf32>
    %157 = arith.addf %154, %156 : vector<16x128xf32>
    %cst_71 = arith.constant 0.000000e+00 : f32
    %158 = vector.broadcast %cst_71 : f32 to vector<16x128xf32>
    %159 = arith.cmpf ogt, %157, %158 : vector<16x128xf32>
    %cst_72 = arith.constant 0.00999999977 : f32
    %160 = vector.broadcast %cst_72 : f32 to vector<16x128xf32>
    %161 = arith.mulf %160, %157 : vector<16x128xf32>
    %162 = arith.select %159, %157, %161 : vector<16x128xi1>, vector<16x128xf32>
    %c124_i32_73 = arith.constant 124 : i32
    %163 = tpu.dynamic_rotate %162 by %c124_i32_73 dim 1 : vector<16x128xf32>, i32 -> vector<16x128xf32>
    %c120_i32_74 = arith.constant 120 : i32
    %164 = tpu.dynamic_rotate %162 by %c120_i32_74 dim 1 : vector<16x128xf32>, i32 -> vector<16x128xf32>
    %c116_i32_75 = arith.constant 116 : i32
    %165 = tpu.dynamic_rotate %162 by %c116_i32_75 dim 1 : vector<16x128xf32>, i32 -> vector<16x128xf32>
    %c112_i32_76 = arith.constant 112 : i32
    %166 = tpu.dynamic_rotate %162 by %c112_i32_76 dim 1 : vector<16x128xf32>, i32 -> vector<16x128xf32>
    %c108_i32_77 = arith.constant 108 : i32
    %167 = tpu.dynamic_rotate %162 by %c108_i32_77 dim 1 : vector<16x128xf32>, i32 -> vector<16x128xf32>
    %c104_i32_78 = arith.constant 104 : i32
    %168 = tpu.dynamic_rotate %162 by %c104_i32_78 dim 1 : vector<16x128xf32>, i32 -> vector<16x128xf32>
    %c100_i32_79 = arith.constant 100 : i32
    %169 = tpu.dynamic_rotate %162 by %c100_i32_79 dim 1 : vector<16x128xf32>, i32 -> vector<16x128xf32>
    %170 = tpu.concatenate %162, %163, %164, %165, %166, %167, %168, %169 in 0 : vector<16x128xf32>, vector<16x128xf32>, vector<16x128xf32>, vector<16x128xf32>, vector<16x128xf32>, vector<16x128xf32>, vector<16x128xf32>, vector<16x128xf32> -> vector<128x128xf32>
    %171 = arith.truncf %170 : vector<128x128xf32> to vector<128x128xbf16>
    %c0_80 = arith.constant 0 : index
    %c0_81 = arith.constant 0 : index
    %172 = vector.load %arg4[%c0_80, %c0_81] : memref<32x128xbf16, #tpu.memory_space<vmem>>, vector<32x128xbf16>
    %cst_82 = arith.constant dense<0.000000e+00> : vector<32x128xf32>
    %173 = tpu.matmul %172, %171, %cst_82 {dimension_numbers = #tpu.dot_dimension_numbers<[1], [0], [0], [1], [0, 0, 1, 1], [], []>} : vector<32x128xbf16>, vector<128x128xbf16>, vector<32x128xf32> -> vector<32x128xf32>
    %c0_83 = arith.constant 0 : index
    %c0_84 = arith.constant 0 : index
    %174 = vector.load %arg5[%c0_83, %c0_84] : memref<32x1xf32, #tpu.memory_space<vmem>>, vector<32x1xf32>
    %175 = vector.broadcast %174 : vector<32x1xf32> to vector<32x128xf32>
    %176 = arith.addf %173, %175 : vector<32x128xf32>
    %cst_85 = arith.constant 0.000000e+00 : f32
    %177 = vector.broadcast %cst_85 : f32 to vector<32x128xf32>
    %178 = arith.cmpf ogt, %176, %177 : vector<32x128xf32>
    %cst_86 = arith.constant 0.00999999977 : f32
    %179 = vector.broadcast %cst_86 : f32 to vector<32x128xf32>
    %180 = arith.mulf %179, %176 : vector<32x128xf32>
    %181 = arith.select %178, %176, %180 : vector<32x128xi1>, vector<32x128xf32>
    %182 = vector.broadcast %34 : vector<1x128xf32> to vector<32x128xf32>
    %183 = arith.mulf %181, %182 : vector<32x128xf32>
    %cst_87 = arith.constant dense<0.000000e+00> : vector<32xf32>
    %184 = vector.multi_reduction <add>, %183, %cst_87 [1] : vector<32x128xf32> to vector<32xf32>
    %185 = vector.shape_cast %184 : vector<32xf32> to vector<32x1xf32>
    %c0_88 = arith.constant 0 : index
    %c0_89 = arith.constant 0 : index
    %186 = vector.load %arg6[%c0_88, %c0_89] : memref<32x2xbf16, #tpu.memory_space<vmem>>, vector<32x2xbf16>
    %187 = arith.truncf %143 : vector<2x128xf32> to vector<2x128xbf16>
    %cst_90 = arith.constant dense<0.000000e+00> : vector<32x128xf32>
    %188 = tpu.matmul %186, %187, %cst_90 {dimension_numbers = #tpu.dot_dimension_numbers<[1], [0], [0], [1], [0, 0, 1, 1], [], []>} : vector<32x2xbf16>, vector<2x128xbf16>, vector<32x128xf32> -> vector<32x128xf32>
    %c0_91 = arith.constant 0 : index
    %c0_92 = arith.constant 0 : index
    %189 = vector.load %arg7[%c0_91, %c0_92] : memref<32x1xf32, #tpu.memory_space<vmem>>, vector<32x1xf32>
    %190 = vector.broadcast %189 : vector<32x1xf32> to vector<32x128xf32>
    %191 = arith.addf %188, %190 : vector<32x128xf32>
    %cst_93 = arith.constant 0.000000e+00 : f32
    %192 = vector.broadcast %cst_93 : f32 to vector<32x128xf32>
    %193 = arith.cmpf ogt, %191, %192 : vector<32x128xf32>
    %cst_94 = arith.constant 0.00999999977 : f32
    %194 = vector.broadcast %cst_94 : f32 to vector<32x128xf32>
    %195 = arith.mulf %194, %191 : vector<32x128xf32>
    %196 = arith.select %193, %191, %195 : vector<32x128xi1>, vector<32x128xf32>
    %c1_i32_95 = arith.constant 1 : i32
    %197 = tpu.dynamic_rotate %196 by %c1_i32_95 dim 1 : vector<32x128xf32>, i32 -> vector<32x128xf32>
    %198 = vector.broadcast %5 : vector<1x128xf32> to vector<32x128xf32>
    %199 = arith.mulf %197, %198 : vector<32x128xf32>
    %c127_i32_96 = arith.constant 127 : i32
    %200 = tpu.dynamic_rotate %196 by %c127_i32_96 dim 1 : vector<32x128xf32>, i32 -> vector<32x128xf32>
    %201 = vector.broadcast %10 : vector<1x128xf32> to vector<32x128xf32>
    %202 = arith.mulf %200, %201 : vector<32x128xf32>
    %203 = tpu.concatenate %199, %196, %202 in 0 : vector<32x128xf32>, vector<32x128xf32>, vector<32x128xf32> -> vector<96x128xf32>
    %204 = arith.truncf %203 : vector<96x128xf32> to vector<96x128xbf16>
    %c0_97 = arith.constant 0 : index
    %c0_98 = arith.constant 0 : index
    %205 = vector.load %arg8[%c0_97, %c0_98] : memref<32x96xbf16, #tpu.memory_space<vmem>>, vector<32x96xbf16>
    %cst_99 = arith.constant dense<0.000000e+00> : vector<32x128xf32>
    %206 = tpu.matmul %205, %204, %cst_99 {dimension_numbers = #tpu.dot_dimension_numbers<[1], [0], [0], [1], [0, 0, 1, 1], [], []>} : vector<32x96xbf16>, vector<96x128xbf16>, vector<32x128xf32> -> vector<32x128xf32>
    %c0_100 = arith.constant 0 : index
    %c0_101 = arith.constant 0 : index
    %207 = vector.load %arg9[%c0_100, %c0_101] : memref<32x1xf32, #tpu.memory_space<vmem>>, vector<32x1xf32>
    %208 = vector.broadcast %207 : vector<32x1xf32> to vector<32x128xf32>
    %209 = arith.addf %206, %208 : vector<32x128xf32>
    %cst_102 = arith.constant 0.000000e+00 : f32
    %210 = vector.broadcast %cst_102 : f32 to vector<32x128xf32>
    %211 = arith.cmpf ogt, %209, %210 : vector<32x128xf32>
    %cst_103 = arith.constant 0.00999999977 : f32
    %212 = vector.broadcast %cst_103 : f32 to vector<32x128xf32>
    %213 = arith.mulf %212, %209 : vector<32x128xf32>
    %214 = arith.select %211, %209, %213 : vector<32x128xi1>, vector<32x128xf32>
    %c1_i32_104 = arith.constant 1 : i32
    %215 = tpu.dynamic_rotate %214 by %c1_i32_104 dim 1 : vector<32x128xf32>, i32 -> vector<32x128xf32>
    %216 = vector.broadcast %5 : vector<1x128xf32> to vector<32x128xf32>
    %217 = arith.mulf %215, %216 : vector<32x128xf32>
    %c127_i32_105 = arith.constant 127 : i32
    %218 = tpu.dynamic_rotate %214 by %c127_i32_105 dim 1 : vector<32x128xf32>, i32 -> vector<32x128xf32>
    %219 = vector.broadcast %10 : vector<1x128xf32> to vector<32x128xf32>
    %220 = arith.mulf %218, %219 : vector<32x128xf32>
    %221 = tpu.concatenate %217, %214, %220 in 0 : vector<32x128xf32>, vector<32x128xf32>, vector<32x128xf32> -> vector<96x128xf32>
    %222 = arith.truncf %221 : vector<96x128xf32> to vector<96x128xbf16>
    %c0_106 = arith.constant 0 : index
    %c0_107 = arith.constant 0 : index
    %223 = vector.load %arg10[%c0_106, %c0_107] : memref<32x96xbf16, #tpu.memory_space<vmem>>, vector<32x96xbf16>
    %cst_108 = arith.constant dense<0.000000e+00> : vector<32x128xf32>
    %224 = tpu.matmul %223, %222, %cst_108 {dimension_numbers = #tpu.dot_dimension_numbers<[1], [0], [0], [1], [0, 0, 1, 1], [], []>} : vector<32x96xbf16>, vector<96x128xbf16>, vector<32x128xf32> -> vector<32x128xf32>
    %c0_109 = arith.constant 0 : index
    %c0_110 = arith.constant 0 : index
    %225 = vector.load %arg11[%c0_109, %c0_110] : memref<32x1xf32, #tpu.memory_space<vmem>>, vector<32x1xf32>
    %226 = vector.broadcast %225 : vector<32x1xf32> to vector<32x128xf32>
    %227 = arith.addf %224, %226 : vector<32x128xf32>
    %228 = arith.addf %196, %227 : vector<32x128xf32>
    %cst_111 = arith.constant 0.000000e+00 : f32
    %229 = vector.broadcast %cst_111 : f32 to vector<32x128xf32>
    %230 = arith.cmpf ogt, %228, %229 : vector<32x128xf32>
    %cst_112 = arith.constant 0.00999999977 : f32
    %231 = vector.broadcast %cst_112 : f32 to vector<32x128xf32>
    %232 = arith.mulf %231, %228 : vector<32x128xf32>
    %233 = arith.select %230, %228, %232 : vector<32x128xi1>, vector<32x128xf32>
    %cst_113 = arith.constant dense<0.000000e+00> : vector<32xf32>
    %234 = vector.multi_reduction <add>, %233, %cst_113 [1] : vector<32x128xf32> to vector<32xf32>
    %235 = vector.shape_cast %234 : vector<32xf32> to vector<32x1xf32>
    %cst_114 = arith.constant 7.812500e-03 : f32
    %236 = vector.broadcast %cst_114 : f32 to vector<32x1xf32>
    %237 = arith.mulf %235, %236 : vector<32x1xf32>
    %238 = tpu.concatenate %185, %237 in 0 : vector<32x1xf32>, vector<32x1xf32> -> vector<64x1xf32>
    %239 = vector.broadcast %238 : vector<64x1xf32> to vector<64x64xf32>
    %240 = arith.mulf %239, %40 : vector<64x64xf32>
    %cst_115 = arith.constant dense<0.000000e+00> : vector<64xf32>
    %241 = vector.multi_reduction <add>, %240, %cst_115 [0] : vector<64x64xf32> to vector<64xf32>
    %242 = vector.shape_cast %241 : vector<64xf32> to vector<1x64xf32>
    %243 = vector.extract_strided_slice %42 {offsets = [4, 0], sizes = [2, 128], strides = [1, 1]} : vector<8x128xf32> to vector<2x128xf32>
    %c127_i32_116 = arith.constant 127 : i32
    %244 = tpu.dynamic_rotate %243 by %c127_i32_116 dim 1 : vector<2x128xf32>, i32 -> vector<2x128xf32>
    %c126_i32_117 = arith.constant 126 : i32
    %245 = tpu.dynamic_rotate %243 by %c126_i32_117 dim 1 : vector<2x128xf32>, i32 -> vector<2x128xf32>
    %c125_i32_118 = arith.constant 125 : i32
    %246 = tpu.dynamic_rotate %243 by %c125_i32_118 dim 1 : vector<2x128xf32>, i32 -> vector<2x128xf32>
    %c124_i32_119 = arith.constant 124 : i32
    %247 = tpu.dynamic_rotate %243 by %c124_i32_119 dim 1 : vector<2x128xf32>, i32 -> vector<2x128xf32>
    %c123_i32_120 = arith.constant 123 : i32
    %248 = tpu.dynamic_rotate %243 by %c123_i32_120 dim 1 : vector<2x128xf32>, i32 -> vector<2x128xf32>
    %c122_i32_121 = arith.constant 122 : i32
    %249 = tpu.dynamic_rotate %243 by %c122_i32_121 dim 1 : vector<2x128xf32>, i32 -> vector<2x128xf32>
    %c121_i32_122 = arith.constant 121 : i32
    %250 = tpu.dynamic_rotate %243 by %c121_i32_122 dim 1 : vector<2x128xf32>, i32 -> vector<2x128xf32>
    %251 = tpu.concatenate %243, %244, %245, %246, %247, %248, %249, %250 in 0 : vector<2x128xf32>, vector<2x128xf32>, vector<2x128xf32>, vector<2x128xf32>, vector<2x128xf32>, vector<2x128xf32>, vector<2x128xf32>, vector<2x128xf32> -> vector<16x128xf32>
    %252 = arith.truncf %251 : vector<16x128xf32> to vector<16x128xbf16>
    %c0_123 = arith.constant 0 : index
    %c0_124 = arith.constant 0 : index
    %253 = vector.load %arg2[%c0_123, %c0_124] : memref<16x16xbf16, #tpu.memory_space<vmem>>, vector<16x16xbf16>
    %cst_125 = arith.constant dense<0.000000e+00> : vector<16x128xf32>
    %254 = tpu.matmul %253, %252, %cst_125 {dimension_numbers = #tpu.dot_dimension_numbers<[1], [0], [0], [1], [0, 0, 1, 1], [], []>} : vector<16x16xbf16>, vector<16x128xbf16>, vector<16x128xf32> -> vector<16x128xf32>
    %c0_126 = arith.constant 0 : index
    %c0_127 = arith.constant 0 : index
    %255 = vector.load %arg3[%c0_126, %c0_127] : memref<16x1xf32, #tpu.memory_space<vmem>>, vector<16x1xf32>
    %256 = vector.broadcast %255 : vector<16x1xf32> to vector<16x128xf32>
    %257 = arith.addf %254, %256 : vector<16x128xf32>
    %cst_128 = arith.constant 0.000000e+00 : f32
    %258 = vector.broadcast %cst_128 : f32 to vector<16x128xf32>
    %259 = arith.cmpf ogt, %257, %258 : vector<16x128xf32>
    %cst_129 = arith.constant 0.00999999977 : f32
    %260 = vector.broadcast %cst_129 : f32 to vector<16x128xf32>
    %261 = arith.mulf %260, %257 : vector<16x128xf32>
    %262 = arith.select %259, %257, %261 : vector<16x128xi1>, vector<16x128xf32>
    %c124_i32_130 = arith.constant 124 : i32
    %263 = tpu.dynamic_rotate %262 by %c124_i32_130 dim 1 : vector<16x128xf32>, i32 -> vector<16x128xf32>
    %c120_i32_131 = arith.constant 120 : i32
    %264 = tpu.dynamic_rotate %262 by %c120_i32_131 dim 1 : vector<16x128xf32>, i32 -> vector<16x128xf32>
    %c116_i32_132 = arith.constant 116 : i32
    %265 = tpu.dynamic_rotate %262 by %c116_i32_132 dim 1 : vector<16x128xf32>, i32 -> vector<16x128xf32>
    %c112_i32_133 = arith.constant 112 : i32
    %266 = tpu.dynamic_rotate %262 by %c112_i32_133 dim 1 : vector<16x128xf32>, i32 -> vector<16x128xf32>
    %c108_i32_134 = arith.constant 108 : i32
    %267 = tpu.dynamic_rotate %262 by %c108_i32_134 dim 1 : vector<16x128xf32>, i32 -> vector<16x128xf32>
    %c104_i32_135 = arith.constant 104 : i32
    %268 = tpu.dynamic_rotate %262 by %c104_i32_135 dim 1 : vector<16x128xf32>, i32 -> vector<16x128xf32>
    %c100_i32_136 = arith.constant 100 : i32
    %269 = tpu.dynamic_rotate %262 by %c100_i32_136 dim 1 : vector<16x128xf32>, i32 -> vector<16x128xf32>
    %270 = tpu.concatenate %262, %263, %264, %265, %266, %267, %268, %269 in 0 : vector<16x128xf32>, vector<16x128xf32>, vector<16x128xf32>, vector<16x128xf32>, vector<16x128xf32>, vector<16x128xf32>, vector<16x128xf32>, vector<16x128xf32> -> vector<128x128xf32>
    %271 = arith.truncf %270 : vector<128x128xf32> to vector<128x128xbf16>
    %c0_137 = arith.constant 0 : index
    %c0_138 = arith.constant 0 : index
    %272 = vector.load %arg4[%c0_137, %c0_138] : memref<32x128xbf16, #tpu.memory_space<vmem>>, vector<32x128xbf16>
    %cst_139 = arith.constant dense<0.000000e+00> : vector<32x128xf32>
    %273 = tpu.matmul %272, %271, %cst_139 {dimension_numbers = #tpu.dot_dimension_numbers<[1], [0], [0], [1], [0, 0, 1, 1], [], []>} : vector<32x128xbf16>, vector<128x128xbf16>, vector<32x128xf32> -> vector<32x128xf32>
    %c0_140 = arith.constant 0 : index
    %c0_141 = arith.constant 0 : index
    %274 = vector.load %arg5[%c0_140, %c0_141] : memref<32x1xf32, #tpu.memory_space<vmem>>, vector<32x1xf32>
    %275 = vector.broadcast %274 : vector<32x1xf32> to vector<32x128xf32>
    %276 = arith.addf %273, %275 : vector<32x128xf32>
    %cst_142 = arith.constant 0.000000e+00 : f32
    %277 = vector.broadcast %cst_142 : f32 to vector<32x128xf32>
    %278 = arith.cmpf ogt, %276, %277 : vector<32x128xf32>
    %cst_143 = arith.constant 0.00999999977 : f32
    %279 = vector.broadcast %cst_143 : f32 to vector<32x128xf32>
    %280 = arith.mulf %279, %276 : vector<32x128xf32>
    %281 = arith.select %278, %276, %280 : vector<32x128xi1>, vector<32x128xf32>
    %282 = vector.broadcast %34 : vector<1x128xf32> to vector<32x128xf32>
    %283 = arith.mulf %281, %282 : vector<32x128xf32>
    %cst_144 = arith.constant dense<0.000000e+00> : vector<32xf32>
    %284 = vector.multi_reduction <add>, %283, %cst_144 [1] : vector<32x128xf32> to vector<32xf32>
    %285 = vector.shape_cast %284 : vector<32xf32> to vector<32x1xf32>
    %c0_145 = arith.constant 0 : index
    %c0_146 = arith.constant 0 : index
    %286 = vector.load %arg6[%c0_145, %c0_146] : memref<32x2xbf16, #tpu.memory_space<vmem>>, vector<32x2xbf16>
    %287 = arith.truncf %243 : vector<2x128xf32> to vector<2x128xbf16>
    %cst_147 = arith.constant dense<0.000000e+00> : vector<32x128xf32>
    %288 = tpu.matmul %286, %287, %cst_147 {dimension_numbers = #tpu.dot_dimension_numbers<[1], [0], [0], [1], [0, 0, 1, 1], [], []>} : vector<32x2xbf16>, vector<2x128xbf16>, vector<32x128xf32> -> vector<32x128xf32>
    %c0_148 = arith.constant 0 : index
    %c0_149 = arith.constant 0 : index
    %289 = vector.load %arg7[%c0_148, %c0_149] : memref<32x1xf32, #tpu.memory_space<vmem>>, vector<32x1xf32>
    %290 = vector.broadcast %289 : vector<32x1xf32> to vector<32x128xf32>
    %291 = arith.addf %288, %290 : vector<32x128xf32>
    %cst_150 = arith.constant 0.000000e+00 : f32
    %292 = vector.broadcast %cst_150 : f32 to vector<32x128xf32>
    %293 = arith.cmpf ogt, %291, %292 : vector<32x128xf32>
    %cst_151 = arith.constant 0.00999999977 : f32
    %294 = vector.broadcast %cst_151 : f32 to vector<32x128xf32>
    %295 = arith.mulf %294, %291 : vector<32x128xf32>
    %296 = arith.select %293, %291, %295 : vector<32x128xi1>, vector<32x128xf32>
    %c1_i32_152 = arith.constant 1 : i32
    %297 = tpu.dynamic_rotate %296 by %c1_i32_152 dim 1 : vector<32x128xf32>, i32 -> vector<32x128xf32>
    %298 = vector.broadcast %5 : vector<1x128xf32> to vector<32x128xf32>
    %299 = arith.mulf %297, %298 : vector<32x128xf32>
    %c127_i32_153 = arith.constant 127 : i32
    %300 = tpu.dynamic_rotate %296 by %c127_i32_153 dim 1 : vector<32x128xf32>, i32 -> vector<32x128xf32>
    %301 = vector.broadcast %10 : vector<1x128xf32> to vector<32x128xf32>
    %302 = arith.mulf %300, %301 : vector<32x128xf32>
    %303 = tpu.concatenate %299, %296, %302 in 0 : vector<32x128xf32>, vector<32x128xf32>, vector<32x128xf32> -> vector<96x128xf32>
    %304 = arith.truncf %303 : vector<96x128xf32> to vector<96x128xbf16>
    %c0_154 = arith.constant 0 : index
    %c0_155 = arith.constant 0 : index
    %305 = vector.load %arg8[%c0_154, %c0_155] : memref<32x96xbf16, #tpu.memory_space<vmem>>, vector<32x96xbf16>
    %cst_156 = arith.constant dense<0.000000e+00> : vector<32x128xf32>
    %306 = tpu.matmul %305, %304, %cst_156 {dimension_numbers = #tpu.dot_dimension_numbers<[1], [0], [0], [1], [0, 0, 1, 1], [], []>} : vector<32x96xbf16>, vector<96x128xbf16>, vector<32x128xf32> -> vector<32x128xf32>
    %c0_157 = arith.constant 0 : index
    %c0_158 = arith.constant 0 : index
    %307 = vector.load %arg9[%c0_157, %c0_158] : memref<32x1xf32, #tpu.memory_space<vmem>>, vector<32x1xf32>
    %308 = vector.broadcast %307 : vector<32x1xf32> to vector<32x128xf32>
    %309 = arith.addf %306, %308 : vector<32x128xf32>
    %cst_159 = arith.constant 0.000000e+00 : f32
    %310 = vector.broadcast %cst_159 : f32 to vector<32x128xf32>
    %311 = arith.cmpf ogt, %309, %310 : vector<32x128xf32>
    %cst_160 = arith.constant 0.00999999977 : f32
    %312 = vector.broadcast %cst_160 : f32 to vector<32x128xf32>
    %313 = arith.mulf %312, %309 : vector<32x128xf32>
    %314 = arith.select %311, %309, %313 : vector<32x128xi1>, vector<32x128xf32>
    %c1_i32_161 = arith.constant 1 : i32
    %315 = tpu.dynamic_rotate %314 by %c1_i32_161 dim 1 : vector<32x128xf32>, i32 -> vector<32x128xf32>
    %316 = vector.broadcast %5 : vector<1x128xf32> to vector<32x128xf32>
    %317 = arith.mulf %315, %316 : vector<32x128xf32>
    %c127_i32_162 = arith.constant 127 : i32
    %318 = tpu.dynamic_rotate %314 by %c127_i32_162 dim 1 : vector<32x128xf32>, i32 -> vector<32x128xf32>
    %319 = vector.broadcast %10 : vector<1x128xf32> to vector<32x128xf32>
    %320 = arith.mulf %318, %319 : vector<32x128xf32>
    %321 = tpu.concatenate %317, %314, %320 in 0 : vector<32x128xf32>, vector<32x128xf32>, vector<32x128xf32> -> vector<96x128xf32>
    %322 = arith.truncf %321 : vector<96x128xf32> to vector<96x128xbf16>
    %c0_163 = arith.constant 0 : index
    %c0_164 = arith.constant 0 : index
    %323 = vector.load %arg10[%c0_163, %c0_164] : memref<32x96xbf16, #tpu.memory_space<vmem>>, vector<32x96xbf16>
    %cst_165 = arith.constant dense<0.000000e+00> : vector<32x128xf32>
    %324 = tpu.matmul %323, %322, %cst_165 {dimension_numbers = #tpu.dot_dimension_numbers<[1], [0], [0], [1], [0, 0, 1, 1], [], []>} : vector<32x96xbf16>, vector<96x128xbf16>, vector<32x128xf32> -> vector<32x128xf32>
    %c0_166 = arith.constant 0 : index
    %c0_167 = arith.constant 0 : index
    %325 = vector.load %arg11[%c0_166, %c0_167] : memref<32x1xf32, #tpu.memory_space<vmem>>, vector<32x1xf32>
    %326 = vector.broadcast %325 : vector<32x1xf32> to vector<32x128xf32>
    %327 = arith.addf %324, %326 : vector<32x128xf32>
    %328 = arith.addf %296, %327 : vector<32x128xf32>
    %cst_168 = arith.constant 0.000000e+00 : f32
    %329 = vector.broadcast %cst_168 : f32 to vector<32x128xf32>
    %330 = arith.cmpf ogt, %328, %329 : vector<32x128xf32>
    %cst_169 = arith.constant 0.00999999977 : f32
    %331 = vector.broadcast %cst_169 : f32 to vector<32x128xf32>
    %332 = arith.mulf %331, %328 : vector<32x128xf32>
    %333 = arith.select %330, %328, %332 : vector<32x128xi1>, vector<32x128xf32>
    %cst_170 = arith.constant dense<0.000000e+00> : vector<32xf32>
    %334 = vector.multi_reduction <add>, %333, %cst_170 [1] : vector<32x128xf32> to vector<32xf32>
    %335 = vector.shape_cast %334 : vector<32xf32> to vector<32x1xf32>
    %cst_171 = arith.constant 7.812500e-03 : f32
    %336 = vector.broadcast %cst_171 : f32 to vector<32x1xf32>
    %337 = arith.mulf %335, %336 : vector<32x1xf32>
    %338 = tpu.concatenate %285, %337 in 0 : vector<32x1xf32>, vector<32x1xf32> -> vector<64x1xf32>
    %339 = vector.broadcast %338 : vector<64x1xf32> to vector<64x64xf32>
    %340 = arith.mulf %339, %40 : vector<64x64xf32>
    %cst_172 = arith.constant dense<0.000000e+00> : vector<64xf32>
    %341 = vector.multi_reduction <add>, %340, %cst_172 [0] : vector<64x64xf32> to vector<64xf32>
    %342 = vector.shape_cast %341 : vector<64xf32> to vector<1x64xf32>
    %343 = vector.extract_strided_slice %42 {offsets = [6, 0], sizes = [2, 128], strides = [1, 1]} : vector<8x128xf32> to vector<2x128xf32>
    %c127_i32_173 = arith.constant 127 : i32
    %344 = tpu.dynamic_rotate %343 by %c127_i32_173 dim 1 : vector<2x128xf32>, i32 -> vector<2x128xf32>
    %c126_i32_174 = arith.constant 126 : i32
    %345 = tpu.dynamic_rotate %343 by %c126_i32_174 dim 1 : vector<2x128xf32>, i32 -> vector<2x128xf32>
    %c125_i32_175 = arith.constant 125 : i32
    %346 = tpu.dynamic_rotate %343 by %c125_i32_175 dim 1 : vector<2x128xf32>, i32 -> vector<2x128xf32>
    %c124_i32_176 = arith.constant 124 : i32
    %347 = tpu.dynamic_rotate %343 by %c124_i32_176 dim 1 : vector<2x128xf32>, i32 -> vector<2x128xf32>
    %c123_i32_177 = arith.constant 123 : i32
    %348 = tpu.dynamic_rotate %343 by %c123_i32_177 dim 1 : vector<2x128xf32>, i32 -> vector<2x128xf32>
    %c122_i32_178 = arith.constant 122 : i32
    %349 = tpu.dynamic_rotate %343 by %c122_i32_178 dim 1 : vector<2x128xf32>, i32 -> vector<2x128xf32>
    %c121_i32_179 = arith.constant 121 : i32
    %350 = tpu.dynamic_rotate %343 by %c121_i32_179 dim 1 : vector<2x128xf32>, i32 -> vector<2x128xf32>
    %351 = tpu.concatenate %343, %344, %345, %346, %347, %348, %349, %350 in 0 : vector<2x128xf32>, vector<2x128xf32>, vector<2x128xf32>, vector<2x128xf32>, vector<2x128xf32>, vector<2x128xf32>, vector<2x128xf32>, vector<2x128xf32> -> vector<16x128xf32>
    %352 = arith.truncf %351 : vector<16x128xf32> to vector<16x128xbf16>
    %c0_180 = arith.constant 0 : index
    %c0_181 = arith.constant 0 : index
    %353 = vector.load %arg2[%c0_180, %c0_181] : memref<16x16xbf16, #tpu.memory_space<vmem>>, vector<16x16xbf16>
    %cst_182 = arith.constant dense<0.000000e+00> : vector<16x128xf32>
    %354 = tpu.matmul %353, %352, %cst_182 {dimension_numbers = #tpu.dot_dimension_numbers<[1], [0], [0], [1], [0, 0, 1, 1], [], []>} : vector<16x16xbf16>, vector<16x128xbf16>, vector<16x128xf32> -> vector<16x128xf32>
    %c0_183 = arith.constant 0 : index
    %c0_184 = arith.constant 0 : index
    %355 = vector.load %arg3[%c0_183, %c0_184] : memref<16x1xf32, #tpu.memory_space<vmem>>, vector<16x1xf32>
    %356 = vector.broadcast %355 : vector<16x1xf32> to vector<16x128xf32>
    %357 = arith.addf %354, %356 : vector<16x128xf32>
    %cst_185 = arith.constant 0.000000e+00 : f32
    %358 = vector.broadcast %cst_185 : f32 to vector<16x128xf32>
    %359 = arith.cmpf ogt, %357, %358 : vector<16x128xf32>
    %cst_186 = arith.constant 0.00999999977 : f32
    %360 = vector.broadcast %cst_186 : f32 to vector<16x128xf32>
    %361 = arith.mulf %360, %357 : vector<16x128xf32>
    %362 = arith.select %359, %357, %361 : vector<16x128xi1>, vector<16x128xf32>
    %c124_i32_187 = arith.constant 124 : i32
    %363 = tpu.dynamic_rotate %362 by %c124_i32_187 dim 1 : vector<16x128xf32>, i32 -> vector<16x128xf32>
    %c120_i32_188 = arith.constant 120 : i32
    %364 = tpu.dynamic_rotate %362 by %c120_i32_188 dim 1 : vector<16x128xf32>, i32 -> vector<16x128xf32>
    %c116_i32_189 = arith.constant 116 : i32
    %365 = tpu.dynamic_rotate %362 by %c116_i32_189 dim 1 : vector<16x128xf32>, i32 -> vector<16x128xf32>
    %c112_i32_190 = arith.constant 112 : i32
    %366 = tpu.dynamic_rotate %362 by %c112_i32_190 dim 1 : vector<16x128xf32>, i32 -> vector<16x128xf32>
    %c108_i32_191 = arith.constant 108 : i32
    %367 = tpu.dynamic_rotate %362 by %c108_i32_191 dim 1 : vector<16x128xf32>, i32 -> vector<16x128xf32>
    %c104_i32_192 = arith.constant 104 : i32
    %368 = tpu.dynamic_rotate %362 by %c104_i32_192 dim 1 : vector<16x128xf32>, i32 -> vector<16x128xf32>
    %c100_i32_193 = arith.constant 100 : i32
    %369 = tpu.dynamic_rotate %362 by %c100_i32_193 dim 1 : vector<16x128xf32>, i32 -> vector<16x128xf32>
    %370 = tpu.concatenate %362, %363, %364, %365, %366, %367, %368, %369 in 0 : vector<16x128xf32>, vector<16x128xf32>, vector<16x128xf32>, vector<16x128xf32>, vector<16x128xf32>, vector<16x128xf32>, vector<16x128xf32>, vector<16x128xf32> -> vector<128x128xf32>
    %371 = arith.truncf %370 : vector<128x128xf32> to vector<128x128xbf16>
    %c0_194 = arith.constant 0 : index
    %c0_195 = arith.constant 0 : index
    %372 = vector.load %arg4[%c0_194, %c0_195] : memref<32x128xbf16, #tpu.memory_space<vmem>>, vector<32x128xbf16>
    %cst_196 = arith.constant dense<0.000000e+00> : vector<32x128xf32>
    %373 = tpu.matmul %372, %371, %cst_196 {dimension_numbers = #tpu.dot_dimension_numbers<[1], [0], [0], [1], [0, 0, 1, 1], [], []>} : vector<32x128xbf16>, vector<128x128xbf16>, vector<32x128xf32> -> vector<32x128xf32>
    %c0_197 = arith.constant 0 : index
    %c0_198 = arith.constant 0 : index
    %374 = vector.load %arg5[%c0_197, %c0_198] : memref<32x1xf32, #tpu.memory_space<vmem>>, vector<32x1xf32>
    %375 = vector.broadcast %374 : vector<32x1xf32> to vector<32x128xf32>
    %376 = arith.addf %373, %375 : vector<32x128xf32>
    %cst_199 = arith.constant 0.000000e+00 : f32
    %377 = vector.broadcast %cst_199 : f32 to vector<32x128xf32>
    %378 = arith.cmpf ogt, %376, %377 : vector<32x128xf32>
    %cst_200 = arith.constant 0.00999999977 : f32
    %379 = vector.broadcast %cst_200 : f32 to vector<32x128xf32>
    %380 = arith.mulf %379, %376 : vector<32x128xf32>
    %381 = arith.select %378, %376, %380 : vector<32x128xi1>, vector<32x128xf32>
    %382 = vector.broadcast %34 : vector<1x128xf32> to vector<32x128xf32>
    %383 = arith.mulf %381, %382 : vector<32x128xf32>
    %cst_201 = arith.constant dense<0.000000e+00> : vector<32xf32>
    %384 = vector.multi_reduction <add>, %383, %cst_201 [1] : vector<32x128xf32> to vector<32xf32>
    %385 = vector.shape_cast %384 : vector<32xf32> to vector<32x1xf32>
    %c0_202 = arith.constant 0 : index
    %c0_203 = arith.constant 0 : index
    %386 = vector.load %arg6[%c0_202, %c0_203] : memref<32x2xbf16, #tpu.memory_space<vmem>>, vector<32x2xbf16>
    %387 = arith.truncf %343 : vector<2x128xf32> to vector<2x128xbf16>
    %cst_204 = arith.constant dense<0.000000e+00> : vector<32x128xf32>
    %388 = tpu.matmul %386, %387, %cst_204 {dimension_numbers = #tpu.dot_dimension_numbers<[1], [0], [0], [1], [0, 0, 1, 1], [], []>} : vector<32x2xbf16>, vector<2x128xbf16>, vector<32x128xf32> -> vector<32x128xf32>
    %c0_205 = arith.constant 0 : index
    %c0_206 = arith.constant 0 : index
    %389 = vector.load %arg7[%c0_205, %c0_206] : memref<32x1xf32, #tpu.memory_space<vmem>>, vector<32x1xf32>
    %390 = vector.broadcast %389 : vector<32x1xf32> to vector<32x128xf32>
    %391 = arith.addf %388, %390 : vector<32x128xf32>
    %cst_207 = arith.constant 0.000000e+00 : f32
    %392 = vector.broadcast %cst_207 : f32 to vector<32x128xf32>
    %393 = arith.cmpf ogt, %391, %392 : vector<32x128xf32>
    %cst_208 = arith.constant 0.00999999977 : f32
    %394 = vector.broadcast %cst_208 : f32 to vector<32x128xf32>
    %395 = arith.mulf %394, %391 : vector<32x128xf32>
    %396 = arith.select %393, %391, %395 : vector<32x128xi1>, vector<32x128xf32>
    %c1_i32_209 = arith.constant 1 : i32
    %397 = tpu.dynamic_rotate %396 by %c1_i32_209 dim 1 : vector<32x128xf32>, i32 -> vector<32x128xf32>
    %398 = vector.broadcast %5 : vector<1x128xf32> to vector<32x128xf32>
    %399 = arith.mulf %397, %398 : vector<32x128xf32>
    %c127_i32_210 = arith.constant 127 : i32
    %400 = tpu.dynamic_rotate %396 by %c127_i32_210 dim 1 : vector<32x128xf32>, i32 -> vector<32x128xf32>
    %401 = vector.broadcast %10 : vector<1x128xf32> to vector<32x128xf32>
    %402 = arith.mulf %400, %401 : vector<32x128xf32>
    %403 = tpu.concatenate %399, %396, %402 in 0 : vector<32x128xf32>, vector<32x128xf32>, vector<32x128xf32> -> vector<96x128xf32>
    %404 = arith.truncf %403 : vector<96x128xf32> to vector<96x128xbf16>
    %c0_211 = arith.constant 0 : index
    %c0_212 = arith.constant 0 : index
    %405 = vector.load %arg8[%c0_211, %c0_212] : memref<32x96xbf16, #tpu.memory_space<vmem>>, vector<32x96xbf16>
    %cst_213 = arith.constant dense<0.000000e+00> : vector<32x128xf32>
    %406 = tpu.matmul %405, %404, %cst_213 {dimension_numbers = #tpu.dot_dimension_numbers<[1], [0], [0], [1], [0, 0, 1, 1], [], []>} : vector<32x96xbf16>, vector<96x128xbf16>, vector<32x128xf32> -> vector<32x128xf32>
    %c0_214 = arith.constant 0 : index
    %c0_215 = arith.constant 0 : index
    %407 = vector.load %arg9[%c0_214, %c0_215] : memref<32x1xf32, #tpu.memory_space<vmem>>, vector<32x1xf32>
    %408 = vector.broadcast %407 : vector<32x1xf32> to vector<32x128xf32>
    %409 = arith.addf %406, %408 : vector<32x128xf32>
    %cst_216 = arith.constant 0.000000e+00 : f32
    %410 = vector.broadcast %cst_216 : f32 to vector<32x128xf32>
    %411 = arith.cmpf ogt, %409, %410 : vector<32x128xf32>
    %cst_217 = arith.constant 0.00999999977 : f32
    %412 = vector.broadcast %cst_217 : f32 to vector<32x128xf32>
    %413 = arith.mulf %412, %409 : vector<32x128xf32>
    %414 = arith.select %411, %409, %413 : vector<32x128xi1>, vector<32x128xf32>
    %c1_i32_218 = arith.constant 1 : i32
    %415 = tpu.dynamic_rotate %414 by %c1_i32_218 dim 1 : vector<32x128xf32>, i32 -> vector<32x128xf32>
    %416 = vector.broadcast %5 : vector<1x128xf32> to vector<32x128xf32>
    %417 = arith.mulf %415, %416 : vector<32x128xf32>
    %c127_i32_219 = arith.constant 127 : i32
    %418 = tpu.dynamic_rotate %414 by %c127_i32_219 dim 1 : vector<32x128xf32>, i32 -> vector<32x128xf32>
    %419 = vector.broadcast %10 : vector<1x128xf32> to vector<32x128xf32>
    %420 = arith.mulf %418, %419 : vector<32x128xf32>
    %421 = tpu.concatenate %417, %414, %420 in 0 : vector<32x128xf32>, vector<32x128xf32>, vector<32x128xf32> -> vector<96x128xf32>
    %422 = arith.truncf %421 : vector<96x128xf32> to vector<96x128xbf16>
    %c0_220 = arith.constant 0 : index
    %c0_221 = arith.constant 0 : index
    %423 = vector.load %arg10[%c0_220, %c0_221] : memref<32x96xbf16, #tpu.memory_space<vmem>>, vector<32x96xbf16>
    %cst_222 = arith.constant dense<0.000000e+00> : vector<32x128xf32>
    %424 = tpu.matmul %423, %422, %cst_222 {dimension_numbers = #tpu.dot_dimension_numbers<[1], [0], [0], [1], [0, 0, 1, 1], [], []>} : vector<32x96xbf16>, vector<96x128xbf16>, vector<32x128xf32> -> vector<32x128xf32>
    %c0_223 = arith.constant 0 : index
    %c0_224 = arith.constant 0 : index
    %425 = vector.load %arg11[%c0_223, %c0_224] : memref<32x1xf32, #tpu.memory_space<vmem>>, vector<32x1xf32>
    %426 = vector.broadcast %425 : vector<32x1xf32> to vector<32x128xf32>
    %427 = arith.addf %424, %426 : vector<32x128xf32>
    %428 = arith.addf %396, %427 : vector<32x128xf32>
    %cst_225 = arith.constant 0.000000e+00 : f32
    %429 = vector.broadcast %cst_225 : f32 to vector<32x128xf32>
    %430 = arith.cmpf ogt, %428, %429 : vector<32x128xf32>
    %cst_226 = arith.constant 0.00999999977 : f32
    %431 = vector.broadcast %cst_226 : f32 to vector<32x128xf32>
    %432 = arith.mulf %431, %428 : vector<32x128xf32>
    %433 = arith.select %430, %428, %432 : vector<32x128xi1>, vector<32x128xf32>
    %cst_227 = arith.constant dense<0.000000e+00> : vector<32xf32>
    %434 = vector.multi_reduction <add>, %433, %cst_227 [1] : vector<32x128xf32> to vector<32xf32>
    %435 = vector.shape_cast %434 : vector<32xf32> to vector<32x1xf32>
    %cst_228 = arith.constant 7.812500e-03 : f32
    %436 = vector.broadcast %cst_228 : f32 to vector<32x1xf32>
    %437 = arith.mulf %435, %436 : vector<32x1xf32>
    %438 = tpu.concatenate %385, %437 in 0 : vector<32x1xf32>, vector<32x1xf32> -> vector<64x1xf32>
    %439 = vector.broadcast %438 : vector<64x1xf32> to vector<64x64xf32>
    %440 = arith.mulf %439, %40 : vector<64x64xf32>
    %cst_229 = arith.constant dense<0.000000e+00> : vector<64xf32>
    %441 = vector.multi_reduction <add>, %440, %cst_229 [0] : vector<64x64xf32> to vector<64xf32>
    %442 = vector.shape_cast %441 : vector<64xf32> to vector<1x64xf32>
    %443 = tpu.concatenate %142, %242, %342, %442 in 0 : vector<1x64xf32>, vector<1x64xf32>, vector<1x64xf32>, vector<1x64xf32> -> vector<4x64xf32>
    %c0_230 = arith.constant 0 : index
    %c0_231 = arith.constant 0 : index
    %c0_232 = arith.constant 0 : index
    %444 = vector.load %arg12[%c0_230, %c0_231, %c0_232] : memref<1x4x64xf32, #tpu.memory_space<vmem>>, vector<1x4x64xf32>
    %445 = vector.shape_cast %444 : vector<1x4x64xf32> to vector<4x64xf32>
    %446 = vector.shape_cast %443 : vector<4x64xf32> to vector<1x4x64xf32>
    tpu.vector_store %arg12[%c0_230, %c0_231, %c0_232], %446 {strides = array<i32>} : memref<1x4x64xf32, #tpu.memory_space<vmem>>, vector<1x4x64xf32>,
    return
  }
  func.func @transform_0(%arg0: i32) -> (i32, i32, i32) {
    %c0_i32 = arith.constant 0 : i32
    %c0_i32_0 = arith.constant 0 : i32
    %c0_i32_1 = arith.constant 0 : i32
    return %arg0, %c0_i32, %c0_i32_0 : i32, i32, i32
  }
  func.func @transform_1(%arg0: i32) -> (i32, i32) {
    %c0_i32 = arith.constant 0 : i32
    %c0_i32_0 = arith.constant 0 : i32
    %c0_i32_1 = arith.constant 0 : i32
    return %c0_i32, %c0_i32_0 : i32, i32
  }
  func.func @transform_2(%arg0: i32) -> (i32, i32) {
    %c0_i32 = arith.constant 0 : i32
    %c0_i32_0 = arith.constant 0 : i32
    %c0_i32_1 = arith.constant 0 : i32
    return %c0_i32, %c0_i32_0 : i32, i32
  }
  func.func @transform_3(%arg0: i32) -> (i32, i32) {
    %c0_i32 = arith.constant 0 : i32
    %c0_i32_0 = arith.constant 0 : i32
    %c0_i32_1 = arith.constant 0 : i32
    return %c0_i32, %c0_i32_0 : i32, i32
  }
  func.func @transform_4(%arg0: i32) -> (i32, i32) {
    %c0_i32 = arith.constant 0 : i32
    %c0_i32_0 = arith.constant 0 : i32
    %c0_i32_1 = arith.constant 0 : i32
    return %c0_i32, %c0_i32_0 : i32, i32
  }
  func.func @transform_5(%arg0: i32) -> (i32, i32) {
    %c0_i32 = arith.constant 0 : i32
    %c0_i32_0 = arith.constant 0 : i32
    %c0_i32_1 = arith.constant 0 : i32
    return %c0_i32, %c0_i32_0 : i32, i32
  }
  func.func @transform_6(%arg0: i32) -> (i32, i32) {
    %c0_i32 = arith.constant 0 : i32
    %c0_i32_0 = arith.constant 0 : i32
    %c0_i32_1 = arith.constant 0 : i32
    return %c0_i32, %c0_i32_0 : i32, i32
  }
  func.func @transform_7(%arg0: i32) -> (i32, i32) {
    %c0_i32 = arith.constant 0 : i32
    %c0_i32_0 = arith.constant 0 : i32
    %c0_i32_1 = arith.constant 0 : i32
    return %c0_i32, %c0_i32_0 : i32, i32
  }
  func.func @transform_8(%arg0: i32) -> (i32, i32) {
    %c0_i32 = arith.constant 0 : i32
    %c0_i32_0 = arith.constant 0 : i32
    %c0_i32_1 = arith.constant 0 : i32
    return %c0_i32, %c0_i32_0 : i32, i32
  }
  func.func @transform_9(%arg0: i32) -> (i32, i32) {
    %c0_i32 = arith.constant 0 : i32
    %c0_i32_0 = arith.constant 0 : i32
    %c0_i32_1 = arith.constant 0 : i32
    return %c0_i32, %c0_i32_0 : i32, i32
  }
  func.func @transform_10(%arg0: i32) -> (i32, i32) {
    %c0_i32 = arith.constant 0 : i32
    %c0_i32_0 = arith.constant 0 : i32
    %c0_i32_1 = arith.constant 0 : i32
    return %c0_i32, %c0_i32_0 : i32, i32
  }
  func.func @transform_11(%arg0: i32) -> (i32, i32, i32) {
    %c0_i32 = arith.constant 0 : i32
    %c0_i32_0 = arith.constant 0 : i32
    %c0_i32_1 = arith.constant 0 : i32
    return %arg0, %c0_i32, %c0_i32_0 : i32, i32, i32
  }
}

</mosaic_0001>

<llo_original>
// kernel: mee_equaliser_encoder.1
$region0: #{mee_equaliser_encoder.1}
  #allocation0 [shape = 'u32[]', space=smem, size = 0x4, offset = 0x4, fixed_abs, tag = 'smem constant byte address 0x4 - core index']
  #allocation1 [shape = 'u32[144,128]{1,0:T(1,128)}', space=vmem, size = 0x12000, scoped, tag = 'internal scratch']
  %s0 = inlined_call_operand.vmem [shape: f32[2,8,128], index: 0, kind: input, shape index: {}]
  %s1 = inlined_call_operand.vmem [shape: bf16[16,16], index: 1, kind: input, shape index: {}]
  %s2 = inlined_call_operand.vmem [shape: f32[16,1], index: 2, kind: input, shape index: {}]
  %s3 = inlined_call_operand.vmem [shape: bf16[32,128], index: 3, kind: input, shape index: {}]
  %s4 = inlined_call_operand.vmem [shape: f32[32,1], index: 4, kind: input, shape index: {}]
  %s5 = inlined_call_operand.vmem [shape: bf16[32,2], index: 5, kind: input, shape index: {}]
  %s6 = inlined_call_operand.vmem [shape: f32[32,1], index: 6, kind: input, shape index: {}]
  %s7 = inlined_call_operand.vmem [shape: bf16[32,96], index: 7, kind: input, shape index: {}]
  %s8 = inlined_call_operand.vmem [shape: f32[32,1], index: 8, kind: input, shape index: {}]
  %s9 = inlined_call_operand.vmem [shape: bf16[32,96], index: 9, kind: input, shape index: {}]
  %s10 = inlined_call_operand.vmem [shape: f32[32,1], index: 10, kind: input, shape index: {}]
  %s11 = inlined_call_operand.hbm [shape: f32[2,4,64], index: 11, kind: output, shape index: {}]
  %s12 = sld [smem:[#allocation0]]
  $region77: #{mee_equaliser_encoder.1} parent=0
    _
  %s14 = ssub.s32 1, %s12
  %s15 = scalar_select 0, %s14, %s12
  $region1: #{mee_equaliser_encoder.1} parent=0
    #allocation2 [shape = 'u8[4096]{0}', space=vmem, size = 0x1000, scoped, tag = 'output window, operand 0']
    #allocation3 [shape = 's32[2]{0}', space=sflag, size = 0x8, scoped, tag = 'scoped memory for mee_equaliser_encoder.1']
    %16 = vsyncpa [#allocation3], 0
    %s17 = scalar_lea.sflag [#allocation3], 1
    %18 = vsyncpa %s17, 0
    loop: start=0, step=1, limit=4
    $region2: #{mee_equaliser_encoder.1} parent=1 // loop_pre_header
      _
    $region3: #{mee_equaliser_encoder.1} parent=1 // loop_header
      %s20 = sphi 0, %s24
      %p21 = scmp.ge.s32.totalorder %s20, 4
      %s30 = sphi 0, %s32
      %s33 = sphi 0, %s30
      %s34 = sphi 0, %s33
      %s50 = sphi 0, %s34
      %s54 = sphi 0, %s54
      %s56 = sphi 0, %s54
      %s57 = sphi 0, %s56
      %s71 = sphi 0, %s57
      %s75 = sphi 0, %s75
      %s77 = sphi 0, %s75
      %s78 = sphi 0, %s77
      %s92 = sphi 0, %s78
      %s96 = sphi 0, %s96
      %s98 = sphi 0, %s96
      %s99 = sphi 0, %s98
      %s113 = sphi 0, %s99
      %s117 = sphi 0, %s117
      %s119 = sphi 0, %s117
      %s120 = sphi 0, %s119
      %s134 = sphi 0, %s120
      %s138 = sphi 0, %s138
      %s140 = sphi 0, %s138
      %s141 = sphi 0, %s140
      %s155 = sphi 0, %s141
      %s159 = sphi 0, %s159
      %s161 = sphi 0, %s159
      %s162 = sphi 0, %s161
      %s176 = sphi 0, %s162
      %s180 = sphi 0, %s180
      %s182 = sphi 0, %s180
      %s183 = sphi 0, %s182
      %s197 = sphi 0, %s183
      %s201 = sphi 0, %s201
      %s203 = sphi 0, %s201
      %s204 = sphi 0, %s203
      %s218 = sphi 0, %s204
      %s222 = sphi 0, %s222
      %s224 = sphi 0, %s222
      %s225 = sphi 0, %s224
      %s239 = sphi 0, %s225
      %s243 = sphi 0, %s243
      %s245 = sphi 0, %s243
      %s246 = sphi 0, %s245
      %s260 = sphi 0, %s246
      %s266 = sphi 0, %s268
      %s269 = sphi 0, %s266
      %s270 = sphi 0, %s269
      %s286 = sphi 0, %s270
    $region4: #{mee_equaliser_encoder.1} parent=1 // loop_header_branch
      %23 = sbr.rel (%p21) target = $region8
    $region5: #{mee_equaliser_encoder.1} parent=1 // loop_body
      %s25 = ssub.s32 %s20, 1
      %s26 = ssub.s32 %s20, 2
      %s27 = sadd.s32 %s20, 1
      %s28 = ssub.s32 %s20, %s27
      %p29 = scmp.eq.s32.totalorder %s28, 0
      %s31 = sadd.s32 %s30, 1
      %s32 = scalar_select %p29, %s30, %s31
      %p35 = pneg %p29
      %p36 = scmp.eq.s32.totalorder %s20, 1
      %p37 = por %p35, %p36
      %p38 = scmp.ne.s32.totalorder %s30, %s33
      %p39 = scmp.eq.s32.totalorder %s20, 0
      %p40 = por %p38, %p39
      %p41 = scmp.ne.s32.totalorder %s30, %s33
      %p42 = scmp.eq.s32.totalorder %s25, 1
      %p43 = por %p41, %p42
      %p44 = scmp.ne.s32.totalorder %s33, %s34
      %p45 = scmp.eq.s32.totalorder %s25, 0
      %p46 = por %p44, %p45
      %p47 = scmp.ne.s32.totalorder %s33, %s34
      %p48 = scmp.eq.s32.totalorder %s26, 1
      %p49 = por %p47, %p48
      %p51 = scmp.ne.s32.totalorder %s34, %s50
      %p52 = scmp.eq.s32.totalorder %s26, 0
      %p53 = por %p51, %p52
      %s55 = sadd.s32 %s54, 1
      %p58 = scmp.eq.s32.totalorder %s20, 1
      %p59 = scmp.ne.s32.totalorder %s54, %s56
      %p60 = scmp.eq.s32.totalorder %s20, 0
      %p61 = por %p59, %p60
      %p62 = scmp.ne.s32.totalorder %s54, %s56
      %p63 = scmp.eq.s32.totalorder %s25, 1
      %p64 = por %p62, %p63
      %p65 = scmp.ne.s32.totalorder %s56, %s57
      %p66 = scmp.eq.s32.totalorder %s25, 0
      %p67 = por %p65, %p66
      %p68 = scmp.ne.s32.totalorder %s56, %s57
      %p69 = scmp.eq.s32.totalorder %s26, 1
      %p70 = por %p68, %p69
      %p72 = scmp.ne.s32.totalorder %s57, %s71
      %p73 = scmp.eq.s32.totalorder %s26, 0
      %p74 = por %p72, %p73
      %s76 = sadd.s32 %s75, 1
      %p79 = scmp.eq.s32.totalorder %s20, 1
      %p80 = scmp.ne.s32.totalorder %s75, %s77
      %p81 = scmp.eq.s32.totalorder %s20, 0
      %p82 = por %p80, %p81
      %p83 = scmp.ne.s32.totalorder %s75, %s77
      %p84 = scmp.eq.s32.totalorder %s25, 1
      %p85 = por %p83, %p84
      %p86 = scmp.ne.s32.totalorder %s77, %s78
      %p87 = scmp.eq.s32.totalorder %s25, 0
      %p88 = por %p86, %p87
      %p89 = scmp.ne.s32.totalorder %s77, %s78
      %p90 = scmp.eq.s32.totalorder %s26, 1
      %p91 = por %p89, %p90
      %p93 = scmp.ne.s32.totalorder %s78, %s92
      %p94 = scmp.eq.s32.totalorder %s26, 0
      %p95 = por %p93, %p94
      %s97 = sadd.s32 %s96, 1
      %p100 = scmp.eq.s32.totalorder %s20, 1
      %p101 = scmp.ne.s32.totalorder %s96, %s98
      %p102 = scmp.eq.s32.totalorder %s20, 0
      %p103 = por %p101, %p102
      %p104 = scmp.ne.s32.totalorder %s96, %s98
      %p105 = scmp.eq.s32.totalorder %s25, 1
      %p106 = por %p104, %p105
      %p107 = scmp.ne.s32.totalorder %s98, %s99
      %p108 = scmp.eq.s32.totalorder %s25, 0
      %p109 = por %p107, %p108
      %p110 = scmp.ne.s32.totalorder %s98, %s99
      %p111 = scmp.eq.s32.totalorder %s26, 1
      %p112 = por %p110, %p111
      %p114 = scmp.ne.s32.totalorder %s99, %s113
      %p115 = scmp.eq.s32.totalorder %s26, 0
      %p116 = por %p114, %p115
      %s118 = sadd.s32 %s117, 1
      %p121 = scmp.eq.s32.totalorder %s20, 1
      %p122 = scmp.ne.s32.totalorder %s117, %s119
      %p123 = scmp.eq.s32.totalorder %s20, 0
      %p124 = por %p122, %p123
      %p125 = scmp.ne.s32.totalorder %s117, %s119
      %p126 = scmp.eq.s32.totalorder %s25, 1
      %p127 = por %p125, %p126
      %p128 = scmp.ne.s32.totalorder %s119, %s120
      %p129 = scmp.eq.s32.totalorder %s25, 0
      %p130 = por %p128, %p129
      %p131 = scmp.ne.s32.totalorder %s119, %s120
      %p132 = scmp.eq.s32.totalorder %s26, 1
      %p133 = por %p131, %p132
      %p135 = scmp.ne.s32.totalorder %s120, %s134
      %p136 = scmp.eq.s32.totalorder %s26, 0
      %p137 = por %p135, %p136
      %s139 = sadd.s32 %s138, 1
      %p142 = scmp.eq.s32.totalorder %s20, 1
      %p143 = scmp.ne.s32.totalorder %s138, %s140
      %p144 = scmp.eq.s32.totalorder %s20, 0
      %p145 = por %p143, %p144
      %p146 = scmp.ne.s32.totalorder %s138, %s140
      %p147 = scmp.eq.s32.totalorder %s25, 1
      %p148 = por %p146, %p147
      %p149 = scmp.ne.s32.totalorder %s140, %s141
      %p150 = scmp.eq.s32.totalorder %s25, 0
      %p151 = por %p149, %p150
      %p152 = scmp.ne.s32.totalorder %s140, %s141
      %p153 = scmp.eq.s32.totalorder %s26, 1
      %p154 = por %p152, %p153
      %p156 = scmp.ne.s32.totalorder %s141, %s155
      %p157 = scmp.eq.s32.totalorder %s26, 0
      %p158 = por %p156, %p157
      %s160 = sadd.s32 %s159, 1
      %p163 = scmp.eq.s32.totalorder %s20, 1
      %p164 = scmp.ne.s32.totalorder %s159, %s161
      %p165 = scmp.eq.s32.totalorder %s20, 0
      %p166 = por %p164, %p165
      %p167 = scmp.ne.s32.totalorder %s159, %s161
      %p168 = scmp.eq.s32.totalorder %s25, 1
      %p169 = por %p167, %p168
      %p170 = scmp.ne.s32.totalorder %s161, %s162
      %p171 = scmp.eq.s32.totalorder %s25, 0
      %p172 = por %p170, %p171
      %p173 = scmp.ne.s32.totalorder %s161, %s162
      %p174 = scmp.eq.s32.totalorder %s26, 1
      %p175 = por %p173, %p174
      %p177 = scmp.ne.s32.totalorder %s162, %s176
      %p178 = scmp.eq.s32.totalorder %s26, 0
      %p179 = por %p177, %p178
      %s181 = sadd.s32 %s180, 1
      %p184 = scmp.eq.s32.totalorder %s20, 1
      %p185 = scmp.ne.s32.totalorder %s180, %s182
      %p186 = scmp.eq.s32.totalorder %s20, 0
      %p187 = por %p185, %p186
      %p188 = scmp.ne.s32.totalorder %s180, %s182
      %p189 = scmp.eq.s32.totalorder %s25, 1
      %p190 = por %p188, %p189
      %p191 = scmp.ne.s32.totalorder %s182, %s183
      %p192 = scmp.eq.s32.totalorder %s25, 0
      %p193 = por %p191, %p192
      %p194 = scmp.ne.s32.totalorder %s182, %s183
      %p195 = scmp.eq.s32.totalorder %s26, 1
      %p196 = por %p194, %p195
      %p198 = scmp.ne.s32.totalorder %s183, %s197
      %p199 = scmp.eq.s32.totalorder %s26, 0
      %p200 = por %p198, %p199
      %s202 = sadd.s32 %s201, 1
      %p205 = scmp.eq.s32.totalorder %s20, 1
      %p206 = scmp.ne.s32.totalorder %s201, %s203
      %p207 = scmp.eq.s32.totalorder %s20, 0
      %p208 = por %p206, %p207
      %p209 = scmp.ne.s32.totalorder %s201, %s203
      %p210 = scmp.eq.s32.totalorder %s25, 1
      %p211 = por %p209, %p210
      %p212 = scmp.ne.s32.totalorder %s203, %s204
      %p213 = scmp.eq.s32.totalorder %s25, 0
      %p214 = por %p212, %p213
      %p215 = scmp.ne.s32.totalorder %s203, %s204
      %p216 = scmp.eq.s32.totalorder %s26, 1
      %p217 = por %p215, %p216
      %p219 = scmp.ne.s32.totalorder %s204, %s218
      %p220 = scmp.eq.s32.totalorder %s26, 0
      %p221 = por %p219, %p220
      %s223 = sadd.s32 %s222, 1
      %p226 = scmp.eq.s32.totalorder %s20, 1
      %p227 = scmp.ne.s32.totalorder %s222, %s224
      %p228 = scmp.eq.s32.totalorder %s20, 0
      %p229 = por %p227, %p228
      %p230 = scmp.ne.s32.totalorder %s222, %s224
      %p231 = scmp.eq.s32.totalorder %s25, 1
      %p232 = por %p230, %p231
      %p233 = scmp.ne.s32.totalorder %s224, %s225
      %p234 = scmp.eq.s32.totalorder %s25, 0
      %p235 = por %p233, %p234
      %p236 = scmp.ne.s32.totalorder %s224, %s225
      %p237 = scmp.eq.s32.totalorder %s26, 1
      %p238 = por %p236, %p237
      %p240 = scmp.ne.s32.totalorder %s225, %s239
      %p241 = scmp.eq.s32.totalorder %s26, 0
      %p242 = por %p240, %p241
      %s244 = sadd.s32 %s243, 1
      %p247 = scmp.eq.s32.totalorder %s20, 1
      %p248 = scmp.ne.s32.totalorder %s243, %s245
      %p249 = scmp.eq.s32.totalorder %s20, 0
      %p250 = por %p248, %p249
      %p251 = scmp.ne.s32.totalorder %s243, %s245
      %p252 = scmp.eq.s32.totalorder %s25, 1
      %p253 = por %p251, %p252
      %p254 = scmp.ne.s32.totalorder %s245, %s246
      %p255 = scmp.eq.s32.totalorder %s25, 0
      %p256 = por %p254, %p255
      %p257 = scmp.ne.s32.totalorder %s245, %s246
      %p258 = scmp.eq.s32.totalorder %s26, 1
      %p259 = por %p257, %p258
      %p261 = scmp.ne.s32.totalorder %s246, %s260
      %p262 = scmp.eq.s32.totalorder %s26, 0
      %p263 = por %p261, %p262
      %s264 = ssub.s32 %s20, %s27
      %p265 = scmp.eq.s32.totalorder %s264, 0
      %s267 = sadd.s32 %s266, 1
      %s268 = scalar_select %p265, %s266, %s267
      %p271 = pneg %p265
      %p272 = scmp.eq.s32.totalorder %s20, 1
      %p273 = por %p271, %p272
      %p274 = scmp.ne.s32.totalorder %s266, %s269
      %p275 = scmp.eq.s32.totalorder %s20, 0
      %p276 = por %p274, %p275
      %p277 = scmp.ne.s32.totalorder %s266, %s269
      %p278 = scmp.eq.s32.totalorder %s25, 1
      %p279 = por %p277, %p278
      %p280 = scmp.ne.s32.totalorder %s269, %s270
      %p281 = scmp.eq.s32.totalorder %s25, 0
      %p282 = por %p280, %p281
      %p283 = scmp.ne.s32.totalorder %s269, %s270
      %p284 = scmp.eq.s32.totalorder %s26, 1
      %p285 = por %p283, %p284
      %p287 = scmp.ne.s32.totalorder %s270, %s286
      %p288 = scmp.eq.s32.totalorder %s26, 0
      %p289 = por %p287, %p288
      %p290 = scmp.le.s32.totalorder 1, %s20
      %p291 = scmp.lt.s32.totalorder %s20, 3
      %p292 = pnand %p290, %p291
      %p293 = pneg %p292
      // Predicated region
      $region9: #{mee_equaliser_encoder.1} parent=5 // pred_check
        _
      $region10: #{mee_equaliser_encoder.1} parent=5 // pred_check_branch
        %295 = sbr.rel (%p292) target = $region12
      $region11: #{mee_equaliser_encoder.1} parent=5 // pred_region
        %s296 = ssub.s32 %s20, 1
        // Predicated region
        $region13: #{mee_equaliser_encoder.1} parent=11 // pred_check
          %p297 = pneg %p67
        $region14: #{mee_equaliser_encoder.1} parent=11 // pred_check_branch
          %299 = sbr.rel (%p297) target = $region16
        $region15: #{mee_equaliser_encoder.1} parent=11 // pred_region
          _
        $region16: #{mee_equaliser_encoder.1} parent=11 // pred_fallthru
          _
        // Predicated region
        $region17: #{mee_equaliser_encoder.1} parent=11 // pred_check
          %p300 = pneg %p88
        $region18: #{mee_equaliser_encoder.1} parent=11 // pred_check_branch
          %302 = sbr.rel (%p300) target = $region20
        $region19: #{mee_equaliser_encoder.1} parent=11 // pred_region
          _
        $region20: #{mee_equaliser_encoder.1} parent=11 // pred_fallthru
          _
        // Predicated region
        $region21: #{mee_equaliser_encoder.1} parent=11 // pred_check
          %p303 = pneg %p109
        $region22: #{mee_equaliser_encoder.1} parent=11 // pred_check_branch
          %305 = sbr.rel (%p303) target = $region24
        $region23: #{mee_equaliser_encoder.1} parent=11 // pred_region
          _
        $region24: #{mee_equaliser_encoder.1} parent=11 // pred_fallthru
          _
        // Predicated region
        $region25: #{mee_equaliser_encoder.1} parent=11 // pred_check
          %p306 = pneg %p130
        $region26: #{mee_equaliser_encoder.1} parent=11 // pred_check_branch
          %308 = sbr.rel (%p306) target = $region28
        $region27: #{mee_equaliser_encoder.1} parent=11 // pred_region
          _
        $region28: #{mee_equaliser_encoder.1} parent=11 // pred_fallthru
          _
        // Predicated region
        $region29: #{mee_equaliser_encoder.1} parent=11 // pred_check
          %p309 = pneg %p151
        $region30: #{mee_equaliser_encoder.1} parent=11 // pred_check_branch
          %311 = sbr.rel (%p309) target = $region32
        $region31: #{mee_equaliser_encoder.1} parent=11 // pred_region
          _
        $region32: #{mee_equaliser_encoder.1} parent=11 // pred_fallthru
          _
        // Predicated region
        $region33: #{mee_equaliser_encoder.1} parent=11 // pred_check
          %p312 = pneg %p172
        $region34: #{mee_equaliser_encoder.1} parent=11 // pred_check_branch
          %314 = sbr.rel (%p312) target = $region36
        $region35: #{mee_equaliser_encoder.1} parent=11 // pred_region
          _
        $region36: #{mee_equaliser_encoder.1} parent=11 // pred_fallthru
          _
        // Predicated region
        $region37: #{mee_equaliser_encoder.1} parent=11 // pred_check
          %p315 = pneg %p193
        $region38: #{mee_equaliser_encoder.1} parent=11 // pred_check_branch
          %317 = sbr.rel (%p315) target = $region40
        $region39: #{mee_equaliser_encoder.1} parent=11 // pred_region
          _
        $region40: #{mee_equaliser_encoder.1} parent=11 // pred_fallthru
          _
        // Predicated region
        $region41: #{mee_equaliser_encoder.1} parent=11 // pred_check
          %p318 = pneg %p214
        $region42: #{mee_equaliser_encoder.1} parent=11 // pred_check_branch
          %320 = sbr.rel (%p318) target = $region44
        $region43: #{mee_equaliser_encoder.1} parent=11 // pred_region
          _
        $region44: #{mee_equaliser_encoder.1} parent=11 // pred_fallthru
          _
        // Predicated region
        $region45: #{mee_equaliser_encoder.1} parent=11 // pred_check
          %p321 = pneg %p235
        $region46: #{mee_equaliser_encoder.1} parent=11 // pred_check_branch
          %323 = sbr.rel (%p321) target = $region48
        $region47: #{mee_equaliser_encoder.1} parent=11 // pred_region
          _
        $region48: #{mee_equaliser_encoder.1} parent=11 // pred_fallthru
          _
        // Predicated region
        $region49: #{mee_equaliser_encoder.1} parent=11 // pred_check
          %p324 = pneg %p256
        $region50: #{mee_equaliser_encoder.1} parent=11 // pred_check_branch
          %326 = sbr.rel (%p324) target = $region52
        $region51: #{mee_equaliser_encoder.1} parent=11 // pred_region
          _
        $region52: #{mee_equaliser_encoder.1} parent=11 // pred_fallthru
          _
      $region12: #{mee_equaliser_encoder.1} parent=5 // pred_fallthru
        _
      %p327 = scmp.lt.s32.totalorder %s20, 2
      // Predicated region
      $region53: #{mee_equaliser_encoder.1} parent=5 // pred_check
        %p328 = pneg %p327
      $region54: #{mee_equaliser_encoder.1} parent=5 // pred_check_branch
        %330 = sbr.rel (%p328) target = $region56
      $region55: #{mee_equaliser_encoder.1} parent=5 // pred_region
        // Predicated region
        $region57: #{mee_equaliser_encoder.1} parent=55 // pred_check
          %p331 = pneg %p40
        $region58: #{mee_equaliser_encoder.1} parent=55 // pred_check_branch
          %333 = sbr.rel (%p331) target = $region60
        $region59: #{mee_equaliser_encoder.1} parent=55 // pred_region
          %p334 = scmp.lt.s32.totalorder %s20, 1
          %s335 = scalar_select %p334, %s20, 1
          %s336 = smul.addr %s335, 8
          %s337 = scalar_lea.vmem %s0, %s336
        $region60: #{mee_equaliser_encoder.1} parent=55 // pred_fallthru
          _
      $region56: #{mee_equaliser_encoder.1} parent=5 // pred_fallthru
        _
      %p338 = scmp.le.s32.totalorder 1, %s20
      %p339 = scmp.lt.s32.totalorder %s20, 3
      %p340 = pnand %p338, %p339
      %p341 = pneg %p340
      // Predicated region
      $region61: #{mee_equaliser_encoder.1} parent=5 // pred_check
        _
      $region62: #{mee_equaliser_encoder.1} parent=5 // pred_check_branch
        %343 = sbr.rel (%p340) target = $region64
      $region63: #{mee_equaliser_encoder.1} parent=5 // pred_region
        %s344 = ssub.s32 %s20, 1
        %p345 = scmp.lt.s32.totalorder %s25, 1
        %s346 = scalar_select %p345, %s25, 1
        %s347 = smul.addr %s346, 8
        %s348 = scalar_lea.vmem %s0, %s347
        %p349 = pneg %p46
        %p350 = pneg %p43
        %p351 = pneg %p67
        %p352 = pneg %p64
        %p353 = pneg %p88
        %p354 = pneg %p85
        %p355 = pneg %p109
        %p356 = pneg %p106
        %p357 = pneg %p130
        %p358 = pneg %p127
        %p359 = pneg %p151
        %p360 = pneg %p148
        %p361 = pneg %p172
        %p362 = pneg %p169
        %p363 = pneg %p193
        %p364 = pneg %p190
        %p365 = pneg %p214
        %p366 = pneg %p211
        %p367 = pneg %p235
        %p368 = pneg %p232
        %p369 = pneg %p256
        %p370 = pneg %p253
        %p371 = pneg %p282
        %p372 = pneg %p279
        %s373 = sand.u32 %s269, 1
        %s374 = scalar_lea.sflag [#allocation3], %s373
        %s375 = sand.u32 %s269, 1
        %s376 = smul.addr %s375, 4
        %s377 = scalar_lea.vmem [#allocation2], %s376
        %p378 = scmp.lt.s32.totalorder %s25, 1
        %s379 = scalar_select %p378, %s25, 1
        %s380 = smul.addr %s379, 8
        %s381 = scalar_lea.vmem %s0, %s380
        %v383 = vlaneseq
        %v384 = vand.u32 %v383, 127
        %vm385 = vcmp.ge.s32.totalorder %v384, 1
        %v386 = vsel %vm385, 1.0, 0.0
        %vm387 = vcmp.le.s32.totalorder %v384, 126
        %v388 = vsel %vm387, 1.0, 0.0
        %vm389 = vcmp.lt.s32.totalorder %v384, 0
        %v390 = vsub.s32 0, %v384
        %v391 = vsel %vm389, %v390, %v384
        %v392 = vshrl.u32 %v391, 4
        %v393 = vand.u32 %v391, 15
        %v394 = vsub.s32 0, %v393
        %v395 = vsel %vm389, %v394, %v393
        %vm396 = vcmp.ne.s32.totalorder %v395, 0
        %vm397 = vcmp.lt.s32.totalorder %v395, 0
        %vm398 = vmand %vm397, %vm396
        %v399 = vadd.s32 %v395, 16
        %v400 = vsel %vm398, %v399, %v395
        %vm401 = vcmp.eq.s32.totalorder %v400, 0
        %vm402 = vcmp.lt.s32.totalorder %v384, 96
        %vm403 = vmand %vm401, %vm402
        %v404 = vsel %vm403, 0.16666667, 0.0
        %v405 = vlaneseq
        %v406 = vshrl.u32 %v405, 7
        %v407 = vadd.s32 %v406, 8
        %v408 = vadd.s32 %v406, 16
        %v409 = vadd.s32 %v406, 24
        %v410 = vadd.s32 %v406, 32
        %v411 = vadd.s32 %v406, 40
        %v412 = vadd.s32 %v406, 48
        %v413 = vadd.s32 %v406, 56
        %vm414 = vcmp.eq.s32.totalorder %v406, %v384
        %vm415 = vcmp.eq.s32.totalorder %v407, %v384
        %vm416 = vcmp.eq.s32.totalorder %v408, %v384
        %vm417 = vcmp.eq.s32.totalorder %v409, %v384
        %vm418 = vcmp.eq.s32.totalorder %v410, %v384
        %vm419 = vcmp.eq.s32.totalorder %v411, %v384
        %vm420 = vcmp.eq.s32.totalorder %v412, %v384
        %vm421 = vcmp.eq.s32.totalorder %v413, %v384
        %v422 = vsel %vm414, 1.0, 0.0
        %v423 = vsel %vm415, 1.0, 0.0
        %v424 = vsel %vm416, 1.0, 0.0
        %v425 = vsel %vm417, 1.0, 0.0
        %v426 = vsel %vm418, 1.0, 0.0
        %v427 = vsel %vm419, 1.0, 0.0
        %v428 = vsel %vm420, 1.0, 0.0
        %v429 = vsel %vm421, 1.0, 0.0
        %v430 = vld [vmem:[%s381] sm:$0xff]
        %431 = vrot.lane.b32.xlu0 %v430, 127
        %v432 = vpop.permute.xlu0 %431
        %433 = vrot.lane.b32.xlu0 %v430, 126
        %v434 = vpop.permute.xlu0 %433
        %435 = vrot.lane.b32.xlu0 %v430, 125
        %v436 = vpop.permute.xlu0 %435
        %437 = vrot.lane.b32.xlu0 %v430, 124
        %v438 = vpop.permute.xlu0 %437
        %439 = vrot.lane.b32.xlu0 %v430, 123
        %v440 = vpop.permute.xlu0 %439
        %441 = vrot.lane.b32.xlu0 %v430, 122
        %v442 = vpop.permute.xlu0 %441
        %443 = vrot.lane.b32.xlu0 %v430, 121
        %v444 = vpop.permute.xlu0 %443
        %v446 = vrot.slane %v432, 6
        %v449 = vrot.slane %v434, 4
        %v452 = vrot.slane %v436, 2
        %v455 = vrot.slane %v440, 6
        %v458 = vrot.slane %v442, 4
        %v461 = vrot.slane %v444, 2
        %vm463 = vcmask 1041408
        %v464 = vsel %vm463, %v430, %v446
        %vm465 = vcmask 1043456
        %v466 = vsel %vm465, %v464, %v449
        %vm467 = vcmask 1045504
        %v468 = vsel %vm467, %v466, %v452
        %v469 = vsel %vm463, %v438, %v455
        %v470 = vsel %vm465, %v469, %v458
        %v471 = vsel %vm467, %v470, %v461
        %v472 = vpack.c.bf16 %v471, %v468
        %v473 = vld [vmem:[%s1] sm:$0xf]
        %v474 = vld [vmem:[%s1 + $0x4] sm:$0xf]
        %v475 = vld [vmem:[%s2] sm:$0xff]
        %v476 = vld [vmem:[%s2 + $0x8] sm:$0xff]
        %478 = vset.pattern.permute.xlu0 0
        %479 = vperm.xlu0 %478, %v475
        %v480 = vpop.permute.xlu0 %479
        %483 = vset.pattern.permute.xlu0 0
        %484 = vperm.xlu0 %483, %v476
        %v485 = vpop.permute.xlu0 %484
        %v489 = vunpack.c.l.b16 %v473
        %v490 = vunpack.c.l.b16 %v474
        %v491 = vpack.c.b16 %v490, %v489
        %vm492 = vcmask 130048
        %v494 = vsel %vm492, %v491, 0
        %496 = vmatprep.subr.bf16.mxu0 0
        %497 = vmatpush1.bf16.msra.mxu0 %v472
        %498 = vmatprep.subr.bf16.mxu0 0
        %499 = vmatpush1.bf16.msra.mxu0 0
        %500 = vmatprep.subr.bf16.mxu0 0
        %501 = vmatpush1.bf16.msra.mxu0 0
        %502 = vmatprep.subr.bf16.mxu0 0
        %503 = vmatpush1.bf16.msra.mxu0 0
        %504 = vmatprep.subr.bf16.mxu0 0
        %505 = vmatpush1.bf16.msra.mxu0 0
        %506 = vmatprep.subr.bf16.mxu0 0
        %507 = vmatpush1.bf16.msra.mxu0 0
        %508 = vmatprep.subr.bf16.mxu0 0
        %509 = vmatpush1.bf16.msra.mxu0 0
        %510 = vmatprep.subr.bf16.mxu0 0
        %511 = vmatpush1.bf16.msra.mxu0 0
        %512 = vmatprep.subr.bf16.mxu0 0
        %513 = vmatpush1.bf16.msra.mxu0 0
        %514 = vmatprep.subr.bf16.mxu0 0
        %515 = vmatpush1.bf16.msra.mxu0 0
        %516 = vmatprep.subr.bf16.mxu0 0
        %517 = vmatpush1.bf16.msra.mxu0 0
        %518 = vmatprep.subr.bf16.mxu0 0
        %519 = vmatpush1.bf16.msra.mxu0 0
        %520 = vmatprep.subr.bf16.mxu0 0
        %521 = vmatpush1.bf16.msra.mxu0 0
        %522 = vmatprep.subr.bf16.mxu0 0
        %523 = vmatpush1.bf16.msra.mxu0 0
        %524 = vmatprep.subr.bf16.mxu0 0
        %525 = vmatpush1.bf16.msra.mxu0 0
        %526 = vmatprep.subr.bf16.mxu0 0
        %527 = vmatpush1.bf16.msra.mxu0 0
        %528 = vmatprep.mubr.bf16.mxu0 0
        %529 = vmatmul.mubr.bf16.gmra.mrb[0].mxu0 %v494
        %v530 = vpop.f32.mrb[0].mxu0
        %v531 = vadd.f32 %v480, %v530
        %v532 = vpop.f32.mrb[0].mxu0
        %v533 = vpop.f32.mrb[0].mxu0
        %v534 = vadd.f32 %v485, %v533
        %v535 = vpop.f32.mrb[0].mxu0
        %536 = vdwg.mxu0
        %vm537 = vcmp.gt.f32.partialorder %v531, 0.0
        %vm538 = vcmp.gt.f32.partialorder %v534, 0.0
        %v539 = vmul.f32 %v531, 0.01
        %v540 = vmul.f32 %v534, 0.01
        %v541 = vsel %vm537, %v531, %v539
        %v542 = vsel %vm538, %v534, %v540
        %543 = vrot.lane.b32.xlu0 %v541, 124
        %v544 = vpop.permute.xlu0 %543
        %545 = vrot.lane.b32.xlu0 %v542, 124
        %v546 = vpop.permute.xlu0 %545
        %547 = vrot.lane.b32.xlu0 %v541, 120
        %v548 = vpop.permute.xlu0 %547
        %549 = vrot.lane.b32.xlu0 %v542, 120
        %v550 = vpop.permute.xlu0 %549
        %551 = vrot.lane.b32.xlu0 %v541, 116
        %v552 = vpop.permute.xlu0 %551
        %553 = vrot.lane.b32.xlu0 %v542, 116
        %v554 = vpop.permute.xlu0 %553
        %555 = vrot.lane.b32.xlu0 %v541, 112
        %v556 = vpop.permute.xlu0 %555
        %557 = vrot.lane.b32.xlu0 %v542, 112
        %v558 = vpop.permute.xlu0 %557
        %559 = vrot.lane.b32.xlu0 %v541, 108
        %v560 = vpop.permute.xlu0 %559
        %561 = vrot.lane.b32.xlu0 %v542, 108
        %v562 = vpop.permute.xlu0 %561
        %563 = vrot.lane.b32.xlu0 %v541, 104
        %v564 = vpop.permute.xlu0 %563
        %565 = vrot.lane.b32.xlu0 %v542, 104
        %v566 = vpop.permute.xlu0 %565
        %567 = vrot.lane.b32.xlu0 %v541, 100
        %v568 = vpop.permute.xlu0 %567
        %569 = vrot.lane.b32.xlu0 %v542, 100
        %v570 = vpop.permute.xlu0 %569
        %v571 = vpack.c.bf16 %v542, %v541
        %v572 = vpack.c.bf16 %v546, %v544
        %v573 = vpack.c.bf16 %v550, %v548
        %v574 = vpack.c.bf16 %v554, %v552
        %v575 = vpack.c.bf16 %v558, %v556
        %v576 = vpack.c.bf16 %v562, %v560
        %v577 = vpack.c.bf16 %v566, %v564
        %v578 = vpack.c.bf16 %v570, %v568
        %v579 = vld [vmem:[%s3] sm:$0xf]
        %v580 = vld [vmem:[%s3 + $0x4] sm:$0xf]
        %v581 = vld [vmem:[%s3 + $0x8] sm:$0xf]
        %v582 = vld [vmem:[%s3 + $0xc] sm:$0xf]
        %v583 = vld [vmem:[%s4] sm:$0xff]
        %v584 = vld [vmem:[%s4 + $0x8] sm:$0xff]
        %v585 = vld [vmem:[%s4 + $0x10] sm:$0xff]
        %v586 = vld [vmem:[%s4 + $0x18] sm:$0xff]
        %588 = vset.pattern.permute.xlu0 0
        %589 = vperm.xlu0 %588, %v583
        %v590 = vpop.permute.xlu0 %589
        %593 = vset.pattern.permute.xlu0 0
        %594 = vperm.xlu0 %593, %v584
        %v595 = vpop.permute.xlu0 %594
        %598 = vset.pattern.permute.xlu0 0
        %599 = vperm.xlu0 %598, %v585
        %v600 = vpop.permute.xlu0 %599
        %603 = vset.pattern.permute.xlu0 0
        %604 = vperm.xlu0 %603, %v586
        %v605 = vpop.permute.xlu0 %604
        %v611 = vunpack.c.l.b16 %v579
        %v612 = vunpack.c.l.b16 %v580
        %v613 = vunpack.c.l.b16 %v581
        %v614 = vunpack.c.l.b16 %v582
        %v615 = vpack.c.b16 %v612, %v611
        %v616 = vpack.c.b16 %v614, %v613
        %619 = vmatprep.subr.bf16.mxu0 0
        %620 = vmatpush1.bf16.msra.mxu0 %v571
        %621 = vmatprep.subr.bf16.mxu0 0
        %622 = vmatpush1.bf16.msra.mxu0 %v572
        %623 = vmatprep.subr.bf16.mxu0 0
        %624 = vmatpush1.bf16.msra.mxu0 %v573
        %625 = vmatprep.subr.bf16.mxu0 0
        %626 = vmatpush1.bf16.msra.mxu0 %v574
        %627 = vmatprep.subr.bf16.mxu0 0
        %628 = vmatpush1.bf16.msra.mxu0 %v575
        %629 = vmatprep.subr.bf16.mxu0 0
        %630 = vmatpush1.bf16.msra.mxu0 %v576
        %631 = vmatprep.subr.bf16.mxu0 0
        %632 = vmatpush1.bf16.msra.mxu0 %v577
        %633 = vmatprep.subr.bf16.mxu0 0
        %634 = vmatpush1.bf16.msra.mxu0 %v578
        %635 = vmatprep.subr.bf16.mxu0 0
        %636 = vmatpush1.bf16.msra.mxu0 0
        %637 = vmatprep.subr.bf16.mxu0 0
        %638 = vmatpush1.bf16.msra.mxu0 0
        %639 = vmatprep.subr.bf16.mxu0 0
        %640 = vmatpush1.bf16.msra.mxu0 0
        %641 = vmatprep.subr.bf16.mxu0 0
        %642 = vmatpush1.bf16.msra.mxu0 0
        %643 = vmatprep.subr.bf16.mxu0 0
        %644 = vmatpush1.bf16.msra.mxu0 0
        %645 = vmatprep.subr.bf16.mxu0 0
        %646 = vmatpush1.bf16.msra.mxu0 0
        %647 = vmatprep.subr.bf16.mxu0 0
        %648 = vmatpush1.bf16.msra.mxu0 0
        %649 = vmatprep.subr.bf16.mxu0 0
        %650 = vmatpush1.bf16.msra.mxu0 0
        %651 = vmatprep.mubr.bf16.mxu0 0
        %652 = vmatmul.mubr.bf16.gmra.mrb[0].mxu0 %v615
        %v653 = vpop.f32.mrb[0].mxu0
        %v654 = vadd.f32 %v590, %v653
        %v655 = vpop.f32.mrb[0].mxu0
        %v656 = vpop.f32.mrb[0].mxu0
        %v657 = vadd.f32 %v595, %v656
        %v658 = vpop.f32.mrb[0].mxu0
        %659 = vmatprep.mubr.bf16.mxu0 0
        %660 = vmatmul.mubr.bf16.gmra.mrb[0].mxu0 %v616
        %v661 = vpop.f32.mrb[0].mxu0
        %v662 = vadd.f32 %v600, %v661
        %v663 = vpop.f32.mrb[0].mxu0
        %v664 = vpop.f32.mrb[0].mxu0
        %v665 = vadd.f32 %v605, %v664
        %v666 = vpop.f32.mrb[0].mxu0
        %667 = vdwg.mxu0
        %vm668 = vcmp.gt.f32.partialorder %v654, 0.0
        %vm669 = vcmp.gt.f32.partialorder %v657, 0.0
        %vm670 = vcmp.gt.f32.partialorder %v662, 0.0
        %vm671 = vcmp.gt.f32.partialorder %v665, 0.0
        %v672 = vmul.f32 %v654, 0.01
        %v673 = vmul.f32 %v657, 0.01
        %v674 = vmul.f32 %v662, 0.01
        %v675 = vmul.f32 %v665, 0.01
        %v676 = vsel %vm668, %v654, %v672
        %v677 = vsel %vm669, %v657, %v673
        %v678 = vsel %vm670, %v662, %v674
        %v679 = vsel %vm671, %v665, %v675
        %v680 = vmul.f32 %v676, %v404
        %v681 = vmul.f32 %v677, %v404
        %v682 = vmul.f32 %v678, %v404
        %v683 = vmul.f32 %v679, %v404
        %684 = vadd.xlane.f32.xlu0 %v680
        %v685 = vpop.xlane.xlu0 %684
        %686 = vadd.xlane.f32.xlu0 %v681
        %v687 = vpop.xlane.xlu0 %686
        %688 = vadd.xlane.f32.xlu0 %v682
        %v689 = vpop.xlane.xlu0 %688
        %690 = vadd.xlane.f32.xlu0 %v683
        %v691 = vpop.xlane.xlu0 %690
        %v692 = vld [vmem:[%s5] sm:$0xf]
        %v693 = vld [vmem:[%s5 + $0x4] sm:$0xf]
        %v694 = vld [vmem:[%s5 + $0x8] sm:$0xf]
        %v695 = vld [vmem:[%s5 + $0xc] sm:$0xf]
        %v696 = vpack.c.bf16 %v430, %v430
        %v697 = vld [vmem:[%s6] sm:$0xff]
        %v698 = vld [vmem:[%s6 + $0x8] sm:$0xff]
        %v699 = vld [vmem:[%s6 + $0x10] sm:$0xff]
        %v700 = vld [vmem:[%s6 + $0x18] sm:$0xff]
        %702 = vset.pattern.permute.xlu0 0
        %703 = vperm.xlu0 %702, %v697
        %v704 = vpop.permute.xlu0 %703
        %707 = vset.pattern.permute.xlu0 0
        %708 = vperm.xlu0 %707, %v698
        %v709 = vpop.permute.xlu0 %708
        %712 = vset.pattern.permute.xlu0 0
        %713 = vperm.xlu0 %712, %v699
        %v714 = vpop.permute.xlu0 %713
        %717 = vset.pattern.permute.xlu0 0
        %718 = vperm.xlu0 %717, %v700
        %v719 = vpop.permute.xlu0 %718
        %v725 = vunpack.c.l.b16 %v692
        %v726 = vunpack.c.l.b16 %v693
        %v727 = vunpack.c.l.b16 %v694
        %v728 = vunpack.c.l.b16 %v695
        %v729 = vpack.c.b16 %v726, %v725
        %v730 = vpack.c.b16 %v728, %v727
        %vm731 = vcmask 15360
        %v733 = vsel %vm731, %v729, 0
        %v736 = vsel %vm731, %v730, 0
        %vm738 = vcmask 1040384
        %v740 = vsel %vm738, %v696, 0
        %742 = vmatprep.subr.bf16.mxu0 0
        %743 = vmatpush1.bf16.msra.mxu0 %v740
        %744 = vmatprep.subr.bf16.mxu0 0
        %745 = vmatpush1.bf16.msra.mxu0 0
        %746 = vmatprep.subr.bf16.mxu0 0
        %747 = vmatpush1.bf16.msra.mxu0 0
        %748 = vmatprep.subr.bf16.mxu0 0
        %749 = vmatpush1.bf16.msra.mxu0 0
        %750 = vmatprep.subr.bf16.mxu0 0
        %751 = vmatpush1.bf16.msra.mxu0 0
        %752 = vmatprep.subr.bf16.mxu0 0
        %753 = vmatpush1.bf16.msra.mxu0 0
        %754 = vmatprep.subr.bf16.mxu0 0
        %755 = vmatpush1.bf16.msra.mxu0 0
        %756 = vmatprep.subr.bf16.mxu0 0
        %757 = vmatpush1.bf16.msra.mxu0 0
        %758 = vmatprep.subr.bf16.mxu0 0
        %759 = vmatpush1.bf16.msra.mxu0 0
        %760 = vmatprep.subr.bf16.mxu0 0
        %761 = vmatpush1.bf16.msra.mxu0 0
        %762 = vmatprep.subr.bf16.mxu0 0
        %763 = vmatpush1.bf16.msra.mxu0 0
        %764 = vmatprep.subr.bf16.mxu0 0
        %765 = vmatpush1.bf16.msra.mxu0 0
        %766 = vmatprep.subr.bf16.mxu0 0
        %767 = vmatpush1.bf16.msra.mxu0 0
        %768 = vmatprep.subr.bf16.mxu0 0
        %769 = vmatpush1.bf16.msra.mxu0 0
        %770 = vmatprep.subr.bf16.mxu0 0
        %771 = vmatpush1.bf16.msra.mxu0 0
        %772 = vmatprep.subr.bf16.mxu0 0
        %773 = vmatpush1.bf16.msra.mxu0 0
        %774 = vmatprep.mubr.bf16.mxu0 0
        %775 = vmatmul.mubr.bf16.gmra.mrb[0].mxu0 %v733
        %v776 = vpop.f32.mrb[0].mxu0
        %v777 = vadd.f32 %v704, %v776
        %v778 = vpop.f32.mrb[0].mxu0
        %v779 = vpop.f32.mrb[0].mxu0
        %v780 = vadd.f32 %v709, %v779
        %v781 = vpop.f32.mrb[0].mxu0
        %782 = vmatprep.mubr.bf16.mxu0 0
        %783 = vmatmul.mubr.bf16.gmra.mrb[0].mxu0 %v736
        %v784 = vpop.f32.mrb[0].mxu0
        %v785 = vadd.f32 %v714, %v784
        %v786 = vpop.f32.mrb[0].mxu0
        %v787 = vpop.f32.mrb[0].mxu0
        %v788 = vadd.f32 %v719, %v787
        %v789 = vpop.f32.mrb[0].mxu0
        %790 = vdwg.mxu0
        %vm791 = vcmp.gt.f32.partialorder %v777, 0.0
        %vm792 = vcmp.gt.f32.partialorder %v780, 0.0
        %vm793 = vcmp.gt.f32.partialorder %v785, 0.0
        %vm794 = vcmp.gt.f32.partialorder %v788, 0.0
        %v795 = vmul.f32 %v777, 0.01
        %v796 = vmul.f32 %v780, 0.01
        %v797 = vmul.f32 %v785, 0.01
        %v798 = vmul.f32 %v788, 0.01
        %v799 = vsel %vm791, %v777, %v795
        %v800 = vsel %vm792, %v780, %v796
        %v801 = vsel %vm793, %v785, %v797
        %v802 = vsel %vm794, %v788, %v798
        %803 = vrot.lane.b32.xlu0 %v799, 1
        %v804 = vpop.permute.xlu0 %803
        %805 = vrot.lane.b32.xlu0 %v800, 1
        %v806 = vpop.permute.xlu0 %805
        %807 = vrot.lane.b32.xlu0 %v801, 1
        %v808 = vpop.permute.xlu0 %807
        %809 = vrot.lane.b32.xlu0 %v802, 1
        %v810 = vpop.permute.xlu0 %809
        %v811 = vmul.f32 %v804, %v386
        %v812 = vmul.f32 %v806, %v386
        %v813 = vmul.f32 %v808, %v386
        %v814 = vmul.f32 %v810, %v386
        %815 = vrot.lane.b32.xlu0 %v799, 127
        %v816 = vpop.permute.xlu0 %815
        %817 = vrot.lane.b32.xlu0 %v800, 127
        %v818 = vpop.permute.xlu0 %817
        %819 = vrot.lane.b32.xlu0 %v801, 127
        %v820 = vpop.permute.xlu0 %819
        %821 = vrot.lane.b32.xlu0 %v802, 127
        %v822 = vpop.permute.xlu0 %821
        %v823 = vmul.f32 %v816, %v388
        %v824 = vmul.f32 %v818, %v388
        %v825 = vmul.f32 %v820, %v388
        %v826 = vmul.f32 %v822, %v388
        %v827 = vpack.c.bf16 %v812, %v811
        %v828 = vpack.c.bf16 %v814, %v813
        %v829 = vpack.c.bf16 %v800, %v799
        %v830 = vpack.c.bf16 %v802, %v801
        %v831 = vpack.c.bf16 %v824, %v823
        %v832 = vpack.c.bf16 %v826, %v825
        %v833 = vld [vmem:[%s7] sm:$0xf]
        %v834 = vld [vmem:[%s7 + $0x4] sm:$0xf]
        %v835 = vld [vmem:[%s7 + $0x8] sm:$0xf]
        %v836 = vld [vmem:[%s7 + $0xc] sm:$0xf]
        %v837 = vld [vmem:[%s8] sm:$0xff]
        %v838 = vld [vmem:[%s8 + $0x8] sm:$0xff]
        %v839 = vld [vmem:[%s8 + $0x10] sm:$0xff]
        %v840 = vld [vmem:[%s8 + $0x18] sm:$0xff]
        %842 = vset.pattern.permute.xlu0 0
        %843 = vperm.xlu0 %842, %v837
        %v844 = vpop.permute.xlu0 %843
        %847 = vset.pattern.permute.xlu0 0
        %848 = vperm.xlu0 %847, %v838
        %v849 = vpop.permute.xlu0 %848
        %852 = vset.pattern.permute.xlu0 0
        %853 = vperm.xlu0 %852, %v839
        %v854 = vpop.permute.xlu0 %853
        %857 = vset.pattern.permute.xlu0 0
        %858 = vperm.xlu0 %857, %v840
        %v859 = vpop.permute.xlu0 %858
        %v865 = vunpack.c.l.b16 %v833
        %v866 = vunpack.c.l.b16 %v834
        %v867 = vunpack.c.l.b16 %v835
        %v868 = vunpack.c.l.b16 %v836
        %v869 = vpack.c.b16 %v866, %v865
        %v870 = vpack.c.b16 %v868, %v867
        %vm871 = vcmask 785408
        %v873 = vsel %vm871, %v869, 0
        %v876 = vsel %vm871, %v870, 0
        %878 = vmatprep.subr.bf16.mxu0 0
        %879 = vmatpush1.bf16.msra.mxu0 %v827
        %880 = vmatprep.subr.bf16.mxu0 0
        %881 = vmatpush1.bf16.msra.mxu0 %v828
        %882 = vmatprep.subr.bf16.mxu0 0
        %883 = vmatpush1.bf16.msra.mxu0 %v829
        %884 = vmatprep.subr.bf16.mxu0 0
        %885 = vmatpush1.bf16.msra.mxu0 %v830
        %886 = vmatprep.subr.bf16.mxu0 0
        %887 = vmatpush1.bf16.msra.mxu0 %v831
        %888 = vmatprep.subr.bf16.mxu0 0
        %889 = vmatpush1.bf16.msra.mxu0 %v832
        %890 = vmatprep.subr.bf16.mxu0 0
        %891 = vmatpush1.bf16.msra.mxu0 0
        %892 = vmatprep.subr.bf16.mxu0 0
        %893 = vmatpush1.bf16.msra.mxu0 0
        %894 = vmatprep.subr.bf16.mxu0 0
        %895 = vmatpush1.bf16.msra.mxu0 0
        %896 = vmatprep.subr.bf16.mxu0 0
        %897 = vmatpush1.bf16.msra.mxu0 0
        %898 = vmatprep.subr.bf16.mxu0 0
        %899 = vmatpush1.bf16.msra.mxu0 0
        %900 = vmatprep.subr.bf16.mxu0 0
        %901 = vmatpush1.bf16.msra.mxu0 0
        %902 = vmatprep.subr.bf16.mxu0 0
        %903 = vmatpush1.bf16.msra.mxu0 0
        %904 = vmatprep.subr.bf16.mxu0 0
        %905 = vmatpush1.bf16.msra.mxu0 0
        %906 = vmatprep.subr.bf16.mxu0 0
        %907 = vmatpush1.bf16.msra.mxu0 0
        %908 = vmatprep.subr.bf16.mxu0 0
        %909 = vmatpush1.bf16.msra.mxu0 0
        %910 = vmatprep.mubr.bf16.mxu0 0
        %911 = vmatmul.mubr.bf16.gmra.mrb[0].mxu0 %v873
        %v912 = vpop.f32.mrb[0].mxu0
        %v913 = vadd.f32 %v844, %v912
        %v914 = vpop.f32.mrb[0].mxu0
        %v915 = vpop.f32.mrb[0].mxu0
        %v916 = vadd.f32 %v849, %v915
        %v917 = vpop.f32.mrb[0].mxu0
        %918 = vmatprep.mubr.bf16.mxu0 0
        %919 = vmatmul.mubr.bf16.gmra.mrb[0].mxu0 %v876
        %v920 = vpop.f32.mrb[0].mxu0
        %v921 = vadd.f32 %v854, %v920
        %v922 = vpop.f32.mrb[0].mxu0
        %v923 = vpop.f32.mrb[0].mxu0
        %v924 = vadd.f32 %v859, %v923
        %v925 = vpop.f32.mrb[0].mxu0
        %926 = vdwg.mxu0
        %vm927 = vcmp.gt.f32.partialorder %v913, 0.0
        %vm928 = vcmp.gt.f32.partialorder %v916, 0.0
        %vm929 = vcmp.gt.f32.partialorder %v921, 0.0
        %vm930 = vcmp.gt.f32.partialorder %v924, 0.0
        %v931 = vmul.f32 %v913, 0.01
        %v932 = vmul.f32 %v916, 0.01
        %v933 = vmul.f32 %v921, 0.01
        %v934 = vmul.f32 %v924, 0.01
        %v935 = vsel %vm927, %v913, %v931
        %v936 = vsel %vm928, %v916, %v932
        %v937 = vsel %vm929, %v921, %v933
        %v938 = vsel %vm930, %v924, %v934
        %939 = vrot.lane.b32.xlu0 %v935, 1
        %v940 = vpop.permute.xlu0 %939
        %941 = vrot.lane.b32.xlu0 %v936, 1
        %v942 = vpop.permute.xlu0 %941
        %943 = vrot.lane.b32.xlu0 %v937, 1
        %v944 = vpop.permute.xlu0 %943
        %945 = vrot.lane.b32.xlu0 %v938, 1
        %v946 = vpop.permute.xlu0 %945
        %v947 = vmul.f32 %v940, %v386
        %v948 = vmul.f32 %v942, %v386
        %v949 = vmul.f32 %v944, %v386
        %v950 = vmul.f32 %v946, %v386
        %951 = vrot.lane.b32.xlu0 %v935, 127
        %v952 = vpop.permute.xlu0 %951
        %953 = vrot.lane.b32.xlu0 %v936, 127
        %v954 = vpop.permute.xlu0 %953
        %955 = vrot.lane.b32.xlu0 %v937, 127
        %v956 = vpop.permute.xlu0 %955
        %957 = vrot.lane.b32.xlu0 %v938, 127
        %v958 = vpop.permute.xlu0 %957
        %v959 = vmul.f32 %v952, %v388
        %v960 = vmul.f32 %v954, %v388
        %v961 = vmul.f32 %v956, %v388
        %v962 = vmul.f32 %v958, %v388
        %v963 = vpack.c.bf16 %v948, %v947
        %v964 = vpack.c.bf16 %v950, %v949
        %v965 = vpack.c.bf16 %v936, %v935
        %v966 = vpack.c.bf16 %v938, %v937
        %v967 = vpack.c.bf16 %v960, %v959
        %v968 = vpack.c.bf16 %v962, %v961
        %v969 = vld [vmem:[%s9] sm:$0xf]
        %v970 = vld [vmem:[%s9 + $0x4] sm:$0xf]
        %v971 = vld [vmem:[%s9 + $0x8] sm:$0xf]
        %v972 = vld [vmem:[%s9 + $0xc] sm:$0xf]
        %v973 = vld [vmem:[%s10] sm:$0xff]
        %v974 = vld [vmem:[%s10 + $0x8] sm:$0xff]
        %v975 = vld [vmem:[%s10 + $0x10] sm:$0xff]
        %v976 = vld [vmem:[%s10 + $0x18] sm:$0xff]
        %978 = vset.pattern.permute.xlu0 0
        %979 = vperm.xlu0 %978, %v973
        %v980 = vpop.permute.xlu0 %979
        %983 = vset.pattern.permute.xlu0 0
        %984 = vperm.xlu0 %983, %v974
        %v985 = vpop.permute.xlu0 %984
        %988 = vset.pattern.permute.xlu0 0
        %989 = vperm.xlu0 %988, %v975
        %v990 = vpop.permute.xlu0 %989
        %993 = vset.pattern.permute.xlu0 0
        %994 = vperm.xlu0 %993, %v976
        %v995 = vpop.permute.xlu0 %994
        %v1001 = vunpack.c.l.b16 %v969
        %v1002 = vunpack.c.l.b16 %v970
        %v1003 = vunpack.c.l.b16 %v971
        %v1004 = vunpack.c.l.b16 %v972
        %v1005 = vpack.c.b16 %v1002, %v1001
        %v1006 = vpack.c.b16 %v1004, %v1003
        %v1008 = vsel %vm871, %v1005, 0
        %v1011 = vsel %vm871, %v1006, 0
        %1013 = vmatprep.subr.bf16.mxu0 0
        %1014 = vmatpush1.bf16.msra.mxu0 %v963
        %1015 = vmatprep.subr.bf16.mxu0 0
        %1016 = vmatpush1.bf16.msra.mxu0 %v964
        %1017 = vmatprep.subr.bf16.mxu0 0
        %1018 = vmatpush1.bf16.msra.mxu0 %v965
        %1019 = vmatprep.subr.bf16.mxu0 0
        %1020 = vmatpush1.bf16.msra.mxu0 %v966
        %1021 = vmatprep.subr.bf16.mxu0 0
        %1022 = vmatpush1.bf16.msra.mxu0 %v967
        %1023 = vmatprep.subr.bf16.mxu0 0
        %1024 = vmatpush1.bf16.msra.mxu0 %v968
        %1025 = vmatprep.subr.bf16.mxu0 0
        %1026 = vmatpush1.bf16.msra.mxu0 0
        %1027 = vmatprep.subr.bf16.mxu0 0
        %1028 = vmatpush1.bf16.msra.mxu0 0
        %1029 = vmatprep.subr.bf16.mxu0 0
        %1030 = vmatpush1.bf16.msra.mxu0 0
        %1031 = vmatprep.subr.bf16.mxu0 0
        %1032 = vmatpush1.bf16.msra.mxu0 0
        %1033 = vmatprep.subr.bf16.mxu0 0
        %1034 = vmatpush1.bf16.msra.mxu0 0
        %1035 = vmatprep.subr.bf16.mxu0 0
        %1036 = vmatpush1.bf16.msra.mxu0 0
        %1037 = vmatprep.subr.bf16.mxu0 0
        %1038 = vmatpush1.bf16.msra.mxu0 0
        %1039 = vmatprep.subr.bf16.mxu0 0
        %1040 = vmatpush1.bf16.msra.mxu0 0
        %1041 = vmatprep.subr.bf16.mxu0 0
        %1042 = vmatpush1.bf16.msra.mxu0 0
        %1043 = vmatprep.subr.bf16.mxu0 0
        %1044 = vmatpush1.bf16.msra.mxu0 0
        %1045 = vmatprep.mubr.bf16.mxu0 0
        %1046 = vmatmul.mubr.bf16.gmra.mrb[0].mxu0 %v1008
        %v1047 = vpop.f32.mrb[0].mxu0
        %v1048 = vadd.f32 %v980, %v1047
        %v1049 = vpop.f32.mrb[0].mxu0
        %v1050 = vpop.f32.mrb[0].mxu0
        %v1051 = vadd.f32 %v985, %v1050
        %v1052 = vpop.f32.mrb[0].mxu0
        %1053 = vmatprep.mubr.bf16.mxu0 0
        %1054 = vmatmul.mubr.bf16.gmra.mrb[0].mxu0 %v1011
        %v1055 = vpop.f32.mrb[0].mxu0
        %v1056 = vadd.f32 %v990, %v1055
        %v1057 = vpop.f32.mrb[0].mxu0
        %v1058 = vpop.f32.mrb[0].mxu0
        %v1059 = vadd.f32 %v995, %v1058
        %v1060 = vpop.f32.mrb[0].mxu0
        %1061 = vdwg.mxu0
        %v1062 = vadd.f32 %v799, %v1048
        %v1063 = vadd.f32 %v800, %v1051
        %v1064 = vadd.f32 %v801, %v1056
        %v1065 = vadd.f32 %v802, %v1059
        %vm1066 = vcmp.gt.f32.partialorder %v1062, 0.0
        %vm1067 = vcmp.gt.f32.partialorder %v1063, 0.0
        %vm1068 = vcmp.gt.f32.partialorder %v1064, 0.0
        %vm1069 = vcmp.gt.f32.partialorder %v1065, 0.0
        %v1070 = vmul.f32 %v1062, 0.01
        %v1071 = vmul.f32 %v1063, 0.01
        %v1072 = vmul.f32 %v1064, 0.01
        %v1073 = vmul.f32 %v1065, 0.01
        %v1074 = vsel %vm1066, %v1062, %v1070
        %v1075 = vsel %vm1067, %v1063, %v1071
        %v1076 = vsel %vm1068, %v1064, %v1072
        %v1077 = vsel %vm1069, %v1065, %v1073
        %1078 = vadd.xlane.f32.xlu0 %v1074
        %v1079 = vpop.xlane.xlu0 %1078
        %1080 = vadd.xlane.f32.xlu0 %v1075
        %v1081 = vpop.xlane.xlu0 %1080
        %1082 = vadd.xlane.f32.xlu0 %v1076
        %v1083 = vpop.xlane.xlu0 %1082
        %1084 = vadd.xlane.f32.xlu0 %v1077
        %v1085 = vpop.xlane.xlu0 %1084
        %v1086 = vmul.f32 %v1079, 0.0078125
        %v1087 = vmul.f32 %v1081, 0.0078125
        %v1088 = vmul.f32 %v1083, 0.0078125
        %v1089 = vmul.f32 %v1085, 0.0078125
        %1091 = vset.pattern.permute.xlu0 0
        %1092 = vperm.xlu0 %1091, %v685
        %v1093 = vpop.permute.xlu0 %1092
        %1096 = vset.pattern.permute.xlu0 0
        %1097 = vperm.xlu0 %1096, %v687
        %v1098 = vpop.permute.xlu0 %1097
        %1101 = vset.pattern.permute.xlu0 0
        %1102 = vperm.xlu0 %1101, %v689
        %v1103 = vpop.permute.xlu0 %1102
        %1106 = vset.pattern.permute.xlu0 0
        %1107 = vperm.xlu0 %1106, %v691
        %v1108 = vpop.permute.xlu0 %1107
        %1111 = vset.pattern.permute.xlu0 0
        %1112 = vperm.xlu0 %1111, %v1086
        %v1113 = vpop.permute.xlu0 %1112
        %1116 = vset.pattern.permute.xlu0 0
        %1117 = vperm.xlu0 %1116, %v1087
        %v1118 = vpop.permute.xlu0 %1117
        %1121 = vset.pattern.permute.xlu0 0
        %1122 = vperm.xlu0 %1121, %v1088
        %v1123 = vpop.permute.xlu0 %1122
        %1126 = vset.pattern.permute.xlu0 0
        %1127 = vperm.xlu0 %1126, %v1089
        %v1128 = vpop.permute.xlu0 %1127
        %v1130 = vmul.f32 %v1093, %v422
        %v1131 = vmul.f32 %v1098, %v423
        %v1132 = vmul.f32 %v1103, %v424
        %v1133 = vmul.f32 %v1108, %v425
        %v1134 = vmul.f32 %v1113, %v426
        %v1135 = vmul.f32 %v1118, %v427
        %v1136 = vmul.f32 %v1123, %v428
        %v1137 = vmul.f32 %v1128, %v429
        %vm1138 = vcmask 523264
        %v1139 = vsel %vm1138, %v1130, 0.0
        %v1140 = vsel %vm1138, %v1131, 0.0
        %v1141 = vadd.f32 %v1139, %v1140
        %v1142 = vsel %vm1138, %v1132, 0.0
        %v1143 = vadd.f32 %v1141, %v1142
        %v1144 = vsel %vm1138, %v1133, 0.0
        %v1145 = vadd.f32 %v1143, %v1144
        %v1146 = vsel %vm1138, %v1134, 0.0
        %v1147 = vadd.f32 %v1145, %v1146
        %v1148 = vsel %vm1138, %v1135, 0.0
        %v1149 = vadd.f32 %v1147, %v1148
        %v1150 = vsel %vm1138, %v1136, 0.0
        %v1151 = vadd.f32 %v1149, %v1150
        %v1152 = vsel %vm1138, %v1137, 0.0
        %v1153 = vadd.f32 %v1151, %v1152
        %v1154 = vrot.slane %v1153, 4
        %v1155 = vadd.f32 %v1153, %v1154
        %v1156 = vrot.slane %v1155, 2
        %v1157 = vadd.f32 %v1155, %v1156
        %v1158 = vrot.slane %v1157, 1
        %v1159 = vadd.f32 %v1157, %v1158
        %v1161 = vrot.slane %v430, 2
        %1163 = vrot.lane.b32.xlu0 %v1161, 127
        %v1164 = vpop.permute.xlu0 %1163
        %1165 = vrot.lane.b32.xlu0 %v1161, 126
        %v1166 = vpop.permute.xlu0 %1165
        %1167 = vrot.lane.b32.xlu0 %v1161, 125
        %v1168 = vpop.permute.xlu0 %1167
        %1169 = vrot.lane.b32.xlu0 %v1161, 124
        %v1170 = vpop.permute.xlu0 %1169
        %1171 = vrot.lane.b32.xlu0 %v1161, 123
        %v1172 = vpop.permute.xlu0 %1171
        %1173 = vrot.lane.b32.xlu0 %v1161, 122
        %v1174 = vpop.permute.xlu0 %1173
        %1175 = vrot.lane.b32.xlu0 %v1161, 121
        %v1176 = vpop.permute.xlu0 %1175
        %v1178 = vrot.slane %v1164, 6
        %v1181 = vrot.slane %v1166, 4
        %v1184 = vrot.slane %v1168, 2
        %v1187 = vrot.slane %v1172, 6
        %v1190 = vrot.slane %v1174, 4
        %v1193 = vrot.slane %v1176, 2
        %v1195 = vsel %vm463, %v1161, %v1178
        %v1196 = vsel %vm465, %v1195, %v1181
        %v1197 = vsel %vm467, %v1196, %v1184
        %v1198 = vsel %vm463, %v1170, %v1187
        %v1199 = vsel %vm465, %v1198, %v1190
        %v1200 = vsel %vm467, %v1199, %v1193
        %v1201 = vpack.c.bf16 %v1200, %v1197
        %1202 = vmatprep.subr.bf16.mxu0 0
        %1203 = vmatpush1.bf16.msra.mxu0 %v1201
        %1204 = vmatprep.subr.bf16.mxu0 0
        %1205 = vmatpush1.bf16.msra.mxu0 0
        %1206 = vmatprep.subr.bf16.mxu0 0
        %1207 = vmatpush1.bf16.msra.mxu0 0
        %1208 = vmatprep.subr.bf16.mxu0 0
        %1209 = vmatpush1.bf16.msra.mxu0 0
        %1210 = vmatprep.subr.bf16.mxu0 0
        %1211 = vmatpush1.bf16.msra.mxu0 0
        %1212 = vmatprep.subr.bf16.mxu0 0
        %1213 = vmatpush1.bf16.msra.mxu0 0
        %1214 = vmatprep.subr.bf16.mxu0 0
        %1215 = vmatpush1.bf16.msra.mxu0 0
        %1216 = vmatprep.subr.bf16.mxu0 0
        %1217 = vmatpush1.bf16.msra.mxu0 0
        %1218 = vmatprep.subr.bf16.mxu0 0
        %1219 = vmatpush1.bf16.msra.mxu0 0
        %1220 = vmatprep.subr.bf16.mxu0 0
        %1221 = vmatpush1.bf16.msra.mxu0 0
        %1222 = vmatprep.subr.bf16.mxu0 0
        %1223 = vmatpush1.bf16.msra.mxu0 0
        %1224 = vmatprep.subr.bf16.mxu0 0
        %1225 = vmatpush1.bf16.msra.mxu0 0
        %1226 = vmatprep.subr.bf16.mxu0 0
        %1227 = vmatpush1.bf16.msra.mxu0 0
        %1228 = vmatprep.subr.bf16.mxu0 0
        %1229 = vmatpush1.bf16.msra.mxu0 0
        %1230 = vmatprep.subr.bf16.mxu0 0
        %1231 = vmatpush1.bf16.msra.mxu0 0
        %1232 = vmatprep.subr.bf16.mxu0 0
        %1233 = vmatpush1.bf16.msra.mxu0 0
        %1234 = vmatprep.mubr.bf16.mxu0 0
        %1235 = vmatmul.mubr.bf16.gmra.mrb[0].mxu0 %v494
        %v1236 = vpop.f32.mrb[0].mxu0
        %v1237 = vadd.f32 %v480, %v1236
        %v1238 = vpop.f32.mrb[0].mxu0
        %v1239 = vpop.f32.mrb[0].mxu0
        %v1240 = vadd.f32 %v485, %v1239
        %v1241 = vpop.f32.mrb[0].mxu0
        %1242 = vdwg.mxu0
        %vm1243 = vcmp.gt.f32.partialorder %v1237, 0.0
        %vm1244 = vcmp.gt.f32.partialorder %v1240, 0.0
        %v1245 = vmul.f32 %v1237, 0.01
        %v1246 = vmul.f32 %v1240, 0.01
        %v1247 = vsel %vm1243, %v1237, %v1245
        %v1248 = vsel %vm1244, %v1240, %v1246
        %1249 = vrot.lane.b32.xlu0 %v1247, 124
        %v1250 = vpop.permute.xlu0 %1249
        %1251 = vrot.lane.b32.xlu0 %v1248, 124
        %v1252 = vpop.permute.xlu0 %1251
        %1253 = vrot.lane.b32.xlu0 %v1247, 120
        %v1254 = vpop.permute.xlu0 %1253
        %1255 = vrot.lane.b32.xlu0 %v1248, 120
        %v1256 = vpop.permute.xlu0 %1255
        %1257 = vrot.lane.b32.xlu0 %v1247, 116
        %v1258 = vpop.permute.xlu0 %1257
        %1259 = vrot.lane.b32.xlu0 %v1248, 116
        %v1260 = vpop.permute.xlu0 %1259
        %1261 = vrot.lane.b32.xlu0 %v1247, 112
        %v1262 = vpop.permute.xlu0 %1261
        %1263 = vrot.lane.b32.xlu0 %v1248, 112
        %v1264 = vpop.permute.xlu0 %1263
        %1265 = vrot.lane.b32.xlu0 %v1247, 108
        %v1266 = vpop.permute.xlu0 %1265
        %1267 = vrot.lane.b32.xlu0 %v1248, 108
        %v1268 = vpop.permute.xlu0 %1267
        %1269 = vrot.lane.b32.xlu0 %v1247, 104
        %v1270 = vpop.permute.xlu0 %1269
        %1271 = vrot.lane.b32.xlu0 %v1248, 104
        %v1272 = vpop.permute.xlu0 %1271
        %1273 = vrot.lane.b32.xlu0 %v1247, 100
        %v1274 = vpop.permute.xlu0 %1273
        %1275 = vrot.lane.b32.xlu0 %v1248, 100
        %v1276 = vpop.permute.xlu0 %1275
        %v1277 = vpack.c.bf16 %v1248, %v1247
        %v1278 = vpack.c.bf16 %v1252, %v1250
        %v1279 = vpack.c.bf16 %v1256, %v1254
        %v1280 = vpack.c.bf16 %v1260, %v1258
        %v1281 = vpack.c.bf16 %v1264, %v1262
        %v1282 = vpack.c.bf16 %v1268, %v1266
        %v1283 = vpack.c.bf16 %v1272, %v1270
        %v1284 = vpack.c.bf16 %v1276, %v1274
        %1285 = vmatprep.subr.bf16.mxu0 0
        %1286 = vmatpush1.bf16.msra.mxu0 %v1277
        %1287 = vmatprep.subr.bf16.mxu0 0
        %1288 = vmatpush1.bf16.msra.mxu0 %v1278
        %1289 = vmatprep.subr.bf16.mxu0 0
        %1290 = vmatpush1.bf16.msra.mxu0 %v1279
        %1291 = vmatprep.subr.bf16.mxu0 0
        %1292 = vmatpush1.bf16.msra.mxu0 %v1280
        %1293 = vmatprep.subr.bf16.mxu0 0
        %1294 = vmatpush1.bf16.msra.mxu0 %v1281
        %1295 = vmatprep.subr.bf16.mxu0 0
        %1296 = vmatpush1.bf16.msra.mxu0 %v1282
        %1297 = vmatprep.subr.bf16.mxu0 0
        %1298 = vmatpush1.bf16.msra.mxu0 %v1283
        %1299 = vmatprep.subr.bf16.mxu0 0
        %1300 = vmatpush1.bf16.msra.mxu0 %v1284
        %1301 = vmatprep.subr.bf16.mxu0 0
        %1302 = vmatpush1.bf16.msra.mxu0 0
        %1303 = vmatprep.subr.bf16.mxu0 0
        %1304 = vmatpush1.bf16.msra.mxu0 0
        %1305 = vmatprep.subr.bf16.mxu0 0
        %1306 = vmatpush1.bf16.msra.mxu0 0
        %1307 = vmatprep.subr.bf16.mxu0 0
        %1308 = vmatpush1.bf16.msra.mxu0 0
        %1309 = vmatprep.subr.bf16.mxu0 0
        %1310 = vmatpush1.bf16.msra.mxu0 0
        %1311 = vmatprep.subr.bf16.mxu0 0
        %1312 = vmatpush1.bf16.msra.mxu0 0
        %1313 = vmatprep.subr.bf16.mxu0 0
        %1314 = vmatpush1.bf16.msra.mxu0 0
        %1315 = vmatprep.subr.bf16.mxu0 0
        %1316 = vmatpush1.bf16.msra.mxu0 0
        %1317 = vmatprep.mubr.bf16.mxu0 0
        %1318 = vmatmul.mubr.bf16.gmra.mrb[0].mxu0 %v615
        %v1319 = vpop.f32.mrb[0].mxu0
        %v1320 = vadd.f32 %v590, %v1319
        %v1321 = vpop.f32.mrb[0].mxu0
        %v1322 = vpop.f32.mrb[0].mxu0
        %v1323 = vadd.f32 %v595, %v1322
        %v1324 = vpop.f32.mrb[0].mxu0
        %1325 = vmatprep.mubr.bf16.mxu0 0
        %1326 = vmatmul.mubr.bf16.gmra.mrb[0].mxu0 %v616
        %v1327 = vpop.f32.mrb[0].mxu0
        %v1328 = vadd.f32 %v600, %v1327
        %v1329 = vpop.f32.mrb[0].mxu0
        %v1330 = vpop.f32.mrb[0].mxu0
        %v1331 = vadd.f32 %v605, %v1330
        %v1332 = vpop.f32.mrb[0].mxu0
        %1333 = vdwg.mxu0
        %vm1334 = vcmp.gt.f32.partialorder %v1320, 0.0
        %vm1335 = vcmp.gt.f32.partialorder %v1323, 0.0
        %vm1336 = vcmp.gt.f32.partialorder %v1328, 0.0
        %vm1337 = vcmp.gt.f32.partialorder %v1331, 0.0
        %v1338 = vmul.f32 %v1320, 0.01
        %v1339 = vmul.f32 %v1323, 0.01
        %v1340 = vmul.f32 %v1328, 0.01
        %v1341 = vmul.f32 %v1331, 0.01
        %v1342 = vsel %vm1334, %v1320, %v1338
        %v1343 = vsel %vm1335, %v1323, %v1339
        %v1344 = vsel %vm1336, %v1328, %v1340
        %v1345 = vsel %vm1337, %v1331, %v1341
        %v1346 = vmul.f32 %v1342, %v404
        %v1347 = vmul.f32 %v1343, %v404
        %v1348 = vmul.f32 %v1344, %v404
        %v1349 = vmul.f32 %v1345, %v404
        %1350 = vadd.xlane.f32.xlu0 %v1346
        %v1351 = vpop.xlane.xlu0 %1350
        %1352 = vadd.xlane.f32.xlu0 %v1347
        %v1353 = vpop.xlane.xlu0 %1352
        %1354 = vadd.xlane.f32.xlu0 %v1348
        %v1355 = vpop.xlane.xlu0 %1354
        %1356 = vadd.xlane.f32.xlu0 %v1349
        %v1357 = vpop.xlane.xlu0 %1356
        %v1359 = vrot.slane %v696, 1
        %v1361 = vsel %vm738, %v1359, 0
        %1363 = vmatprep.subr.bf16.mxu0 0
        %1364 = vmatpush1.bf16.msra.mxu0 %v1361
        %1365 = vmatprep.subr.bf16.mxu0 0
        %1366 = vmatpush1.bf16.msra.mxu0 0
        %1367 = vmatprep.subr.bf16.mxu0 0
        %1368 = vmatpush1.bf16.msra.mxu0 0
        %1369 = vmatprep.subr.bf16.mxu0 0
        %1370 = vmatpush1.bf16.msra.mxu0 0
        %1371 = vmatprep.subr.bf16.mxu0 0
        %1372 = vmatpush1.bf16.msra.mxu0 0
        %1373 = vmatprep.subr.bf16.mxu0 0
        %1374 = vmatpush1.bf16.msra.mxu0 0
        %1375 = vmatprep.subr.bf16.mxu0 0
        %1376 = vmatpush1.bf16.msra.mxu0 0
        %1377 = vmatprep.subr.bf16.mxu0 0
        %1378 = vmatpush1.bf16.msra.mxu0 0
        %1379 = vmatprep.subr.bf16.mxu0 0
        %1380 = vmatpush1.bf16.msra.mxu0 0
        %1381 = vmatprep.subr.bf16.mxu0 0
        %1382 = vmatpush1.bf16.msra.mxu0 0
        %1383 = vmatprep.subr.bf16.mxu0 0
        %1384 = vmatpush1.bf16.msra.mxu0 0
        %1385 = vmatprep.subr.bf16.mxu0 0
        %1386 = vmatpush1.bf16.msra.mxu0 0
        %1387 = vmatprep.subr.bf16.mxu0 0
        %1388 = vmatpush1.bf16.msra.mxu0 0
        %1389 = vmatprep.subr.bf16.mxu0 0
        %1390 = vmatpush1.bf16.msra.mxu0 0
        %1391 = vmatprep.subr.bf16.mxu0 0
        %1392 = vmatpush1.bf16.msra.mxu0 0
        %1393 = vmatprep.subr.bf16.mxu0 0
        %1394 = vmatpush1.bf16.msra.mxu0 0
        %1395 = vmatprep.mubr.bf16.mxu0 0
        %1396 = vmatmul.mubr.bf16.gmra.mrb[0].mxu0 %v733
        %v1397 = vpop.f32.mrb[0].mxu0
        %v1398 = vadd.f32 %v704, %v1397
        %v1399 = vpop.f32.mrb[0].mxu0
        %v1400 = vpop.f32.mrb[0].mxu0
        %v1401 = vadd.f32 %v709, %v1400
        %v1402 = vpop.f32.mrb[0].mxu0
        %1403 = vmatprep.mubr.bf16.mxu0 0
        %1404 = vmatmul.mubr.bf16.gmra.mrb[0].mxu0 %v736
        %v1405 = vpop.f32.mrb[0].mxu0
        %v1406 = vadd.f32 %v714, %v1405
        %v1407 = vpop.f32.mrb[0].mxu0
        %v1408 = vpop.f32.mrb[0].mxu0
        %v1409 = vadd.f32 %v719, %v1408
        %v1410 = vpop.f32.mrb[0].mxu0
        %1411 = vdwg.mxu0
        %vm1412 = vcmp.gt.f32.partialorder %v1398, 0.0
        %vm1413 = vcmp.gt.f32.partialorder %v1401, 0.0
        %vm1414 = vcmp.gt.f32.partialorder %v1406, 0.0
        %vm1415 = vcmp.gt.f32.partialorder %v1409, 0.0
        %v1416 = vmul.f32 %v1398, 0.01
        %v1417 = vmul.f32 %v1401, 0.01
        %v1418 = vmul.f32 %v1406, 0.01
        %v1419 = vmul.f32 %v1409, 0.01
        %v1420 = vsel %vm1412, %v1398, %v1416
        %v1421 = vsel %vm1413, %v1401, %v1417
        %v1422 = vsel %vm1414, %v1406, %v1418
        %v1423 = vsel %vm1415, %v1409, %v1419
        %1424 = vrot.lane.b32.xlu0 %v1420, 1
        %v1425 = vpop.permute.xlu0 %1424
        %1426 = vrot.lane.b32.xlu0 %v1421, 1
        %v1427 = vpop.permute.xlu0 %1426
        %1428 = vrot.lane.b32.xlu0 %v1422, 1
        %v1429 = vpop.permute.xlu0 %1428
        %1430 = vrot.lane.b32.xlu0 %v1423, 1
        %v1431 = vpop.permute.xlu0 %1430
        %v1432 = vmul.f32 %v1425, %v386
        %v1433 = vmul.f32 %v1427, %v386
        %v1434 = vmul.f32 %v1429, %v386
        %v1435 = vmul.f32 %v1431, %v386
        %1436 = vrot.lane.b32.xlu0 %v1420, 127
        %v1437 = vpop.permute.xlu0 %1436
        %1438 = vrot.lane.b32.xlu0 %v1421, 127
        %v1439 = vpop.permute.xlu0 %1438
        %1440 = vrot.lane.b32.xlu0 %v1422, 127
        %v1441 = vpop.permute.xlu0 %1440
        %1442 = vrot.lane.b32.xlu0 %v1423, 127
        %v1443 = vpop.permute.xlu0 %1442
        %v1444 = vmul.f32 %v1437, %v388
        %v1445 = vmul.f32 %v1439, %v388
        %v1446 = vmul.f32 %v1441, %v388
        %v1447 = vmul.f32 %v1443, %v388
        %v1448 = vpack.c.bf16 %v1433, %v1432
        %v1449 = vpack.c.bf16 %v1435, %v1434
        %v1450 = vpack.c.bf16 %v1421, %v1420
        %v1451 = vpack.c.bf16 %v1423, %v1422
        %v1452 = vpack.c.bf16 %v1445, %v1444
        %v1453 = vpack.c.bf16 %v1447, %v1446
        %1454 = vmatprep.subr.bf16.mxu0 0
        %1455 = vmatpush1.bf16.msra.mxu0 %v1448
        %1456 = vmatprep.subr.bf16.mxu0 0
        %1457 = vmatpush1.bf16.msra.mxu0 %v1449
        %1458 = vmatprep.subr.bf16.mxu0 0
        %1459 = vmatpush1.bf16.msra.mxu0 %v1450
        %1460 = vmatprep.subr.bf16.mxu0 0
        %1461 = vmatpush1.bf16.msra.mxu0 %v1451
        %1462 = vmatprep.subr.bf16.mxu0 0
        %1463 = vmatpush1.bf16.msra.mxu0 %v1452
        %1464 = vmatprep.subr.bf16.mxu0 0
        %1465 = vmatpush1.bf16.msra.mxu0 %v1453
        %1466 = vmatprep.subr.bf16.mxu0 0
        %1467 = vmatpush1.bf16.msra.mxu0 0
        %1468 = vmatprep.subr.bf16.mxu0 0
        %1469 = vmatpush1.bf16.msra.mxu0 0
        %1470 = vmatprep.subr.bf16.mxu0 0
        %1471 = vmatpush1.bf16.msra.mxu0 0
        %1472 = vmatprep.subr.bf16.mxu0 0
        %1473 = vmatpush1.bf16.msra.mxu0 0
        %1474 = vmatprep.subr.bf16.mxu0 0
        %1475 = vmatpush1.bf16.msra.mxu0 0
        %1476 = vmatprep.subr.bf16.mxu0 0
        %1477 = vmatpush1.bf16.msra.mxu0 0
        %1478 = vmatprep.subr.bf16.mxu0 0
        %1479 = vmatpush1.bf16.msra.mxu0 0
        %1480 = vmatprep.subr.bf16.mxu0 0
        %1481 = vmatpush1.bf16.msra.mxu0 0
        %1482 = vmatprep.subr.bf16.mxu0 0
        %1483 = vmatpush1.bf16.msra.mxu0 0
        %1484 = vmatprep.subr.bf16.mxu0 0
        %1485 = vmatpush1.bf16.msra.mxu0 0
        %1486 = vmatprep.mubr.bf16.mxu0 0
        %1487 = vmatmul.mubr.bf16.gmra.mrb[0].mxu0 %v873
        %v1488 = vpop.f32.mrb[0].mxu0
        %v1489 = vadd.f32 %v844, %v1488
        %v1490 = vpop.f32.mrb[0].mxu0
        %v1491 = vpop.f32.mrb[0].mxu0
        %v1492 = vadd.f32 %v849, %v1491
        %v1493 = vpop.f32.mrb[0].mxu0
        %1494 = vmatprep.mubr.bf16.mxu0 0
        %1495 = vmatmul.mubr.bf16.gmra.mrb[0].mxu0 %v876
        %v1496 = vpop.f32.mrb[0].mxu0
        %v1497 = vadd.f32 %v854, %v1496
        %v1498 = vpop.f32.mrb[0].mxu0
        %v1499 = vpop.f32.mrb[0].mxu0
        %v1500 = vadd.f32 %v859, %v1499
        %v1501 = vpop.f32.mrb[0].mxu0
        %1502 = vdwg.mxu0
        %vm1503 = vcmp.gt.f32.partialorder %v1489, 0.0
        %vm1504 = vcmp.gt.f32.partialorder %v1492, 0.0
        %vm1505 = vcmp.gt.f32.partialorder %v1497, 0.0
        %vm1506 = vcmp.gt.f32.partialorder %v1500, 0.0
        %v1507 = vmul.f32 %v1489, 0.01
        %v1508 = vmul.f32 %v1492, 0.01
        %v1509 = vmul.f32 %v1497, 0.01
        %v1510 = vmul.f32 %v1500, 0.01
        %v1511 = vsel %vm1503, %v1489, %v1507
        %v1512 = vsel %vm1504, %v1492, %v1508
        %v1513 = vsel %vm1505, %v1497, %v1509
        %v1514 = vsel %vm1506, %v1500, %v1510
        %1515 = vrot.lane.b32.xlu0 %v1511, 1
        %v1516 = vpop.permute.xlu0 %1515
        %1517 = vrot.lane.b32.xlu0 %v1512, 1
        %v1518 = vpop.permute.xlu0 %1517
        %1519 = vrot.lane.b32.xlu0 %v1513, 1
        %v1520 = vpop.permute.xlu0 %1519
        %1521 = vrot.lane.b32.xlu0 %v1514, 1
        %v1522 = vpop.permute.xlu0 %1521
        %v1523 = vmul.f32 %v1516, %v386
        %v1524 = vmul.f32 %v1518, %v386
        %v1525 = vmul.f32 %v1520, %v386
        %v1526 = vmul.f32 %v1522, %v386
        %1527 = vrot.lane.b32.xlu0 %v1511, 127
        %v1528 = vpop.permute.xlu0 %1527
        %1529 = vrot.lane.b32.xlu0 %v1512, 127
        %v1530 = vpop.permute.xlu0 %1529
        %1531 = vrot.lane.b32.xlu0 %v1513, 127
        %v1532 = vpop.permute.xlu0 %1531
        %1533 = vrot.lane.b32.xlu0 %v1514, 127
        %v1534 = vpop.permute.xlu0 %1533
        %v1535 = vmul.f32 %v1528, %v388
        %v1536 = vmul.f32 %v1530, %v388
        %v1537 = vmul.f32 %v1532, %v388
        %v1538 = vmul.f32 %v1534, %v388
        %v1539 = vpack.c.bf16 %v1524, %v1523
        %v1540 = vpack.c.bf16 %v1526, %v1525
        %v1541 = vpack.c.bf16 %v1512, %v1511
        %v1542 = vpack.c.bf16 %v1514, %v1513
        %v1543 = vpack.c.bf16 %v1536, %v1535
        %v1544 = vpack.c.bf16 %v1538, %v1537
        %1545 = vmatprep.subr.bf16.mxu0 0
        %1546 = vmatpush1.bf16.msra.mxu0 %v1539
        %1547 = vmatprep.subr.bf16.mxu0 0
        %1548 = vmatpush1.bf16.msra.mxu0 %v1540
        %1549 = vmatprep.subr.bf16.mxu0 0
        %1550 = vmatpush1.bf16.msra.mxu0 %v1541
        %1551 = vmatprep.subr.bf16.mxu0 0
        %1552 = vmatpush1.bf16.msra.mxu0 %v1542
        %1553 = vmatprep.subr.bf16.mxu0 0
        %1554 = vmatpush1.bf16.msra.mxu0 %v1543
        %1555 = vmatprep.subr.bf16.mxu0 0
        %1556 = vmatpush1.bf16.msra.mxu0 %v1544
        %1557 = vmatprep.subr.bf16.mxu0 0
        %1558 = vmatpush1.bf16.msra.mxu0 0
        %1559 = vmatprep.subr.bf16.mxu0 0
        %1560 = vmatpush1.bf16.msra.mxu0 0
        %1561 = vmatprep.subr.bf16.mxu0 0
        %1562 = vmatpush1.bf16.msra.mxu0 0
        %1563 = vmatprep.subr.bf16.mxu0 0
        %1564 = vmatpush1.bf16.msra.mxu0 0
        %1565 = vmatprep.subr.bf16.mxu0 0
        %1566 = vmatpush1.bf16.msra.mxu0 0
        %1567 = vmatprep.subr.bf16.mxu0 0
        %1568 = vmatpush1.bf16.msra.mxu0 0
        %1569 = vmatprep.subr.bf16.mxu0 0
        %1570 = vmatpush1.bf16.msra.mxu0 0
        %1571 = vmatprep.subr.bf16.mxu0 0
        %1572 = vmatpush1.bf16.msra.mxu0 0
        %1573 = vmatprep.subr.bf16.mxu0 0
        %1574 = vmatpush1.bf16.msra.mxu0 0
        %1575 = vmatprep.subr.bf16.mxu0 0
        %1576 = vmatpush1.bf16.msra.mxu0 0
        %1577 = vmatprep.mubr.bf16.mxu0 0
        %1578 = vmatmul.mubr.bf16.gmra.mrb[0].mxu0 %v1008
        %v1579 = vpop.f32.mrb[0].mxu0
        %v1580 = vadd.f32 %v980, %v1579
        %v1581 = vpop.f32.mrb[0].mxu0
        %v1582 = vpop.f32.mrb[0].mxu0
        %v1583 = vadd.f32 %v985, %v1582
        %v1584 = vpop.f32.mrb[0].mxu0
        %1585 = vmatprep.mubr.bf16.mxu0 0
        %1586 = vmatmul.mubr.bf16.gmra.mrb[0].mxu0 %v1011
        %v1587 = vpop.f32.mrb[0].mxu0
        %v1588 = vadd.f32 %v990, %v1587
        %v1589 = vpop.f32.mrb[0].mxu0
        %v1590 = vpop.f32.mrb[0].mxu0
        %v1591 = vadd.f32 %v995, %v1590
        %v1592 = vpop.f32.mrb[0].mxu0
        %1593 = vdwg.mxu0
        %v1594 = vadd.f32 %v1420, %v1580
        %v1595 = vadd.f32 %v1421, %v1583
        %v1596 = vadd.f32 %v1422, %v1588
        %v1597 = vadd.f32 %v1423, %v1591
        %vm1598 = vcmp.gt.f32.partialorder %v1594, 0.0
        %vm1599 = vcmp.gt.f32.partialorder %v1595, 0.0
        %vm1600 = vcmp.gt.f32.partialorder %v1596, 0.0
        %vm1601 = vcmp.gt.f32.partialorder %v1597, 0.0
        %v1602 = vmul.f32 %v1594, 0.01
        %v1603 = vmul.f32 %v1595, 0.01
        %v1604 = vmul.f32 %v1596, 0.01
        %v1605 = vmul.f32 %v1597, 0.01
        %v1606 = vsel %vm1598, %v1594, %v1602
        %v1607 = vsel %vm1599, %v1595, %v1603
        %v1608 = vsel %vm1600, %v1596, %v1604
        %v1609 = vsel %vm1601, %v1597, %v1605
        %1610 = vadd.xlane.f32.xlu0 %v1606
        %v1611 = vpop.xlane.xlu0 %1610
        %1612 = vadd.xlane.f32.xlu0 %v1607
        %v1613 = vpop.xlane.xlu0 %1612
        %1614 = vadd.xlane.f32.xlu0 %v1608
        %v1615 = vpop.xlane.xlu0 %1614
        %1616 = vadd.xlane.f32.xlu0 %v1609
        %v1617 = vpop.xlane.xlu0 %1616
        %v1618 = vmul.f32 %v1611, 0.0078125
        %v1619 = vmul.f32 %v1613, 0.0078125
        %v1620 = vmul.f32 %v1615, 0.0078125
        %v1621 = vmul.f32 %v1617, 0.0078125
        %1623 = vset.pattern.permute.xlu0 0
        %1624 = vperm.xlu0 %1623, %v1351
        %v1625 = vpop.permute.xlu0 %1624
        %1628 = vset.pattern.permute.xlu0 0
        %1629 = vperm.xlu0 %1628, %v1353
        %v1630 = vpop.permute.xlu0 %1629
        %1633 = vset.pattern.permute.xlu0 0
        %1634 = vperm.xlu0 %1633, %v1355
        %v1635 = vpop.permute.xlu0 %1634
        %1638 = vset.pattern.permute.xlu0 0
        %1639 = vperm.xlu0 %1638, %v1357
        %v1640 = vpop.permute.xlu0 %1639
        %1643 = vset.pattern.permute.xlu0 0
        %1644 = vperm.xlu0 %1643, %v1618
        %v1645 = vpop.permute.xlu0 %1644
        %1648 = vset.pattern.permute.xlu0 0
        %1649 = vperm.xlu0 %1648, %v1619
        %v1650 = vpop.permute.xlu0 %1649
        %1653 = vset.pattern.permute.xlu0 0
        %1654 = vperm.xlu0 %1653, %v1620
        %v1655 = vpop.permute.xlu0 %1654
        %1658 = vset.pattern.permute.xlu0 0
        %1659 = vperm.xlu0 %1658, %v1621
        %v1660 = vpop.permute.xlu0 %1659
        %v1662 = vmul.f32 %v1625, %v422
        %v1663 = vmul.f32 %v1630, %v423
        %v1664 = vmul.f32 %v1635, %v424
        %v1665 = vmul.f32 %v1640, %v425
        %v1666 = vmul.f32 %v1645, %v426
        %v1667 = vmul.f32 %v1650, %v427
        %v1668 = vmul.f32 %v1655, %v428
        %v1669 = vmul.f32 %v1660, %v429
        %v1670 = vsel %vm1138, %v1662, 0.0
        %v1671 = vsel %vm1138, %v1663, 0.0
        %v1672 = vadd.f32 %v1670, %v1671
        %v1673 = vsel %vm1138, %v1664, 0.0
        %v1674 = vadd.f32 %v1672, %v1673
        %v1675 = vsel %vm1138, %v1665, 0.0
        %v1676 = vadd.f32 %v1674, %v1675
        %v1677 = vsel %vm1138, %v1666, 0.0
        %v1678 = vadd.f32 %v1676, %v1677
        %v1679 = vsel %vm1138, %v1667, 0.0
        %v1680 = vadd.f32 %v1678, %v1679
        %v1681 = vsel %vm1138, %v1668, 0.0
        %v1682 = vadd.f32 %v1680, %v1681
        %v1683 = vsel %vm1138, %v1669, 0.0
        %v1684 = vadd.f32 %v1682, %v1683
        %v1685 = vrot.slane %v1684, 4
        %v1686 = vadd.f32 %v1684, %v1685
        %v1687 = vrot.slane %v1686, 2
        %v1688 = vadd.f32 %v1686, %v1687
        %v1689 = vrot.slane %v1688, 1
        %v1690 = vadd.f32 %v1688, %v1689
        %v1691 = vrot.slane %v430, 4
        %1693 = vrot.lane.b32.xlu0 %v1691, 127
        %v1694 = vpop.permute.xlu0 %1693
        %1695 = vrot.lane.b32.xlu0 %v1691, 126
        %v1696 = vpop.permute.xlu0 %1695
        %1697 = vrot.lane.b32.xlu0 %v1691, 125
        %v1698 = vpop.permute.xlu0 %1697
        %1699 = vrot.lane.b32.xlu0 %v1691, 124
        %v1700 = vpop.permute.xlu0 %1699
        %1701 = vrot.lane.b32.xlu0 %v1691, 123
        %v1702 = vpop.permute.xlu0 %1701
        %1703 = vrot.lane.b32.xlu0 %v1691, 122
        %v1704 = vpop.permute.xlu0 %1703
        %1705 = vrot.lane.b32.xlu0 %v1691, 121
        %v1706 = vpop.permute.xlu0 %1705
        %v1708 = vrot.slane %v1694, 6
        %v1711 = vrot.slane %v1696, 4
        %v1714 = vrot.slane %v1698, 2
        %v1717 = vrot.slane %v1702, 6
        %v1720 = vrot.slane %v1704, 4
        %v1723 = vrot.slane %v1706, 2
        %v1725 = vsel %vm463, %v1691, %v1708
        %v1726 = vsel %vm465, %v1725, %v1711
        %v1727 = vsel %vm467, %v1726, %v1714
        %v1728 = vsel %vm463, %v1700, %v1717
        %v1729 = vsel %vm465, %v1728, %v1720
        %v1730 = vsel %vm467, %v1729, %v1723
        %v1731 = vpack.c.bf16 %v1730, %v1727
        %1732 = vmatprep.subr.bf16.mxu0 0
        %1733 = vmatpush1.bf16.msra.mxu0 %v1731
        %1734 = vmatprep.subr.bf16.mxu0 0
        %1735 = vmatpush1.bf16.msra.mxu0 0
        %1736 = vmatprep.subr.bf16.mxu0 0
        %1737 = vmatpush1.bf16.msra.mxu0 0
        %1738 = vmatprep.subr.bf16.mxu0 0
        %1739 = vmatpush1.bf16.msra.mxu0 0
        %1740 = vmatprep.subr.bf16.mxu0 0
        %1741 = vmatpush1.bf16.msra.mxu0 0
        %1742 = vmatprep.subr.bf16.mxu0 0
        %1743 = vmatpush1.bf16.msra.mxu0 0
        %1744 = vmatprep.subr.bf16.mxu0 0
        %1745 = vmatpush1.bf16.msra.mxu0 0
        %1746 = vmatprep.subr.bf16.mxu0 0
        %1747 = vmatpush1.bf16.msra.mxu0 0
        %1748 = vmatprep.subr.bf16.mxu0 0
        %1749 = vmatpush1.bf16.msra.mxu0 0
        %1750 = vmatprep.subr.bf16.mxu0 0
        %1751 = vmatpush1.bf16.msra.mxu0 0
        %1752 = vmatprep.subr.bf16.mxu0 0
        %1753 = vmatpush1.bf16.msra.mxu0 0
        %1754 = vmatprep.subr.bf16.mxu0 0
        %1755 = vmatpush1.bf16.msra.mxu0 0
        %1756 = vmatprep.subr.bf16.mxu0 0
        %1757 = vmatpush1.bf16.msra.mxu0 0
        %1758 = vmatprep.subr.bf16.mxu0 0
        %1759 = vmatpush1.bf16.msra.mxu0 0
        %1760 = vmatprep.subr.bf16.mxu0 0
        %1761 = vmatpush1.bf16.msra.mxu0 0
        %1762 = vmatprep.subr.bf16.mxu0 0
        %1763 = vmatpush1.bf16.msra.mxu0 0
        %1764 = vmatprep.mubr.bf16.mxu0 0
        %1765 = vmatmul.mubr.bf16.gmra.mrb[0].mxu0 %v494
        %v1766 = vpop.f32.mrb[0].mxu0
        %v1767 = vadd.f32 %v480, %v1766
        %v1768 = vpop.f32.mrb[0].mxu0
        %v1769 = vpop.f32.mrb[0].mxu0
        %v1770 = vadd.f32 %v485, %v1769
        %v1771 = vpop.f32.mrb[0].mxu0
        %1772 = vdwg.mxu0
        %vm1773 = vcmp.gt.f32.partialorder %v1767, 0.0
        %vm1774 = vcmp.gt.f32.partialorder %v1770, 0.0
        %v1775 = vmul.f32 %v1767, 0.01
        %v1776 = vmul.f32 %v1770, 0.01
        %v1777 = vsel %vm1773, %v1767, %v1775
        %v1778 = vsel %vm1774, %v1770, %v1776
        %1779 = vrot.lane.b32.xlu0 %v1777, 124
        %v1780 = vpop.permute.xlu0 %1779
        %1781 = vrot.lane.b32.xlu0 %v1778, 124
        %v1782 = vpop.permute.xlu0 %1781
        %1783 = vrot.lane.b32.xlu0 %v1777, 120
        %v1784 = vpop.permute.xlu0 %1783
        %1785 = vrot.lane.b32.xlu0 %v1778, 120
        %v1786 = vpop.permute.xlu0 %1785
        %1787 = vrot.lane.b32.xlu0 %v1777, 116
        %v1788 = vpop.permute.xlu0 %1787
        %1789 = vrot.lane.b32.xlu0 %v1778, 116
        %v1790 = vpop.permute.xlu0 %1789
        %1791 = vrot.lane.b32.xlu0 %v1777, 112
        %v1792 = vpop.permute.xlu0 %1791
        %1793 = vrot.lane.b32.xlu0 %v1778, 112
        %v1794 = vpop.permute.xlu0 %1793
        %1795 = vrot.lane.b32.xlu0 %v1777, 108
        %v1796 = vpop.permute.xlu0 %1795
        %1797 = vrot.lane.b32.xlu0 %v1778, 108
        %v1798 = vpop.permute.xlu0 %1797
        %1799 = vrot.lane.b32.xlu0 %v1777, 104
        %v1800 = vpop.permute.xlu0 %1799
        %1801 = vrot.lane.b32.xlu0 %v1778, 104
        %v1802 = vpop.permute.xlu0 %1801
        %1803 = vrot.lane.b32.xlu0 %v1777, 100
        %v1804 = vpop.permute.xlu0 %1803
        %1805 = vrot.lane.b32.xlu0 %v1778, 100
        %v1806 = vpop.permute.xlu0 %1805
        %v1807 = vpack.c.bf16 %v1778, %v1777
        %v1808 = vpack.c.bf16 %v1782, %v1780
        %v1809 = vpack.c.bf16 %v1786, %v1784
        %v1810 = vpack.c.bf16 %v1790, %v1788
        %v1811 = vpack.c.bf16 %v1794, %v1792
        %v1812 = vpack.c.bf16 %v1798, %v1796
        %v1813 = vpack.c.bf16 %v1802, %v1800
        %v1814 = vpack.c.bf16 %v1806, %v1804
        %1815 = vmatprep.subr.bf16.mxu0 0
        %1816 = vmatpush1.bf16.msra.mxu0 %v1807
        %1817 = vmatprep.subr.bf16.mxu0 0
        %1818 = vmatpush1.bf16.msra.mxu0 %v1808
        %1819 = vmatprep.subr.bf16.mxu0 0
        %1820 = vmatpush1.bf16.msra.mxu0 %v1809
        %1821 = vmatprep.subr.bf16.mxu0 0
        %1822 = vmatpush1.bf16.msra.mxu0 %v1810
        %1823 = vmatprep.subr.bf16.mxu0 0
        %1824 = vmatpush1.bf16.msra.mxu0 %v1811
        %1825 = vmatprep.subr.bf16.mxu0 0
        %1826 = vmatpush1.bf16.msra.mxu0 %v1812
        %1827 = vmatprep.subr.bf16.mxu0 0
        %1828 = vmatpush1.bf16.msra.mxu0 %v1813
        %1829 = vmatprep.subr.bf16.mxu0 0
        %1830 = vmatpush1.bf16.msra.mxu0 %v1814
        %1831 = vmatprep.subr.bf16.mxu0 0
        %1832 = vmatpush1.bf16.msra.mxu0 0
        %1833 = vmatprep.subr.bf16.mxu0 0
        %1834 = vmatpush1.bf16.msra.mxu0 0
        %1835 = vmatprep.subr.bf16.mxu0 0
        %1836 = vmatpush1.bf16.msra.mxu0 0
        %1837 = vmatprep.subr.bf16.mxu0 0
        %1838 = vmatpush1.bf16.msra.mxu0 0
        %1839 = vmatprep.subr.bf16.mxu0 0
        %1840 = vmatpush1.bf16.msra.mxu0 0
        %1841 = vmatprep.subr.bf16.mxu0 0
        %1842 = vmatpush1.bf16.msra.mxu0 0
        %1843 = vmatprep.subr.bf16.mxu0 0
        %1844 = vmatpush1.bf16.msra.mxu0 0
        %1845 = vmatprep.subr.bf16.mxu0 0
        %1846 = vmatpush1.bf16.msra.mxu0 0
        %1847 = vmatprep.mubr.bf16.mxu0 0
        %1848 = vmatmul.mubr.bf16.gmra.mrb[0].mxu0 %v615
        %v1849 = vpop.f32.mrb[0].mxu0
        %v1850 = vadd.f32 %v590, %v1849
        %v1851 = vpop.f32.mrb[0].mxu0
        %v1852 = vpop.f32.mrb[0].mxu0
        %v1853 = vadd.f32 %v595, %v1852
        %v1854 = vpop.f32.mrb[0].mxu0
        %1855 = vmatprep.mubr.bf16.mxu0 0
        %1856 = vmatmul.mubr.bf16.gmra.mrb[0].mxu0 %v616
        %v1857 = vpop.f32.mrb[0].mxu0
        %v1858 = vadd.f32 %v600, %v1857
        %v1859 = vpop.f32.mrb[0].mxu0
        %v1860 = vpop.f32.mrb[0].mxu0
        %v1861 = vadd.f32 %v605, %v1860
        %v1862 = vpop.f32.mrb[0].mxu0
        %1863 = vdwg.mxu0
        %vm1864 = vcmp.gt.f32.partialorder %v1850, 0.0
        %vm1865 = vcmp.gt.f32.partialorder %v1853, 0.0
        %vm1866 = vcmp.gt.f32.partialorder %v1858, 0.0
        %vm1867 = vcmp.gt.f32.partialorder %v1861, 0.0
        %v1868 = vmul.f32 %v1850, 0.01
        %v1869 = vmul.f32 %v1853, 0.01
        %v1870 = vmul.f32 %v1858, 0.01
        %v1871 = vmul.f32 %v1861, 0.01
        %v1872 = vsel %vm1864, %v1850, %v1868
        %v1873 = vsel %vm1865, %v1853, %v1869
        %v1874 = vsel %vm1866, %v1858, %v1870
        %v1875 = vsel %vm1867, %v1861, %v1871
        %v1876 = vmul.f32 %v1872, %v404
        %v1877 = vmul.f32 %v1873, %v404
        %v1878 = vmul.f32 %v1874, %v404
        %v1879 = vmul.f32 %v1875, %v404
        %1880 = vadd.xlane.f32.xlu0 %v1876
        %v1881 = vpop.xlane.xlu0 %1880
        %1882 = vadd.xlane.f32.xlu0 %v1877
        %v1883 = vpop.xlane.xlu0 %1882
        %1884 = vadd.xlane.f32.xlu0 %v1878
        %v1885 = vpop.xlane.xlu0 %1884
        %1886 = vadd.xlane.f32.xlu0 %v1879
        %v1887 = vpop.xlane.xlu0 %1886
        %v1888 = vrot.slane %v696, 2
        %v1890 = vsel %vm738, %v1888, 0
        %1892 = vmatprep.subr.bf16.mxu0 0
        %1893 = vmatpush1.bf16.msra.mxu0 %v1890
        %1894 = vmatprep.subr.bf16.mxu0 0
        %1895 = vmatpush1.bf16.msra.mxu0 0
        %1896 = vmatprep.subr.bf16.mxu0 0
        %1897 = vmatpush1.bf16.msra.mxu0 0
        %1898 = vmatprep.subr.bf16.mxu0 0
        %1899 = vmatpush1.bf16.msra.mxu0 0
        %1900 = vmatprep.subr.bf16.mxu0 0
        %1901 = vmatpush1.bf16.msra.mxu0 0
        %1902 = vmatprep.subr.bf16.mxu0 0
        %1903 = vmatpush1.bf16.msra.mxu0 0
        %1904 = vmatprep.subr.bf16.mxu0 0
        %1905 = vmatpush1.bf16.msra.mxu0 0
        %1906 = vmatprep.subr.bf16.mxu0 0
        %1907 = vmatpush1.bf16.msra.mxu0 0
        %1908 = vmatprep.subr.bf16.mxu0 0
        %1909 = vmatpush1.bf16.msra.mxu0 0
        %1910 = vmatprep.subr.bf16.mxu0 0
        %1911 = vmatpush1.bf16.msra.mxu0 0
        %1912 = vmatprep.subr.bf16.mxu0 0
        %1913 = vmatpush1.bf16.msra.mxu0 0
        %1914 = vmatprep.subr.bf16.mxu0 0
        %1915 = vmatpush1.bf16.msra.mxu0 0
        %1916 = vmatprep.subr.bf16.mxu0 0
        %1917 = vmatpush1.bf16.msra.mxu0 0
        %1918 = vmatprep.subr.bf16.mxu0 0
        %1919 = vmatpush1.bf16.msra.mxu0 0
        %1920 = vmatprep.subr.bf16.mxu0 0
        %1921 = vmatpush1.bf16.msra.mxu0 0
        %1922 = vmatprep.subr.bf16.mxu0 0
        %1923 = vmatpush1.bf16.msra.mxu0 0
        %1924 = vmatprep.mubr.bf16.mxu0 0
        %1925 = vmatmul.mubr.bf16.gmra.mrb[0].mxu0 %v733
        %v1926 = vpop.f32.mrb[0].mxu0
        %v1927 = vadd.f32 %v704, %v1926
        %v1928 = vpop.f32.mrb[0].mxu0
        %v1929 = vpop.f32.mrb[0].mxu0
        %v1930 = vadd.f32 %v709, %v1929
        %v1931 = vpop.f32.mrb[0].mxu0
        %1932 = vmatprep.mubr.bf16.mxu0 0
        %1933 = vmatmul.mubr.bf16.gmra.mrb[0].mxu0 %v736
        %v1934 = vpop.f32.mrb[0].mxu0
        %v1935 = vadd.f32 %v714, %v1934
        %v1936 = vpop.f32.mrb[0].mxu0
        %v1937 = vpop.f32.mrb[0].mxu0
        %v1938 = vadd.f32 %v719, %v1937
        %v1939 = vpop.f32.mrb[0].mxu0
        %1940 = vdwg.mxu0
        %vm1941 = vcmp.gt.f32.partialorder %v1927, 0.0
        %vm1942 = vcmp.gt.f32.partialorder %v1930, 0.0
        %vm1943 = vcmp.gt.f32.partialorder %v1935, 0.0
        %vm1944 = vcmp.gt.f32.partialorder %v1938, 0.0
        %v1945 = vmul.f32 %v1927, 0.01
        %v1946 = vmul.f32 %v1930, 0.01
        %v1947 = vmul.f32 %v1935, 0.01
        %v1948 = vmul.f32 %v1938, 0.01
        %v1949 = vsel %vm1941, %v1927, %v1945
        %v1950 = vsel %vm1942, %v1930, %v1946
        %v1951 = vsel %vm1943, %v1935, %v1947
        %v1952 = vsel %vm1944, %v1938, %v1948
        %1953 = vrot.lane.b32.xlu0 %v1949, 1
        %v1954 = vpop.permute.xlu0 %1953
        %1955 = vrot.lane.b32.xlu0 %v1950, 1
        %v1956 = vpop.permute.xlu0 %1955
        %1957 = vrot.lane.b32.xlu0 %v1951, 1
        %v1958 = vpop.permute.xlu0 %1957
        %1959 = vrot.lane.b32.xlu0 %v1952, 1
        %v1960 = vpop.permute.xlu0 %1959
        %v1961 = vmul.f32 %v1954, %v386
        %v1962 = vmul.f32 %v1956, %v386
        %v1963 = vmul.f32 %v1958, %v386
        %v1964 = vmul.f32 %v1960, %v386
        %1965 = vrot.lane.b32.xlu0 %v1949, 127
        %v1966 = vpop.permute.xlu0 %1965
        %1967 = vrot.lane.b32.xlu0 %v1950, 127
        %v1968 = vpop.permute.xlu0 %1967
        %1969 = vrot.lane.b32.xlu0 %v1951, 127
        %v1970 = vpop.permute.xlu0 %1969
        %1971 = vrot.lane.b32.xlu0 %v1952, 127
        %v1972 = vpop.permute.xlu0 %1971
        %v1973 = vmul.f32 %v1966, %v388
        %v1974 = vmul.f32 %v1968, %v388
        %v1975 = vmul.f32 %v1970, %v388
        %v1976 = vmul.f32 %v1972, %v388
        %v1977 = vpack.c.bf16 %v1962, %v1961
        %v1978 = vpack.c.bf16 %v1964, %v1963
        %v1979 = vpack.c.bf16 %v1950, %v1949
        %v1980 = vpack.c.bf16 %v1952, %v1951
        %v1981 = vpack.c.bf16 %v1974, %v1973
        %v1982 = vpack.c.bf16 %v1976, %v1975
        %1983 = vmatprep.subr.bf16.mxu0 0
        %1984 = vmatpush1.bf16.msra.mxu0 %v1977
        %1985 = vmatprep.subr.bf16.mxu0 0
        %1986 = vmatpush1.bf16.msra.mxu0 %v1978
        %1987 = vmatprep.subr.bf16.mxu0 0
        %1988 = vmatpush1.bf16.msra.mxu0 %v1979
        %1989 = vmatprep.subr.bf16.mxu0 0
        %1990 = vmatpush1.bf16.msra.mxu0 %v1980
        %1991 = vmatprep.subr.bf16.mxu0 0
        %1992 = vmatpush1.bf16.msra.mxu0 %v1981
        %1993 = vmatprep.subr.bf16.mxu0 0
        %1994 = vmatpush1.bf16.msra.mxu0 %v1982
        %1995 = vmatprep.subr.bf16.mxu0 0
        %1996 = vmatpush1.bf16.msra.mxu0 0
        %1997 = vmatprep.subr.bf16.mxu0 0
        %1998 = vmatpush1.bf16.msra.mxu0 0
        %1999 = vmatprep.subr.bf16.mxu0 0
        %2000 = vmatpush1.bf16.msra.mxu0 0
        %2001 = vmatprep.subr.bf16.mxu0 0
        %2002 = vmatpush1.bf16.msra.mxu0 0
        %2003 = vmatprep.subr.bf16.mxu0 0
        %2004 = vmatpush1.bf16.msra.mxu0 0
        %2005 = vmatprep.subr.bf16.mxu0 0
        %2006 = vmatpush1.bf16.msra.mxu0 0
        %2007 = vmatprep.subr.bf16.mxu0 0
        %2008 = vmatpush1.bf16.msra.mxu0 0
        %2009 = vmatprep.subr.bf16.mxu0 0
        %2010 = vmatpush1.bf16.msra.mxu0 0
        %2011 = vmatprep.subr.bf16.mxu0 0
        %2012 = vmatpush1.bf16.msra.mxu0 0
        %2013 = vmatprep.subr.bf16.mxu0 0
        %2014 = vmatpush1.bf16.msra.mxu0 0
        %2015 = vmatprep.mubr.bf16.mxu0 0
        %2016 = vmatmul.mubr.bf16.gmra.mrb[0].mxu0 %v873
        %v2017 = vpop.f32.mrb[0].mxu0
        %v2018 = vadd.f32 %v844, %v2017
        %v2019 = vpop.f32.mrb[0].mxu0
        %v2020 = vpop.f32.mrb[0].mxu0
        %v2021 = vadd.f32 %v849, %v2020
        %v2022 = vpop.f32.mrb[0].mxu0
        %2023 = vmatprep.mubr.bf16.mxu0 0
        %2024 = vmatmul.mubr.bf16.gmra.mrb[0].mxu0 %v876
        %v2025 = vpop.f32.mrb[0].mxu0
        %v2026 = vadd.f32 %v854, %v2025
        %v2027 = vpop.f32.mrb[0].mxu0
        %v2028 = vpop.f32.mrb[0].mxu0
        %v2029 = vadd.f32 %v859, %v2028
        %v2030 = vpop.f32.mrb[0].mxu0
        %2031 = vdwg.mxu0
        %vm2032 = vcmp.gt.f32.partialorder %v2018, 0.0
        %vm2033 = vcmp.gt.f32.partialorder %v2021, 0.0
        %vm2034 = vcmp.gt.f32.partialorder %v2026, 0.0
        %vm2035 = vcmp.gt.f32.partialorder %v2029, 0.0
        %v2036 = vmul.f32 %v2018, 0.01
        %v2037 = vmul.f32 %v2021, 0.01
        %v2038 = vmul.f32 %v2026, 0.01
        %v2039 = vmul.f32 %v2029, 0.01
        %v2040 = vsel %vm2032, %v2018, %v2036
        %v2041 = vsel %vm2033, %v2021, %v2037
        %v2042 = vsel %vm2034, %v2026, %v2038
        %v2043 = vsel %vm2035, %v2029, %v2039
        %2044 = vrot.lane.b32.xlu0 %v2040, 1
        %v2045 = vpop.permute.xlu0 %2044
        %2046 = vrot.lane.b32.xlu0 %v2041, 1
        %v2047 = vpop.permute.xlu0 %2046
        %2048 = vrot.lane.b32.xlu0 %v2042, 1
        %v2049 = vpop.permute.xlu0 %2048
        %2050 = vrot.lane.b32.xlu0 %v2043, 1
        %v2051 = vpop.permute.xlu0 %2050
        %v2052 = vmul.f32 %v2045, %v386
        %v2053 = vmul.f32 %v2047, %v386
        %v2054 = vmul.f32 %v2049, %v386
        %v2055 = vmul.f32 %v2051, %v386
        %2056 = vrot.lane.b32.xlu0 %v2040, 127
        %v2057 = vpop.permute.xlu0 %2056
        %2058 = vrot.lane.b32.xlu0 %v2041, 127
        %v2059 = vpop.permute.xlu0 %2058
        %2060 = vrot.lane.b32.xlu0 %v2042, 127
        %v2061 = vpop.permute.xlu0 %2060
        %2062 = vrot.lane.b32.xlu0 %v2043, 127
        %v2063 = vpop.permute.xlu0 %2062
        %v2064 = vmul.f32 %v2057, %v388
        %v2065 = vmul.f32 %v2059, %v388
        %v2066 = vmul.f32 %v2061, %v388
        %v2067 = vmul.f32 %v2063, %v388
        %v2068 = vpack.c.bf16 %v2053, %v2052
        %v2069 = vpack.c.bf16 %v2055, %v2054
        %v2070 = vpack.c.bf16 %v2041, %v2040
        %v2071 = vpack.c.bf16 %v2043, %v2042
        %v2072 = vpack.c.bf16 %v2065, %v2064
        %v2073 = vpack.c.bf16 %v2067, %v2066
        %2074 = vmatprep.subr.bf16.mxu0 0
        %2075 = vmatpush1.bf16.msra.mxu0 %v2068
        %2076 = vmatprep.subr.bf16.mxu0 0
        %2077 = vmatpush1.bf16.msra.mxu0 %v2069
        %2078 = vmatprep.subr.bf16.mxu0 0
        %2079 = vmatpush1.bf16.msra.mxu0 %v2070
        %2080 = vmatprep.subr.bf16.mxu0 0
        %2081 = vmatpush1.bf16.msra.mxu0 %v2071
        %2082 = vmatprep.subr.bf16.mxu0 0
        %2083 = vmatpush1.bf16.msra.mxu0 %v2072
        %2084 = vmatprep.subr.bf16.mxu0 0
        %2085 = vmatpush1.bf16.msra.mxu0 %v2073
        %2086 = vmatprep.subr.bf16.mxu0 0
        %2087 = vmatpush1.bf16.msra.mxu0 0
        %2088 = vmatprep.subr.bf16.mxu0 0
        %2089 = vmatpush1.bf16.msra.mxu0 0
        %2090 = vmatprep.subr.bf16.mxu0 0
        %2091 = vmatpush1.bf16.msra.mxu0 0
        %2092 = vmatprep.subr.bf16.mxu0 0
        %2093 = vmatpush1.bf16.msra.mxu0 0
        %2094 = vmatprep.subr.bf16.mxu0 0
        %2095 = vmatpush1.bf16.msra.mxu0 0
        %2096 = vmatprep.subr.bf16.mxu0 0
        %2097 = vmatpush1.bf16.msra.mxu0 0
        %2098 = vmatprep.subr.bf16.mxu0 0
        %2099 = vmatpush1.bf16.msra.mxu0 0
        %2100 = vmatprep.subr.bf16.mxu0 0
        %2101 = vmatpush1.bf16.msra.mxu0 0
        %2102 = vmatprep.subr.bf16.mxu0 0
        %2103 = vmatpush1.bf16.msra.mxu0 0
        %2104 = vmatprep.subr.bf16.mxu0 0
        %2105 = vmatpush1.bf16.msra.mxu0 0
        %2106 = vmatprep.mubr.bf16.mxu0 0
        %2107 = vmatmul.mubr.bf16.gmra.mrb[0].mxu0 %v1008
        %v2108 = vpop.f32.mrb[0].mxu0
        %v2109 = vadd.f32 %v980, %v2108
        %v2110 = vpop.f32.mrb[0].mxu0
        %v2111 = vpop.f32.mrb[0].mxu0
        %v2112 = vadd.f32 %v985, %v2111
        %v2113 = vpop.f32.mrb[0].mxu0
        %2114 = vmatprep.mubr.bf16.mxu0 0
        %2115 = vmatmul.mubr.bf16.gmra.mrb[0].mxu0 %v1011
        %v2116 = vpop.f32.mrb[0].mxu0
        %v2117 = vadd.f32 %v990, %v2116
        %v2118 = vpop.f32.mrb[0].mxu0
        %v2119 = vpop.f32.mrb[0].mxu0
        %v2120 = vadd.f32 %v995, %v2119
        %v2121 = vpop.f32.mrb[0].mxu0
        %2122 = vdwg.mxu0
        %v2123 = vadd.f32 %v1949, %v2109
        %v2124 = vadd.f32 %v1950, %v2112
        %v2125 = vadd.f32 %v1951, %v2117
        %v2126 = vadd.f32 %v1952, %v2120
        %vm2127 = vcmp.gt.f32.partialorder %v2123, 0.0
        %vm2128 = vcmp.gt.f32.partialorder %v2124, 0.0
        %vm2129 = vcmp.gt.f32.partialorder %v2125, 0.0
        %vm2130 = vcmp.gt.f32.partialorder %v2126, 0.0
        %v2131 = vmul.f32 %v2123, 0.01
        %v2132 = vmul.f32 %v2124, 0.01
        %v2133 = vmul.f32 %v2125, 0.01
        %v2134 = vmul.f32 %v2126, 0.01
        %v2135 = vsel %vm2127, %v2123, %v2131
        %v2136 = vsel %vm2128, %v2124, %v2132
        %v2137 = vsel %vm2129, %v2125, %v2133
        %v2138 = vsel %vm2130, %v2126, %v2134
        %2139 = vadd.xlane.f32.xlu0 %v2135
        %v2140 = vpop.xlane.xlu0 %2139
        %2141 = vadd.xlane.f32.xlu0 %v2136
        %v2142 = vpop.xlane.xlu0 %2141
        %2143 = vadd.xlane.f32.xlu0 %v2137
        %v2144 = vpop.xlane.xlu0 %2143
        %2145 = vadd.xlane.f32.xlu0 %v2138
        %v2146 = vpop.xlane.xlu0 %2145
        %v2147 = vmul.f32 %v2140, 0.0078125
        %v2148 = vmul.f32 %v2142, 0.0078125
        %v2149 = vmul.f32 %v2144, 0.0078125
        %v2150 = vmul.f32 %v2146, 0.0078125
        %2152 = vset.pattern.permute.xlu0 0
        %2153 = vperm.xlu0 %2152, %v1881
        %v2154 = vpop.permute.xlu0 %2153
        %2157 = vset.pattern.permute.xlu0 0
        %2158 = vperm.xlu0 %2157, %v1883
        %v2159 = vpop.permute.xlu0 %2158
        %2162 = vset.pattern.permute.xlu0 0
        %2163 = vperm.xlu0 %2162, %v1885
        %v2164 = vpop.permute.xlu0 %2163
        %2167 = vset.pattern.permute.xlu0 0
        %2168 = vperm.xlu0 %2167, %v1887
        %v2169 = vpop.permute.xlu0 %2168
        %2172 = vset.pattern.permute.xlu0 0
        %2173 = vperm.xlu0 %2172, %v2147
        %v2174 = vpop.permute.xlu0 %2173
        %2177 = vset.pattern.permute.xlu0 0
        %2178 = vperm.xlu0 %2177, %v2148
        %v2179 = vpop.permute.xlu0 %2178
        %2182 = vset.pattern.permute.xlu0 0
        %2183 = vperm.xlu0 %2182, %v2149
        %v2184 = vpop.permute.xlu0 %2183
        %2187 = vset.pattern.permute.xlu0 0
        %2188 = vperm.xlu0 %2187, %v2150
        %v2189 = vpop.permute.xlu0 %2188
        %v2191 = vmul.f32 %v2154, %v422
        %v2192 = vmul.f32 %v2159, %v423
        %v2193 = vmul.f32 %v2164, %v424
        %v2194 = vmul.f32 %v2169, %v425
        %v2195 = vmul.f32 %v2174, %v426
        %v2196 = vmul.f32 %v2179, %v427
        %v2197 = vmul.f32 %v2184, %v428
        %v2198 = vmul.f32 %v2189, %v429
        %v2199 = vsel %vm1138, %v2191, 0.0
        %v2200 = vsel %vm1138, %v2192, 0.0
        %v2201 = vadd.f32 %v2199, %v2200
        %v2202 = vsel %vm1138, %v2193, 0.0
        %v2203 = vadd.f32 %v2201, %v2202
        %v2204 = vsel %vm1138, %v2194, 0.0
        %v2205 = vadd.f32 %v2203, %v2204
        %v2206 = vsel %vm1138, %v2195, 0.0
        %v2207 = vadd.f32 %v2205, %v2206
        %v2208 = vsel %vm1138, %v2196, 0.0
        %v2209 = vadd.f32 %v2207, %v2208
        %v2210 = vsel %vm1138, %v2197, 0.0
        %v2211 = vadd.f32 %v2209, %v2210
        %v2212 = vsel %vm1138, %v2198, 0.0
        %v2213 = vadd.f32 %v2211, %v2212
        %v2214 = vrot.slane %v2213, 4
        %v2215 = vadd.f32 %v2213, %v2214
        %v2216 = vrot.slane %v2215, 2
        %v2217 = vadd.f32 %v2215, %v2216
        %v2218 = vrot.slane %v2217, 1
        %v2219 = vadd.f32 %v2217, %v2218
        %v2220 = vrot.slane %v430, 6
        %2222 = vrot.lane.b32.xlu0 %v2220, 127
        %v2223 = vpop.permute.xlu0 %2222
        %2224 = vrot.lane.b32.xlu0 %v2220, 126
        %v2225 = vpop.permute.xlu0 %2224
        %2226 = vrot.lane.b32.xlu0 %v2220, 125
        %v2227 = vpop.permute.xlu0 %2226
        %2228 = vrot.lane.b32.xlu0 %v2220, 124
        %v2229 = vpop.permute.xlu0 %2228
        %2230 = vrot.lane.b32.xlu0 %v2220, 123
        %v2231 = vpop.permute.xlu0 %2230
        %2232 = vrot.lane.b32.xlu0 %v2220, 122
        %v2233 = vpop.permute.xlu0 %2232
        %2234 = vrot.lane.b32.xlu0 %v2220, 121
        %v2235 = vpop.permute.xlu0 %2234
        %v2237 = vrot.slane %v2223, 6
        %v2240 = vrot.slane %v2225, 4
        %v2243 = vrot.slane %v2227, 2
        %v2246 = vrot.slane %v2231, 6
        %v2249 = vrot.slane %v2233, 4
        %v2252 = vrot.slane %v2235, 2
        %v2254 = vsel %vm463, %v2220, %v2237
        %v2255 = vsel %vm465, %v2254, %v2240
        %v2256 = vsel %vm467, %v2255, %v2243
        %v2257 = vsel %vm463, %v2229, %v2246
        %v2258 = vsel %vm465, %v2257, %v2249
        %v2259 = vsel %vm467, %v2258, %v2252
        %v2260 = vpack.c.bf16 %v2259, %v2256
        %2261 = vmatprep.subr.bf16.mxu0 0
        %2262 = vmatpush1.bf16.msra.mxu0 %v2260
        %2263 = vmatprep.subr.bf16.mxu0 0
        %2264 = vmatpush1.bf16.msra.mxu0 0
        %2265 = vmatprep.subr.bf16.mxu0 0
        %2266 = vmatpush1.bf16.msra.mxu0 0
        %2267 = vmatprep.subr.bf16.mxu0 0
        %2268 = vmatpush1.bf16.msra.mxu0 0
        %2269 = vmatprep.subr.bf16.mxu0 0
        %2270 = vmatpush1.bf16.msra.mxu0 0
        %2271 = vmatprep.subr.bf16.mxu0 0
        %2272 = vmatpush1.bf16.msra.mxu0 0
        %2273 = vmatprep.subr.bf16.mxu0 0
        %2274 = vmatpush1.bf16.msra.mxu0 0
        %2275 = vmatprep.subr.bf16.mxu0 0
        %2276 = vmatpush1.bf16.msra.mxu0 0
        %2277 = vmatprep.subr.bf16.mxu0 0
        %2278 = vmatpush1.bf16.msra.mxu0 0
        %2279 = vmatprep.subr.bf16.mxu0 0
        %2280 = vmatpush1.bf16.msra.mxu0 0
        %2281 = vmatprep.subr.bf16.mxu0 0
        %2282 = vmatpush1.bf16.msra.mxu0 0
        %2283 = vmatprep.subr.bf16.mxu0 0
        %2284 = vmatpush1.bf16.msra.mxu0 0
        %2285 = vmatprep.subr.bf16.mxu0 0
        %2286 = vmatpush1.bf16.msra.mxu0 0
        %2287 = vmatprep.subr.bf16.mxu0 0
        %2288 = vmatpush1.bf16.msra.mxu0 0
        %2289 = vmatprep.subr.bf16.mxu0 0
        %2290 = vmatpush1.bf16.msra.mxu0 0
        %2291 = vmatprep.subr.bf16.mxu0 0
        %2292 = vmatpush1.bf16.msra.mxu0 0
        %2293 = vmatprep.mubr.bf16.mxu0 0
        %2294 = vmatmul.mubr.bf16.gmra.mrb[0].mxu0 %v494
        %v2295 = vpop.f32.mrb[0].mxu0
        %v2296 = vadd.f32 %v480, %v2295
        %v2297 = vpop.f32.mrb[0].mxu0
        %v2298 = vpop.f32.mrb[0].mxu0
        %v2299 = vadd.f32 %v485, %v2298
        %v2300 = vpop.f32.mrb[0].mxu0
        %2301 = vdwg.mxu0
        %vm2302 = vcmp.gt.f32.partialorder %v2296, 0.0
        %vm2303 = vcmp.gt.f32.partialorder %v2299, 0.0
        %v2304 = vmul.f32 %v2296, 0.01
        %v2305 = vmul.f32 %v2299, 0.01
        %v2306 = vsel %vm2302, %v2296, %v2304
        %v2307 = vsel %vm2303, %v2299, %v2305
        %2308 = vrot.lane.b32.xlu0 %v2306, 124
        %v2309 = vpop.permute.xlu0 %2308
        %2310 = vrot.lane.b32.xlu0 %v2307, 124
        %v2311 = vpop.permute.xlu0 %2310
        %2312 = vrot.lane.b32.xlu0 %v2306, 120
        %v2313 = vpop.permute.xlu0 %2312
        %2314 = vrot.lane.b32.xlu0 %v2307, 120
        %v2315 = vpop.permute.xlu0 %2314
        %2316 = vrot.lane.b32.xlu0 %v2306, 116
        %v2317 = vpop.permute.xlu0 %2316
        %2318 = vrot.lane.b32.xlu0 %v2307, 116
        %v2319 = vpop.permute.xlu0 %2318
        %2320 = vrot.lane.b32.xlu0 %v2306, 112
        %v2321 = vpop.permute.xlu0 %2320
        %2322 = vrot.lane.b32.xlu0 %v2307, 112
        %v2323 = vpop.permute.xlu0 %2322
        %2324 = vrot.lane.b32.xlu0 %v2306, 108
        %v2325 = vpop.permute.xlu0 %2324
        %2326 = vrot.lane.b32.xlu0 %v2307, 108
        %v2327 = vpop.permute.xlu0 %2326
        %2328 = vrot.lane.b32.xlu0 %v2306, 104
        %v2329 = vpop.permute.xlu0 %2328
        %2330 = vrot.lane.b32.xlu0 %v2307, 104
        %v2331 = vpop.permute.xlu0 %2330
        %2332 = vrot.lane.b32.xlu0 %v2306, 100
        %v2333 = vpop.permute.xlu0 %2332
        %2334 = vrot.lane.b32.xlu0 %v2307, 100
        %v2335 = vpop.permute.xlu0 %2334
        %v2336 = vpack.c.bf16 %v2307, %v2306
        %v2337 = vpack.c.bf16 %v2311, %v2309
        %v2338 = vpack.c.bf16 %v2315, %v2313
        %v2339 = vpack.c.bf16 %v2319, %v2317
        %v2340 = vpack.c.bf16 %v2323, %v2321
        %v2341 = vpack.c.bf16 %v2327, %v2325
        %v2342 = vpack.c.bf16 %v2331, %v2329
        %v2343 = vpack.c.bf16 %v2335, %v2333
        %2344 = vmatprep.subr.bf16.mxu0 0
        %2345 = vmatpush1.bf16.msra.mxu0 %v2336
        %2346 = vmatprep.subr.bf16.mxu0 0
        %2347 = vmatpush1.bf16.msra.mxu0 %v2337
        %2348 = vmatprep.subr.bf16.mxu0 0
        %2349 = vmatpush1.bf16.msra.mxu0 %v2338
        %2350 = vmatprep.subr.bf16.mxu0 0
        %2351 = vmatpush1.bf16.msra.mxu0 %v2339
        %2352 = vmatprep.subr.bf16.mxu0 0
        %2353 = vmatpush1.bf16.msra.mxu0 %v2340
        %2354 = vmatprep.subr.bf16.mxu0 0
        %2355 = vmatpush1.bf16.msra.mxu0 %v2341
        %2356 = vmatprep.subr.bf16.mxu0 0
        %2357 = vmatpush1.bf16.msra.mxu0 %v2342
        %2358 = vmatprep.subr.bf16.mxu0 0
        %2359 = vmatpush1.bf16.msra.mxu0 %v2343
        %2360 = vmatprep.subr.bf16.mxu0 0
        %2361 = vmatpush1.bf16.msra.mxu0 0
        %2362 = vmatprep.subr.bf16.mxu0 0
        %2363 = vmatpush1.bf16.msra.mxu0 0
        %2364 = vmatprep.subr.bf16.mxu0 0
        %2365 = vmatpush1.bf16.msra.mxu0 0
        %2366 = vmatprep.subr.bf16.mxu0 0
        %2367 = vmatpush1.bf16.msra.mxu0 0
        %2368 = vmatprep.subr.bf16.mxu0 0
        %2369 = vmatpush1.bf16.msra.mxu0 0
        %2370 = vmatprep.subr.bf16.mxu0 0
        %2371 = vmatpush1.bf16.msra.mxu0 0
        %2372 = vmatprep.subr.bf16.mxu0 0
        %2373 = vmatpush1.bf16.msra.mxu0 0
        %2374 = vmatprep.subr.bf16.mxu0 0
        %2375 = vmatpush1.bf16.msra.mxu0 0
        %2376 = vmatprep.mubr.bf16.mxu0 0
        %2377 = vmatmul.mubr.bf16.gmra.mrb[0].mxu0 %v615
        %v2378 = vpop.f32.mrb[0].mxu0
        %v2379 = vadd.f32 %v590, %v2378
        %v2380 = vpop.f32.mrb[0].mxu0
        %v2381 = vpop.f32.mrb[0].mxu0
        %v2382 = vadd.f32 %v595, %v2381
        %v2383 = vpop.f32.mrb[0].mxu0
        %2384 = vmatprep.mubr.bf16.mxu0 0
        %2385 = vmatmul.mubr.bf16.gmra.mrb[0].mxu0 %v616
        %v2386 = vpop.f32.mrb[0].mxu0
        %v2387 = vadd.f32 %v600, %v2386
        %v2388 = vpop.f32.mrb[0].mxu0
        %v2389 = vpop.f32.mrb[0].mxu0
        %v2390 = vadd.f32 %v605, %v2389
        %v2391 = vpop.f32.mrb[0].mxu0
        %2392 = vdwg.mxu0
        %vm2393 = vcmp.gt.f32.partialorder %v2379, 0.0
        %vm2394 = vcmp.gt.f32.partialorder %v2382, 0.0
        %vm2395 = vcmp.gt.f32.partialorder %v2387, 0.0
        %vm2396 = vcmp.gt.f32.partialorder %v2390, 0.0
        %v2397 = vmul.f32 %v2379, 0.01
        %v2398 = vmul.f32 %v2382, 0.01
        %v2399 = vmul.f32 %v2387, 0.01
        %v2400 = vmul.f32 %v2390, 0.01
        %v2401 = vsel %vm2393, %v2379, %v2397
        %v2402 = vsel %vm2394, %v2382, %v2398
        %v2403 = vsel %vm2395, %v2387, %v2399
        %v2404 = vsel %vm2396, %v2390, %v2400
        %v2405 = vmul.f32 %v2401, %v404
        %v2406 = vmul.f32 %v2402, %v404
        %v2407 = vmul.f32 %v2403, %v404
        %v2408 = vmul.f32 %v2404, %v404
        %2409 = vadd.xlane.f32.xlu0 %v2405
        %v2410 = vpop.xlane.xlu0 %2409
        %2411 = vadd.xlane.f32.xlu0 %v2406
        %v2412 = vpop.xlane.xlu0 %2411
        %2413 = vadd.xlane.f32.xlu0 %v2407
        %v2414 = vpop.xlane.xlu0 %2413
        %2415 = vadd.xlane.f32.xlu0 %v2408
        %v2416 = vpop.xlane.xlu0 %2415
        %v2417 = vrot.slane %v696, 3
        %v2419 = vsel %vm738, %v2417, 0
        %2421 = vmatprep.subr.bf16.mxu0 0
        %2422 = vmatpush1.bf16.msra.mxu0 %v2419
        %2423 = vmatprep.subr.bf16.mxu0 0
        %2424 = vmatpush1.bf16.msra.mxu0 0
        %2425 = vmatprep.subr.bf16.mxu0 0
        %2426 = vmatpush1.bf16.msra.mxu0 0
        %2427 = vmatprep.subr.bf16.mxu0 0
        %2428 = vmatpush1.bf16.msra.mxu0 0
        %2429 = vmatprep.subr.bf16.mxu0 0
        %2430 = vmatpush1.bf16.msra.mxu0 0
        %2431 = vmatprep.subr.bf16.mxu0 0
        %2432 = vmatpush1.bf16.msra.mxu0 0
        %2433 = vmatprep.subr.bf16.mxu0 0
        %2434 = vmatpush1.bf16.msra.mxu0 0
        %2435 = vmatprep.subr.bf16.mxu0 0
        %2436 = vmatpush1.bf16.msra.mxu0 0
        %2437 = vmatprep.subr.bf16.mxu0 0
        %2438 = vmatpush1.bf16.msra.mxu0 0
        %2439 = vmatprep.subr.bf16.mxu0 0
        %2440 = vmatpush1.bf16.msra.mxu0 0
        %2441 = vmatprep.subr.bf16.mxu0 0
        %2442 = vmatpush1.bf16.msra.mxu0 0
        %2443 = vmatprep.subr.bf16.mxu0 0
        %2444 = vmatpush1.bf16.msra.mxu0 0
        %2445 = vmatprep.subr.bf16.mxu0 0
        %2446 = vmatpush1.bf16.msra.mxu0 0
        %2447 = vmatprep.subr.bf16.mxu0 0
        %2448 = vmatpush1.bf16.msra.mxu0 0
        %2449 = vmatprep.subr.bf16.mxu0 0
        %2450 = vmatpush1.bf16.msra.mxu0 0
        %2451 = vmatprep.subr.bf16.mxu0 0
        %2452 = vmatpush1.bf16.msra.mxu0 0
        %2453 = vmatprep.mubr.bf16.mxu0 0
        %2454 = vmatmul.mubr.bf16.gmra.mrb[0].mxu0 %v733
        %v2455 = vpop.f32.mrb[0].mxu0
        %v2456 = vadd.f32 %v704, %v2455
        %v2457 = vpop.f32.mrb[0].mxu0
        %v2458 = vpop.f32.mrb[0].mxu0
        %v2459 = vadd.f32 %v709, %v2458
        %v2460 = vpop.f32.mrb[0].mxu0
        %2461 = vmatprep.mubr.bf16.mxu0 0
        %2462 = vmatmul.mubr.bf16.gmra.mrb[0].mxu0 %v736
        %v2463 = vpop.f32.mrb[0].mxu0
        %v2464 = vadd.f32 %v714, %v2463
        %v2465 = vpop.f32.mrb[0].mxu0
        %v2466 = vpop.f32.mrb[0].mxu0
        %v2467 = vadd.f32 %v719, %v2466
        %v2468 = vpop.f32.mrb[0].mxu0
        %2469 = vdwg.mxu0
        %vm2470 = vcmp.gt.f32.partialorder %v2456, 0.0
        %vm2471 = vcmp.gt.f32.partialorder %v2459, 0.0
        %vm2472 = vcmp.gt.f32.partialorder %v2464, 0.0
        %vm2473 = vcmp.gt.f32.partialorder %v2467, 0.0
        %v2474 = vmul.f32 %v2456, 0.01
        %v2475 = vmul.f32 %v2459, 0.01
        %v2476 = vmul.f32 %v2464, 0.01
        %v2477 = vmul.f32 %v2467, 0.01
        %v2478 = vsel %vm2470, %v2456, %v2474
        %v2479 = vsel %vm2471, %v2459, %v2475
        %v2480 = vsel %vm2472, %v2464, %v2476
        %v2481 = vsel %vm2473, %v2467, %v2477
        %2482 = vrot.lane.b32.xlu0 %v2478, 1
        %v2483 = vpop.permute.xlu0 %2482
        %2484 = vrot.lane.b32.xlu0 %v2479, 1
        %v2485 = vpop.permute.xlu0 %2484
        %2486 = vrot.lane.b32.xlu0 %v2480, 1
        %v2487 = vpop.permute.xlu0 %2486
        %2488 = vrot.lane.b32.xlu0 %v2481, 1
        %v2489 = vpop.permute.xlu0 %2488
        %v2490 = vmul.f32 %v2483, %v386
        %v2491 = vmul.f32 %v2485, %v386
        %v2492 = vmul.f32 %v2487, %v386
        %v2493 = vmul.f32 %v2489, %v386
        %2494 = vrot.lane.b32.xlu0 %v2478, 127
        %v2495 = vpop.permute.xlu0 %2494
        %2496 = vrot.lane.b32.xlu0 %v2479, 127
        %v2497 = vpop.permute.xlu0 %2496
        %2498 = vrot.lane.b32.xlu0 %v2480, 127
        %v2499 = vpop.permute.xlu0 %2498
        %2500 = vrot.lane.b32.xlu0 %v2481, 127
        %v2501 = vpop.permute.xlu0 %2500
        %v2502 = vmul.f32 %v2495, %v388
        %v2503 = vmul.f32 %v2497, %v388
        %v2504 = vmul.f32 %v2499, %v388
        %v2505 = vmul.f32 %v2501, %v388
        %v2506 = vpack.c.bf16 %v2491, %v2490
        %v2507 = vpack.c.bf16 %v2493, %v2492
        %v2508 = vpack.c.bf16 %v2479, %v2478
        %v2509 = vpack.c.bf16 %v2481, %v2480
        %v2510 = vpack.c.bf16 %v2503, %v2502
        %v2511 = vpack.c.bf16 %v2505, %v2504
        %2512 = vmatprep.subr.bf16.mxu0 0
        %2513 = vmatpush1.bf16.msra.mxu0 %v2506
        %2514 = vmatprep.subr.bf16.mxu0 0
        %2515 = vmatpush1.bf16.msra.mxu0 %v2507
        %2516 = vmatprep.subr.bf16.mxu0 0
        %2517 = vmatpush1.bf16.msra.mxu0 %v2508
        %2518 = vmatprep.subr.bf16.mxu0 0
        %2519 = vmatpush1.bf16.msra.mxu0 %v2509
        %2520 = vmatprep.subr.bf16.mxu0 0
        %2521 = vmatpush1.bf16.msra.mxu0 %v2510
        %2522 = vmatprep.subr.bf16.mxu0 0
        %2523 = vmatpush1.bf16.msra.mxu0 %v2511
        %2524 = vmatprep.subr.bf16.mxu0 0
        %2525 = vmatpush1.bf16.msra.mxu0 0
        %2526 = vmatprep.subr.bf16.mxu0 0
        %2527 = vmatpush1.bf16.msra.mxu0 0
        %2528 = vmatprep.subr.bf16.mxu0 0
        %2529 = vmatpush1.bf16.msra.mxu0 0
        %2530 = vmatprep.subr.bf16.mxu0 0
        %2531 = vmatpush1.bf16.msra.mxu0 0
        %2532 = vmatprep.subr.bf16.mxu0 0
        %2533 = vmatpush1.bf16.msra.mxu0 0
        %2534 = vmatprep.subr.bf16.mxu0 0
        %2535 = vmatpush1.bf16.msra.mxu0 0
        %2536 = vmatprep.subr.bf16.mxu0 0
        %2537 = vmatpush1.bf16.msra.mxu0 0
        %2538 = vmatprep.subr.bf16.mxu0 0
        %2539 = vmatpush1.bf16.msra.mxu0 0
        %2540 = vmatprep.subr.bf16.mxu0 0
        %2541 = vmatpush1.bf16.msra.mxu0 0
        %2542 = vmatprep.subr.bf16.mxu0 0
        %2543 = vmatpush1.bf16.msra.mxu0 0
        %2544 = vmatprep.mubr.bf16.mxu0 0
        %2545 = vmatmul.mubr.bf16.gmra.mrb[0].mxu0 %v873
        %v2546 = vpop.f32.mrb[0].mxu0
        %v2547 = vadd.f32 %v844, %v2546
        %v2548 = vpop.f32.mrb[0].mxu0
        %v2549 = vpop.f32.mrb[0].mxu0
        %v2550 = vadd.f32 %v849, %v2549
        %v2551 = vpop.f32.mrb[0].mxu0
        %2552 = vmatprep.mubr.bf16.mxu0 0
        %2553 = vmatmul.mubr.bf16.gmra.mrb[0].mxu0 %v876
        %v2554 = vpop.f32.mrb[0].mxu0
        %v2555 = vadd.f32 %v854, %v2554
        %v2556 = vpop.f32.mrb[0].mxu0
        %v2557 = vpop.f32.mrb[0].mxu0
        %v2558 = vadd.f32 %v859, %v2557
        %v2559 = vpop.f32.mrb[0].mxu0
        %2560 = vdwg.mxu0
        %vm2561 = vcmp.gt.f32.partialorder %v2547, 0.0
        %vm2562 = vcmp.gt.f32.partialorder %v2550, 0.0
        %vm2563 = vcmp.gt.f32.partialorder %v2555, 0.0
        %vm2564 = vcmp.gt.f32.partialorder %v2558, 0.0
        %v2565 = vmul.f32 %v2547, 0.01
        %v2566 = vmul.f32 %v2550, 0.01
        %v2567 = vmul.f32 %v2555, 0.01
        %v2568 = vmul.f32 %v2558, 0.01
        %v2569 = vsel %vm2561, %v2547, %v2565
        %v2570 = vsel %vm2562, %v2550, %v2566
        %v2571 = vsel %vm2563, %v2555, %v2567
        %v2572 = vsel %vm2564, %v2558, %v2568
        %2573 = vrot.lane.b32.xlu0 %v2569, 1
        %v2574 = vpop.permute.xlu0 %2573
        %2575 = vrot.lane.b32.xlu0 %v2570, 1
        %v2576 = vpop.permute.xlu0 %2575
        %2577 = vrot.lane.b32.xlu0 %v2571, 1
        %v2578 = vpop.permute.xlu0 %2577
        %2579 = vrot.lane.b32.xlu0 %v2572, 1
        %v2580 = vpop.permute.xlu0 %2579
        %v2581 = vmul.f32 %v2574, %v386
        %v2582 = vmul.f32 %v2576, %v386
        %v2583 = vmul.f32 %v2578, %v386
        %v2584 = vmul.f32 %v2580, %v386
        %2585 = vrot.lane.b32.xlu0 %v2569, 127
        %v2586 = vpop.permute.xlu0 %2585
        %2587 = vrot.lane.b32.xlu0 %v2570, 127
        %v2588 = vpop.permute.xlu0 %2587
        %2589 = vrot.lane.b32.xlu0 %v2571, 127
        %v2590 = vpop.permute.xlu0 %2589
        %2591 = vrot.lane.b32.xlu0 %v2572, 127
        %v2592 = vpop.permute.xlu0 %2591
        %v2593 = vmul.f32 %v2586, %v388
        %v2594 = vmul.f32 %v2588, %v388
        %v2595 = vmul.f32 %v2590, %v388
        %v2596 = vmul.f32 %v2592, %v388
        %v2597 = vpack.c.bf16 %v2582, %v2581
        %v2598 = vpack.c.bf16 %v2584, %v2583
        %v2599 = vpack.c.bf16 %v2570, %v2569
        %v2600 = vpack.c.bf16 %v2572, %v2571
        %v2601 = vpack.c.bf16 %v2594, %v2593
        %v2602 = vpack.c.bf16 %v2596, %v2595
        %2603 = vmatprep.subr.bf16.mxu0 0
        %2604 = vmatpush1.bf16.msra.mxu0 %v2597
        %2605 = vmatprep.subr.bf16.mxu0 0
        %2606 = vmatpush1.bf16.msra.mxu0 %v2598
        %2607 = vmatprep.subr.bf16.mxu0 0
        %2608 = vmatpush1.bf16.msra.mxu0 %v2599
        %2609 = vmatprep.subr.bf16.mxu0 0
        %2610 = vmatpush1.bf16.msra.mxu0 %v2600
        %2611 = vmatprep.subr.bf16.mxu0 0
        %2612 = vmatpush1.bf16.msra.mxu0 %v2601
        %2613 = vmatprep.subr.bf16.mxu0 0
        %2614 = vmatpush1.bf16.msra.mxu0 %v2602
        %2615 = vmatprep.subr.bf16.mxu0 0
        %2616 = vmatpush1.bf16.msra.mxu0 0
        %2617 = vmatprep.subr.bf16.mxu0 0
        %2618 = vmatpush1.bf16.msra.mxu0 0
        %2619 = vmatprep.subr.bf16.mxu0 0
        %2620 = vmatpush1.bf16.msra.mxu0 0
        %2621 = vmatprep.subr.bf16.mxu0 0
        %2622 = vmatpush1.bf16.msra.mxu0 0
        %2623 = vmatprep.subr.bf16.mxu0 0
        %2624 = vmatpush1.bf16.msra.mxu0 0
        %2625 = vmatprep.subr.bf16.mxu0 0
        %2626 = vmatpush1.bf16.msra.mxu0 0
        %2627 = vmatprep.subr.bf16.mxu0 0
        %2628 = vmatpush1.bf16.msra.mxu0 0
        %2629 = vmatprep.subr.bf16.mxu0 0
        %2630 = vmatpush1.bf16.msra.mxu0 0
        %2631 = vmatprep.subr.bf16.mxu0 0
        %2632 = vmatpush1.bf16.msra.mxu0 0
        %2633 = vmatprep.subr.bf16.mxu0 0
        %2634 = vmatpush1.bf16.msra.mxu0 0
        %2635 = vmatprep.mubr.bf16.mxu0 0
        %2636 = vmatmul.mubr.bf16.gmra.mrb[0].mxu0 %v1008
        %v2637 = vpop.f32.mrb[0].mxu0
        %v2638 = vadd.f32 %v980, %v2637
        %v2639 = vpop.f32.mrb[0].mxu0
        %v2640 = vpop.f32.mrb[0].mxu0
        %v2641 = vadd.f32 %v985, %v2640
        %v2642 = vpop.f32.mrb[0].mxu0
        %2643 = vmatprep.mubr.bf16.mxu0 0
        %2644 = vmatmul.mubr.bf16.gmra.mrb[0].mxu0 %v1011
        %v2645 = vpop.f32.mrb[0].mxu0
        %v2646 = vadd.f32 %v990, %v2645
        %v2647 = vpop.f32.mrb[0].mxu0
        %v2648 = vpop.f32.mrb[0].mxu0
        %v2649 = vadd.f32 %v995, %v2648
        %v2650 = vpop.f32.mrb[0].mxu0
        %2651 = vdwg.mxu0
        %v2652 = vadd.f32 %v2478, %v2638
        %v2653 = vadd.f32 %v2479, %v2641
        %v2654 = vadd.f32 %v2480, %v2646
        %v2655 = vadd.f32 %v2481, %v2649
        %vm2656 = vcmp.gt.f32.partialorder %v2652, 0.0
        %vm2657 = vcmp.gt.f32.partialorder %v2653, 0.0
        %vm2658 = vcmp.gt.f32.partialorder %v2654, 0.0
        %vm2659 = vcmp.gt.f32.partialorder %v2655, 0.0
        %v2660 = vmul.f32 %v2652, 0.01
        %v2661 = vmul.f32 %v2653, 0.01
        %v2662 = vmul.f32 %v2654, 0.01
        %v2663 = vmul.f32 %v2655, 0.01
        %v2664 = vsel %vm2656, %v2652, %v2660
        %v2665 = vsel %vm2657, %v2653, %v2661
        %v2666 = vsel %vm2658, %v2654, %v2662
        %v2667 = vsel %vm2659, %v2655, %v2663
        %2668 = vadd.xlane.f32.xlu0 %v2664
        %v2669 = vpop.xlane.xlu0 %2668
        %2670 = vadd.xlane.f32.xlu0 %v2665
        %v2671 = vpop.xlane.xlu0 %2670
        %2672 = vadd.xlane.f32.xlu0 %v2666
        %v2673 = vpop.xlane.xlu0 %2672
        %2674 = vadd.xlane.f32.xlu0 %v2667
        %v2675 = vpop.xlane.xlu0 %2674
        %v2676 = vmul.f32 %v2669, 0.0078125
        %v2677 = vmul.f32 %v2671, 0.0078125
        %v2678 = vmul.f32 %v2673, 0.0078125
        %v2679 = vmul.f32 %v2675, 0.0078125
        %2681 = vset.pattern.permute.xlu0 0
        %2682 = vperm.xlu0 %2681, %v2410
        %v2683 = vpop.permute.xlu0 %2682
        %2686 = vset.pattern.permute.xlu0 0
        %2687 = vperm.xlu0 %2686, %v2412
        %v2688 = vpop.permute.xlu0 %2687
        %2691 = vset.pattern.permute.xlu0 0
        %2692 = vperm.xlu0 %2691, %v2414
        %v2693 = vpop.permute.xlu0 %2692
        %2696 = vset.pattern.permute.xlu0 0
        %2697 = vperm.xlu0 %2696, %v2416
        %v2698 = vpop.permute.xlu0 %2697
        %2701 = vset.pattern.permute.xlu0 0
        %2702 = vperm.xlu0 %2701, %v2676
        %v2703 = vpop.permute.xlu0 %2702
        %2706 = vset.pattern.permute.xlu0 0
        %2707 = vperm.xlu0 %2706, %v2677
        %v2708 = vpop.permute.xlu0 %2707
        %2711 = vset.pattern.permute.xlu0 0
        %2712 = vperm.xlu0 %2711, %v2678
        %v2713 = vpop.permute.xlu0 %2712
        %2716 = vset.pattern.permute.xlu0 0
        %2717 = vperm.xlu0 %2716, %v2679
        %v2718 = vpop.permute.xlu0 %2717
        %v2720 = vmul.f32 %v2683, %v422
        %v2721 = vmul.f32 %v2688, %v423
        %v2722 = vmul.f32 %v2693, %v424
        %v2723 = vmul.f32 %v2698, %v425
        %v2724 = vmul.f32 %v2703, %v426
        %v2725 = vmul.f32 %v2708, %v427
        %v2726 = vmul.f32 %v2713, %v428
        %v2727 = vmul.f32 %v2718, %v429
        %v2728 = vsel %vm1138, %v2720, 0.0
        %v2729 = vsel %vm1138, %v2721, 0.0
        %v2730 = vadd.f32 %v2728, %v2729
        %v2731 = vsel %vm1138, %v2722, 0.0
        %v2732 = vadd.f32 %v2730, %v2731
        %v2733 = vsel %vm1138, %v2723, 0.0
        %v2734 = vadd.f32 %v2732, %v2733
        %v2735 = vsel %vm1138, %v2724, 0.0
        %v2736 = vadd.f32 %v2734, %v2735
        %v2737 = vsel %vm1138, %v2725, 0.0
        %v2738 = vadd.f32 %v2736, %v2737
        %v2739 = vsel %vm1138, %v2726, 0.0
        %v2740 = vadd.f32 %v2738, %v2739
        %v2741 = vsel %vm1138, %v2727, 0.0
        %v2742 = vadd.f32 %v2740, %v2741
        %v2743 = vrot.slane %v2742, 4
        %v2744 = vadd.f32 %v2742, %v2743
        %v2745 = vrot.slane %v2744, 2
        %v2746 = vadd.f32 %v2744, %v2745
        %v2747 = vrot.slane %v2746, 1
        %v2748 = vadd.f32 %v2746, %v2747
        %v2749 = vsel %vm738, %v1159, %v1690
        %v2750 = vsel %vm463, %v2749, %v2219
        %vm2751 = vcmask 1042432
        %v2752 = vsel %vm2751, %v2750, %v2748
        %vm2753 = vcmask 519168
        %2754 = vst.msk [vmem:[%s377] sm:$0xf] %vm2753, %v2752
        %s2755 = sand.u32 %s269, 1
        %s2756 = scalar_lea.sflag [#allocation3], %s2755
        %s2757 = sand.u32 %s269, 1
        %s2758 = smul.addr %s2757, 4
        %s2759 = scalar_lea.vmem [#allocation2], %s2758
        // Predicated region
        $region65: #{mee_equaliser_encoder.1} parent=63 // pred_check
          %p2760 = pneg %p279
        $region66: #{mee_equaliser_encoder.1} parent=63 // pred_check_branch
          %2762 = sbr.rel (%p2760) target = $region68
        $region67: #{mee_equaliser_encoder.1} parent=63 // pred_region
          %s2764 = ssub.s32 64, 64
          %2765 = vsyncadd %s2756, %s2764
          %s2766 = smul.addr %s25, 64
          %s2767 = scalar_lea.hbm %s11, %s2766
          %s2769 = sshll.u32 %s2759, 4
          %s2770 = int_to_ptr.vmem [resolvable:$true] %s2769
          %2772 = dma.vmem_to_hbm [thread:$0]  %s2770, 64, %s2767, %s2756
        $region68: #{mee_equaliser_encoder.1} parent=63 // pred_fallthru
          _
      $region64: #{mee_equaliser_encoder.1} parent=5 // pred_fallthru
        _
      %p2773 = scmp.le.s32.totalorder 2, %s20
      // Predicated region
      $region69: #{mee_equaliser_encoder.1} parent=5 // pred_check
        %p2774 = pneg %p2773
      $region70: #{mee_equaliser_encoder.1} parent=5 // pred_check_branch
        %2776 = sbr.rel (%p2774) target = $region72
      $region71: #{mee_equaliser_encoder.1} parent=5 // pred_region
        %s2777 = ssub.s32 %s20, 2
        // Predicated region
        $region73: #{mee_equaliser_encoder.1} parent=71 // pred_check
          %p2778 = pneg %p285
        $region74: #{mee_equaliser_encoder.1} parent=71 // pred_check_branch
          %2780 = sbr.rel (%p2778) target = $region76
        $region75: #{mee_equaliser_encoder.1} parent=71 // pred_region
          %s2781 = sand.u32 %s270, 1
          %s2782 = scalar_lea.sflag [#allocation3], %s2781
          %s2783 = sand.u32 %s270, 1
          %s2784 = smul.addr %s2783, 4
          %s2785 = scalar_lea.vmem [#allocation2], %s2784
          %2786 = dma.done %s2782, 64
        $region76: #{mee_equaliser_encoder.1} parent=71 // pred_fallthru
          _
      $region72: #{mee_equaliser_encoder.1} parent=5 // pred_fallthru
        _
    $region6: #{mee_equaliser_encoder.1} parent=1 // loop_footer
      %s24 = sadd.s32 1, %s20
    $region7: #{mee_equaliser_encoder.1} parent=1 // loop_footer_branch
      %19 = sbr.rel target = $region3
    $region8: #{mee_equaliser_encoder.1} parent=1 // loop_exit
      _
    %2787 = vsyncpa [#allocation3], 1
    %s2788 = scalar_lea.sflag [#allocation3], 1
    %2789 = vsyncpa %s2788, 1

</llo_original>
